<compile_context>
chip_gen: v7x
topology: tpu7x:2x2x1
jax: 0.10.0
libtpu: 0.0.40
codegen_flags: <defaults>
</compile_context>

<pallas_src>
import numpy as np
import jax
import jax.numpy as jnp
from jax.experimental import pallas as pl
from jax.experimental.pallas import tpu as pltpu

# ---------------- small synthetic ViT config ----------------
B = 2            # batch
C = 3            # RGB channels (ImageNet-normalized input, like the preprocess)
IMG = 32         # spatial size (stand-in for 518)
PATCH = 8
NP = (IMG // PATCH) ** 2      # 16 patches per image
N = NP + 1                    # +CLS token = 17 tokens
BN = B * N                    # batch folded into the token (M) dimension = 34
D = 64                        # hidden dim
H = 2                         # attention heads
HD = D // H                   # head dim
MLP = 4 * D                   # MLP hidden dim
DEPTH = 2                     # transformer blocks
EPS = 1e-6
PD = C * PATCH * PATCH        # flattened patch dim = 192
NEG = -1e30                   # additive bias for cross-batch attention entries


def _layernorm(x, g, b):
    mu = jnp.mean(x, axis=-1, keepdims=True)
    var = jnp.mean((x - mu) ** 2, axis=-1, keepdims=True)
    return (x - mu) * jax.lax.rsqrt(var + EPS) * g + b


def _erf(x):
    # Abramowitz & Stegun 7.1.26 polynomial, |err| <= 1.5e-7 (f32-level accuracy).
    a1, a2, a3, a4, a5 = 0.254829592, -0.284496736, 1.421413741, -1.453152027, 1.061405429
    pp = 0.3275911
    ax = jnp.abs(x)
    t = 1.0 / (1.0 + pp * ax)
    poly = ((((a5 * t + a4) * t + a3) * t + a2) * t + a1) * t
    y = 1.0 - poly * jnp.exp(-ax * ax)
    return jnp.where(x >= 0, y, -y)


def _gelu_exact(x):
    # matches torch.nn.GELU() (erf form); jax.nn.gelu defaults to the tanh approx
    return 0.5 * x * (1.0 + _erf(x * 0.7071067811865476))


# ---------------- the single fused Pallas kernel ----------------
def backbone_kernel(patches_ref, bias_ref, patch_w_ref, pos_ref, misc_ref,
                    small_ref, wqkv_ref, bqkv_ref, wo_ref, w1_ref, b1m_ref,
                    w2_ref, o_ref, tok_ref):
    f32, bf16 = jnp.float32, jnp.bfloat16
    scale = 1.0 / float(HD) ** 0.5

    # ---- patch embed + CLS token + positional embedding, all in-kernel ----
    # (conv bias is pre-folded into pos_ref rows host-side -> one fewer add)
    pe = jnp.dot(patches_ref[...].astype(bf16), patch_w_ref[...],
                 preferred_element_type=f32)                              # (B*NP, D)
    cls_row = misc_ref[0:1, :]                                            # cls + pos[0]
    pos_b = pos_ref[...]                                                  # (NP, D)
    for b in range(B):
        tok_ref[b * N:b * N + 1, :] = cls_row
        tok_ref[b * N + 1:(b + 1) * N, :] = pe[b * NP:(b + 1) * NP, :] + pos_b
    x = tok_ref[...]                                                      # (BN, D), f32
    attn_bias = bias_ref[...]                                             # (BN, BN): 0 / -1e30

    for l in range(DEPTH):            # static unroll; all weights VMEM-resident
        g1 = small_ref[l, 0:1, :]
        b1 = small_ref[l, 1:2, :]
        g2 = small_ref[l, 2:3, :]
        b2 = small_ref[l, 3:4, :]
        bo = small_ref[l, 4:5, :]
        b2m = small_ref[l, 5:6, :]

        # ---- multi-head self-attention (batch folded into M) ----
        xn = _layernorm(x, g1, b1).astype(bf16)                           # (BN, D)
        # fused QKV: one wide matmul + one bias row  (columns = [Q | K | V])
        qkv = jnp.dot(xn, wqkv_ref[l], preferred_element_type=f32) + bqkv_ref[l]
        ctxs = []
        for h in range(H):            # static unroll over heads
            q = qkv[:, 0 * D + h * HD:0 * D + (h + 1) * HD] * scale       # (BN, HD)
            k = qkv[:, 1 * D + h * HD:1 * D + (h + 1) * HD]
            v = qkv[:, 2 * D + h * HD:2 * D + (h + 1) * HD]
            # block-diagonal additive bias keeps attention within each batch element
            s = jnp.dot(q, k.T, preferred_element_type=f32) + attn_bias
            s = s - jnp.max(s, axis=-1, keepdims=True)
            p = jnp.exp(s)
            p = p * pl.reciprocal(jnp.sum(p, axis=-1, keepdims=True), approx=True)
            ctxs.append(jnp.dot(p.astype(bf16), v.astype(bf16),
                                preferred_element_type=f32))              # (BN, HD)
        # single fused output projection over the concatenated heads
        ctx = jnp.concatenate(ctxs, axis=-1).astype(bf16)                 # (BN, D)
        x = x + jnp.dot(ctx, wo_ref[l], preferred_element_type=f32) + bo

        # ---- MLP (exact GELU, f32 elementwise) ----
        yn = _layernorm(x, g2, b2).astype(bf16)
        hmid = jnp.dot(yn, w1_ref[l], preferred_element_type=f32) + b1m_ref[l]
        hmid = _gelu_exact(hmid)
        x = x + jnp.dot(hmid.astype(bf16), w2_ref[l], preferred_element_type=f32) + b2m

    # ---- final LayerNorm on the CLS rows only ----
    tok_ref[...] = x
    fg = misc_ref[1:2, :]
    fb = misc_ref[2:3, :]
    for b in range(B):
        o_ref[b:b + 1, :] = _layernorm(tok_ref[b * N:b * N + 1, :], fg, fb)


# ---------------- pallas_call wrapper ----------------
def _spec(shape):
    return pl.BlockSpec(shape, lambda *_: (0,) * len(shape))


# constant additive attention bias: 0 within a batch element, -1e30 across them
_tok_batch = np.arange(BN) // N
ATTN_BIAS = jnp.asarray(
    np.where(_tok_batch[:, None] == _tok_batch[None, :], 0.0, NEG).astype(np.float32))


@jax.jit
def backbone_forward(x_nchw, params):
    # patchify NCHW -> (B*NP, C*P*P); flattening order matches Conv2d(C, D, P, stride=P)
    Hp = IMG // PATCH
    p = x_nchw.reshape(B, C, Hp, PATCH, Hp, PATCH)
    p = jnp.transpose(p, (0, 2, 4, 1, 3, 5)).reshape(B * NP, PD)

    return pl.pallas_call(
        backbone_kernel,
        out_shape=jax.ShapeDtypeStruct((B, D), jnp.float32),
        grid=(1,),
        in_specs=[
            _spec((B * NP, PD)),            # patches
            _spec((BN, BN)),                # additive block-diagonal attention bias
            _spec((PD, D)),                 # patch-embed weight (bf16)
            _spec((NP, D)),                 # pos-embed (patch rows) + conv bias folded in
            _spec((3, D)),                  # [cls+pos0, final_ln_gamma, final_ln_beta]
            _spec((DEPTH, 6, D)),           # [g1, b1, g2, b2, attn_proj_b, mlp_out_b]
            _spec((DEPTH, D, 3 * D)),       # fused Wqkv (bf16), columns = [Q | K | V]
            _spec((DEPTH, 1, 3 * D)),       # fused qkv bias
            _spec((DEPTH, D, D)),           # Wo (bf16)
            _spec((DEPTH, D, MLP)),         # W1 (bf16)
            _spec((DEPTH, 1, MLP)),         # b1
            _spec((DEPTH, MLP, D)),         # W2 (bf16)
        ],
        out_specs=_spec((B, D)),
        scratch_shapes=[pltpu.VMEM((BN, D), jnp.float32)],
        compiler_params=pltpu.CompilerParams(dimension_semantics=("arbitrary",)),
    )(p, ATTN_BIAS, params["patch_w"], params["pos"], params["misc"],
      params["small"], params["wqkv"], params["bqkv"], params["wo"],
      params["w1"], params["b1m"], params["w2"])


# ---------------- deterministic parameter init (packed layouts) ----------------
def init_params(key):
    ks = jax.random.split(key, 4)
    params = {}
    params["patch_w"] = (0.02 * jax.random.normal(ks[0], (PD, D), jnp.float32)
                         ).astype(jnp.bfloat16)
    pos = 0.02 * jax.random.normal(ks[1], (N, D), jnp.float32)
    cls = 0.02 * jax.random.normal(ks[2], (1, D), jnp.float32)
    patch_b = jnp.zeros((1, D), jnp.float32)                  # conv bias
    params["pos"] = pos[1:, :] + patch_b                      # bias folded in (exact)
    # misc rows: [cls_token + pos[0], final_ln_gamma, final_ln_beta]
    params["misc"] = jnp.concatenate(
        [cls + pos[0:1, :], jnp.ones((1, D), jnp.float32),
         jnp.zeros((1, D), jnp.float32)], axis=0)

    small, wqkv, bqkv, wo, w1, b1m, w2 = [], [], [], [], [], [], []
    for l in range(DEPTH):
        bk = jax.random.split(jax.random.fold_in(ks[3], l), 4)
        # rows: [ln1_g, ln1_b, ln2_g, ln2_b, attn_proj_bias, mlp_out_bias]
        small.append(jnp.stack([jnp.ones((D,), jnp.float32),
                                jnp.zeros((D,), jnp.float32),
                                jnp.ones((D,), jnp.float32),
                                jnp.zeros((D,), jnp.float32),
                                jnp.zeros((D,), jnp.float32),
                                jnp.zeros((D,), jnp.float32)]))
        # fused QKV weight, columns ordered [Q | K | V], each head-contiguous
        wqkv.append(0.02 * jax.random.normal(bk[0], (D, 3 * D), jnp.float32))
        bqkv.append(jnp.zeros((1, 3 * D), jnp.float32))
        wo.append(0.02 * jax.random.normal(bk[1], (D, D), jnp.float32))
        w1.append(0.02 * jax.random.normal(bk[2], (D, MLP), jnp.float32))
        b1m.append(jnp.zeros((1, MLP), jnp.float32))
        w2.append(0.02 * jax.random.normal(bk[3], (MLP, D), jnp.float32))
    params["small"] = jnp.stack(small)                                    # (DEPTH, 6, D)
    params["wqkv"] = jnp.stack(wqkv).astype(jnp.bfloat16)                 # (DEPTH, D, 3D)
    params["bqkv"] = jnp.stack(bqkv)                                      # (DEPTH, 1, 3D)
    params["wo"] = jnp.stack(wo).astype(jnp.bfloat16)                     # (DEPTH, D, D)
    params["w1"] = jnp.stack(w1).astype(jnp.bfloat16)                     # (DEPTH, D, MLP)
    params["b1m"] = jnp.stack(b1m)                                        # (DEPTH, 1, MLP)
    params["w2"] = jnp.stack(w2).astype(jnp.bfloat16)                     # (DEPTH, MLP, D)
    return params


if __name__ == "__main__":
    key = jax.random.PRNGKey(0)
    k_in, k_par = jax.random.split(key)
    # input plays the role of an ImageNet-normalized image batch (NCHW, like PyTorch)
    x = jax.random.normal(k_in, (B, C, IMG, IMG), jnp.float32)
    params = init_params(k_par)

    out = jax.block_until_ready(backbone_forward(x, params))

    assert out.shape == (B, D), out.shape
    assert bool(jnp.all(jnp.isfinite(out)))
    print("KERNEL_OK")
</pallas_src>

<mosaic_0001>
module attributes {stable_mosaic.version = 11 : i64} {
  func.func @backbone_kernel(%arg0: i32, %arg1: memref<32x192xf32, #tpu.memory_space<vmem>>, %arg2: memref<34x34xf32, #tpu.memory_space<vmem>>, %arg3: memref<192x64xbf16, #tpu.memory_space<vmem>>, %arg4: memref<16x64xf32, #tpu.memory_space<vmem>>, %arg5: memref<3x64xf32, #tpu.memory_space<vmem>>, %arg6: memref<2x6x64xf32, #tpu.memory_space<vmem>>, %arg7: memref<2x64x192xbf16, #tpu.memory_space<vmem>>, %arg8: memref<2x1x192xf32, #tpu.memory_space<vmem>>, %arg9: memref<2x64x64xbf16, #tpu.memory_space<vmem>>, %arg10: memref<2x64x256xbf16, #tpu.memory_space<vmem>>, %arg11: memref<2x1x256xf32, #tpu.memory_space<vmem>>, %arg12: memref<2x256x64xbf16, #tpu.memory_space<vmem>>, %arg13: memref<2x64xf32, #tpu.memory_space<vmem>>, %arg14: memref<34x64xf32, #tpu.memory_space<vmem>>) attributes {dimension_semantics = [#tpu.dimension_semantics<arbitrary>], iteration_bounds = array<i64: 1>, scalar_prefetch = 0 : i64, scratch_operands = 1 : i64, tpu.core_type = #tpu.core_type<tc>, window_params = [{pipeline_mode = #tpu.pipeline_mode<synchronous>, transform_indices = @transform_0, window_bounds = array<i64: 32, 192>}, {pipeline_mode = #tpu.pipeline_mode<synchronous>, transform_indices = @transform_1, window_bounds = array<i64: 34, 34>}, {pipeline_mode = #tpu.pipeline_mode<synchronous>, transform_indices = @transform_2, window_bounds = array<i64: 192, 64>}, {pipeline_mode = #tpu.pipeline_mode<synchronous>, transform_indices = @transform_3, window_bounds = array<i64: 16, 64>}, {pipeline_mode = #tpu.pipeline_mode<synchronous>, transform_indices = @transform_4, window_bounds = array<i64: 3, 64>}, {pipeline_mode = #tpu.pipeline_mode<synchronous>, transform_indices = @transform_5, window_bounds = array<i64: 2, 6, 64>}, {pipeline_mode = #tpu.pipeline_mode<synchronous>, transform_indices = @transform_6, window_bounds = array<i64: 2, 64, 192>}, {pipeline_mode = #tpu.pipeline_mode<synchronous>, transform_indices = @transform_7, window_bounds = array<i64: 2, 1, 192>}, {pipeline_mode = #tpu.pipeline_mode<synchronous>, transform_indices = @transform_8, window_bounds = array<i64: 2, 64, 64>}, {pipeline_mode = #tpu.pipeline_mode<synchronous>, transform_indices = @transform_9, window_bounds = array<i64: 2, 64, 256>}, {pipeline_mode = #tpu.pipeline_mode<synchronous>, transform_indices = @transform_10, window_bounds = array<i64: 2, 1, 256>}, {pipeline_mode = #tpu.pipeline_mode<synchronous>, transform_indices = @transform_11, window_bounds = array<i64: 2, 256, 64>}, {pipeline_mode = #tpu.pipeline_mode<synchronous>, transform_indices = @transform_12, window_bounds = array<i64: 2, 64>}]} {
    %c0 = arith.constant 0 : index
    %c0_0 = arith.constant 0 : index
    %0 = vector.load %arg1[%c0, %c0_0] : memref<32x192xf32, #tpu.memory_space<vmem>>, vector<32x192xf32>
    %1 = arith.truncf %0 : vector<32x192xf32> to vector<32x192xbf16>
    %c0_1 = arith.constant 0 : index
    %c0_2 = arith.constant 0 : index
    %2 = vector.load %arg3[%c0_1, %c0_2] : memref<192x64xbf16, #tpu.memory_space<vmem>>, vector<192x64xbf16>
    %cst = arith.constant dense<0.000000e+00> : vector<32x64xf32>
    %3 = tpu.matmul %1, %2, %cst {dimension_numbers = #tpu.dot_dimension_numbers<[1], [0], [0], [1], [0, 0, 1, 1], [], []>} : vector<32x192xbf16>, vector<192x64xbf16>, vector<32x64xf32> -> vector<32x64xf32>
    %c0_3 = arith.constant 0 : index
    %c0_4 = arith.constant 0 : index
    %4 = vector.load %arg5[%c0_3, %c0_4] : memref<3x64xf32, #tpu.memory_space<vmem>>, vector<1x64xf32>
    %c0_5 = arith.constant 0 : index
    %c0_6 = arith.constant 0 : index
    %5 = vector.load %arg4[%c0_5, %c0_6] : memref<16x64xf32, #tpu.memory_space<vmem>>, vector<16x64xf32>
    %c0_7 = arith.constant 0 : index
    %c0_8 = arith.constant 0 : index
    %6 = vector.load %arg14[%c0_7, %c0_8] : memref<34x64xf32, #tpu.memory_space<vmem>>, vector<1x64xf32>
    tpu.vector_store %arg14[%c0_7, %c0_8], %4 {strides = array<i32>} : memref<34x64xf32, #tpu.memory_space<vmem>>, vector<1x64xf32>,
    %7 = vector.extract_strided_slice %3 {offsets = [0, 0], sizes = [16, 64], strides = [1, 1]} : vector<32x64xf32> to vector<16x64xf32>
    %8 = arith.addf %7, %5 : vector<16x64xf32>
    %c1 = arith.constant 1 : index
    %c0_9 = arith.constant 0 : index
    %9 = vector.load %arg14[%c1, %c0_9] : memref<34x64xf32, #tpu.memory_space<vmem>>, vector<16x64xf32>
    tpu.vector_store %arg14[%c1, %c0_9], %8 {strides = array<i32>} : memref<34x64xf32, #tpu.memory_space<vmem>>, vector<16x64xf32>,
    %c17 = arith.constant 17 : index
    %c0_10 = arith.constant 0 : index
    %10 = vector.load %arg14[%c17, %c0_10] : memref<34x64xf32, #tpu.memory_space<vmem>>, vector<1x64xf32>
    tpu.vector_store %arg14[%c17, %c0_10], %4 {strides = array<i32>} : memref<34x64xf32, #tpu.memory_space<vmem>>, vector<1x64xf32>,
    %11 = vector.extract_strided_slice %3 {offsets = [16, 0], sizes = [16, 64], strides = [1, 1]} : vector<32x64xf32> to vector<16x64xf32>
    %12 = arith.addf %11, %5 : vector<16x64xf32>
    %c18 = arith.constant 18 : index
    %c0_11 = arith.constant 0 : index
    %13 = vector.load %arg14[%c18, %c0_11] : memref<34x64xf32, #tpu.memory_space<vmem>>, vector<16x64xf32>
    tpu.vector_store %arg14[%c18, %c0_11], %12 {strides = array<i32>} : memref<34x64xf32, #tpu.memory_space<vmem>>, vector<16x64xf32>,
    %c0_12 = arith.constant 0 : index
    %c0_13 = arith.constant 0 : index
    %14 = vector.load %arg14[%c0_12, %c0_13] : memref<34x64xf32, #tpu.memory_space<vmem>>, vector<34x64xf32>
    %c0_14 = arith.constant 0 : index
    %c0_15 = arith.constant 0 : index
    %15 = vector.load %arg2[%c0_14, %c0_15] : memref<34x34xf32, #tpu.memory_space<vmem>>, vector<34x34xf32>
    %c0_16 = arith.constant 0 : index
    %c0_17 = arith.constant 0 : index
    %c0_18 = arith.constant 0 : index
    %16 = vector.load %arg6[%c0_16, %c0_17, %c0_18] : memref<2x6x64xf32, #tpu.memory_space<vmem>>, vector<1x1x64xf32>
    %17 = vector.shape_cast %16 : vector<1x1x64xf32> to vector<1x64xf32>
    %c0_19 = arith.constant 0 : index
    %c1_20 = arith.constant 1 : index
    %c0_21 = arith.constant 0 : index
    %18 = vector.load %arg6[%c0_19, %c1_20, %c0_21] : memref<2x6x64xf32, #tpu.memory_space<vmem>>, vector<1x1x64xf32>
    %19 = vector.shape_cast %18 : vector<1x1x64xf32> to vector<1x64xf32>
    %c0_22 = arith.constant 0 : index
    %c2 = arith.constant 2 : index
    %c0_23 = arith.constant 0 : index
    %20 = vector.load %arg6[%c0_22, %c2, %c0_23] : memref<2x6x64xf32, #tpu.memory_space<vmem>>, vector<1x1x64xf32>
    %21 = vector.shape_cast %20 : vector<1x1x64xf32> to vector<1x64xf32>
    %c0_24 = arith.constant 0 : index
    %c3 = arith.constant 3 : index
    %c0_25 = arith.constant 0 : index
    %22 = vector.load %arg6[%c0_24, %c3, %c0_25] : memref<2x6x64xf32, #tpu.memory_space<vmem>>, vector<1x1x64xf32>
    %23 = vector.shape_cast %22 : vector<1x1x64xf32> to vector<1x64xf32>
    %c0_26 = arith.constant 0 : index
    %c4 = arith.constant 4 : index
    %c0_27 = arith.constant 0 : index
    %24 = vector.load %arg6[%c0_26, %c4, %c0_27] : memref<2x6x64xf32, #tpu.memory_space<vmem>>, vector<1x1x64xf32>
    %25 = vector.shape_cast %24 : vector<1x1x64xf32> to vector<1x64xf32>
    %c0_28 = arith.constant 0 : index
    %c5 = arith.constant 5 : index
    %c0_29 = arith.constant 0 : index
    %26 = vector.load %arg6[%c0_28, %c5, %c0_29] : memref<2x6x64xf32, #tpu.memory_space<vmem>>, vector<1x1x64xf32>
    %27 = vector.shape_cast %26 : vector<1x1x64xf32> to vector<1x64xf32>
    %cst_30 = arith.constant dense<0.000000e+00> : vector<34xf32>
    %28 = vector.multi_reduction <add>, %14, %cst_30 [1] : vector<34x64xf32> to vector<34xf32>
    %29 = vector.shape_cast %28 : vector<34xf32> to vector<34x1xf32>
    %cst_31 = arith.constant 6.400000e+01 : f32
    %30 = vector.broadcast %cst_31 : f32 to vector<34x1xf32>
    %31 = arith.divf %29, %30 : vector<34x1xf32>
    %32 = vector.broadcast %31 : vector<34x1xf32> to vector<34x64xf32>
    %33 = arith.subf %14, %32 : vector<34x64xf32>
    %34 = arith.mulf %33, %33 : vector<34x64xf32>
    %cst_32 = arith.constant dense<0.000000e+00> : vector<34xf32>
    %35 = vector.multi_reduction <add>, %34, %cst_32 [1] : vector<34x64xf32> to vector<34xf32>
    %36 = vector.shape_cast %35 : vector<34xf32> to vector<34x1xf32>
    %cst_33 = arith.constant 6.400000e+01 : f32
    %37 = vector.broadcast %cst_33 : f32 to vector<34x1xf32>
    %38 = arith.divf %36, %37 : vector<34x1xf32>
    %39 = vector.broadcast %31 : vector<34x1xf32> to vector<34x64xf32>
    %40 = arith.subf %14, %39 : vector<34x64xf32>
    %cst_34 = arith.constant 9.99999997E-7 : f32
    %41 = vector.broadcast %cst_34 : f32 to vector<34x1xf32>
    %42 = arith.addf %38, %41 : vector<34x1xf32>
    %43 = math.rsqrt %42 : vector<34x1xf32>
    %44 = vector.broadcast %43 : vector<34x1xf32> to vector<34x64xf32>
    %45 = arith.mulf %40, %44 : vector<34x64xf32>
    %46 = vector.broadcast %17 : vector<1x64xf32> to vector<34x64xf32>
    %47 = arith.mulf %45, %46 : vector<34x64xf32>
    %48 = vector.broadcast %19 : vector<1x64xf32> to vector<34x64xf32>
    %49 = arith.addf %47, %48 : vector<34x64xf32>
    %50 = arith.truncf %49 : vector<34x64xf32> to vector<34x64xbf16>
    %c0_35 = arith.constant 0 : index
    %c0_36 = arith.constant 0 : index
    %c0_37 = arith.constant 0 : index
    %51 = vector.load %arg7[%c0_35, %c0_36, %c0_37] : memref<2x64x192xbf16, #tpu.memory_space<vmem>>, vector<1x64x192xbf16>
    %52 = vector.shape_cast %51 : vector<1x64x192xbf16> to vector<64x192xbf16>
    %cst_38 = arith.constant dense<0.000000e+00> : vector<34x192xf32>
    %53 = tpu.matmul %50, %52, %cst_38 {dimension_numbers = #tpu.dot_dimension_numbers<[1], [0], [0], [1], [0, 0, 1, 1], [], []>} : vector<34x64xbf16>, vector<64x192xbf16>, vector<34x192xf32> -> vector<34x192xf32>
    %c0_39 = arith.constant 0 : index
    %c0_40 = arith.constant 0 : index
    %c0_41 = arith.constant 0 : index
    %54 = vector.load %arg8[%c0_39, %c0_40, %c0_41] : memref<2x1x192xf32, #tpu.memory_space<vmem>>, vector<1x1x192xf32>
    %55 = vector.shape_cast %54 : vector<1x1x192xf32> to vector<1x192xf32>
    %56 = vector.broadcast %55 : vector<1x192xf32> to vector<34x192xf32>
    %57 = arith.addf %53, %56 : vector<34x192xf32>
    %58 = vector.extract_strided_slice %57 {offsets = [0, 0], sizes = [34, 32], strides = [1, 1]} : vector<34x192xf32> to vector<34x32xf32>
    %cst_42 = arith.constant 0.176776692 : f32
    %59 = vector.broadcast %cst_42 : f32 to vector<34x32xf32>
    %60 = arith.mulf %58, %59 : vector<34x32xf32>
    %61 = vector.extract_strided_slice %57 {offsets = [0, 64], sizes = [34, 32], strides = [1, 1]} : vector<34x192xf32> to vector<34x32xf32>
    %62 = vector.extract_strided_slice %57 {offsets = [0, 128], sizes = [34, 32], strides = [1, 1]} : vector<34x192xf32> to vector<34x32xf32>
    %63 = tpu.transpose %61, [1, 0] : vector<34x32xf32> -> vector<32x34xf32>
    %cst_43 = arith.constant dense<0.000000e+00> : vector<34x34xf32>
    %64 = tpu.matmul %60, %63, %cst_43 {dimension_numbers = #tpu.dot_dimension_numbers<[1], [0], [0], [1], [0, 0, 1, 1], [], []>} : vector<34x32xf32>, vector<32x34xf32>, vector<34x34xf32> -> vector<34x34xf32>
    %65 = arith.addf %64, %15 : vector<34x34xf32>
    %cst_44 = arith.constant dense<0xFF800000> : vector<34xf32>
    %66 = vector.multi_reduction <maximumf>, %65, %cst_44 [1] : vector<34x34xf32> to vector<34xf32>
    %67 = vector.shape_cast %66 : vector<34xf32> to vector<34x1xf32>
    %68 = vector.broadcast %67 : vector<34x1xf32> to vector<34x34xf32>
    %69 = arith.subf %65, %68 : vector<34x34xf32>
    %70 = math.exp %69 : vector<34x34xf32>
    %cst_45 = arith.constant dense<0.000000e+00> : vector<34xf32>
    %71 = vector.multi_reduction <add>, %70, %cst_45 [1] : vector<34x34xf32> to vector<34xf32>
    %72 = vector.shape_cast %71 : vector<34xf32> to vector<34x1xf32>
    %73 = tpu.reciprocal %72 {approx = true} : vector<34x1xf32> -> vector<34x1xf32>
    %74 = vector.broadcast %73 : vector<34x1xf32> to vector<34x34xf32>
    %75 = arith.mulf %70, %74 : vector<34x34xf32>
    %76 = arith.truncf %75 : vector<34x34xf32> to vector<34x34xbf16>
    %77 = arith.truncf %62 : vector<34x32xf32> to vector<34x32xbf16>
    %cst_46 = arith.constant dense<0.000000e+00> : vector<34x32xf32>
    %78 = tpu.matmul %76, %77, %cst_46 {dimension_numbers = #tpu.dot_dimension_numbers<[1], [0], [0], [1], [0, 0, 1, 1], [], []>} : vector<34x34xbf16>, vector<34x32xbf16>, vector<34x32xf32> -> vector<34x32xf32>
    %79 = vector.extract_strided_slice %57 {offsets = [0, 32], sizes = [34, 32], strides = [1, 1]} : vector<34x192xf32> to vector<34x32xf32>
    %cst_47 = arith.constant 0.176776692 : f32
    %80 = vector.broadcast %cst_47 : f32 to vector<34x32xf32>
    %81 = arith.mulf %79, %80 : vector<34x32xf32>
    %82 = vector.extract_strided_slice %57 {offsets = [0, 96], sizes = [34, 32], strides = [1, 1]} : vector<34x192xf32> to vector<34x32xf32>
    %83 = vector.extract_strided_slice %57 {offsets = [0, 160], sizes = [34, 32], strides = [1, 1]} : vector<34x192xf32> to vector<34x32xf32>
    %84 = tpu.transpose %82, [1, 0] : vector<34x32xf32> -> vector<32x34xf32>
    %cst_48 = arith.constant dense<0.000000e+00> : vector<34x34xf32>
    %85 = tpu.matmul %81, %84, %cst_48 {dimension_numbers = #tpu.dot_dimension_numbers<[1], [0], [0], [1], [0, 0, 1, 1], [], []>} : vector<34x32xf32>, vector<32x34xf32>, vector<34x34xf32> -> vector<34x34xf32>
    %86 = arith.addf %85, %15 : vector<34x34xf32>
    %cst_49 = arith.constant dense<0xFF800000> : vector<34xf32>
    %87 = vector.multi_reduction <maximumf>, %86, %cst_49 [1] : vector<34x34xf32> to vector<34xf32>
    %88 = vector.shape_cast %87 : vector<34xf32> to vector<34x1xf32>
    %89 = vector.broadcast %88 : vector<34x1xf32> to vector<34x34xf32>
    %90 = arith.subf %86, %89 : vector<34x34xf32>
    %91 = math.exp %90 : vector<34x34xf32>
    %cst_50 = arith.constant dense<0.000000e+00> : vector<34xf32>
    %92 = vector.multi_reduction <add>, %91, %cst_50 [1] : vector<34x34xf32> to vector<34xf32>
    %93 = vector.shape_cast %92 : vector<34xf32> to vector<34x1xf32>
    %94 = tpu.reciprocal %93 {approx = true} : vector<34x1xf32> -> vector<34x1xf32>
    %95 = vector.broadcast %94 : vector<34x1xf32> to vector<34x34xf32>
    %96 = arith.mulf %91, %95 : vector<34x34xf32>
    %97 = arith.truncf %96 : vector<34x34xf32> to vector<34x34xbf16>
    %98 = arith.truncf %83 : vector<34x32xf32> to vector<34x32xbf16>
    %cst_51 = arith.constant dense<0.000000e+00> : vector<34x32xf32>
    %99 = tpu.matmul %97, %98, %cst_51 {dimension_numbers = #tpu.dot_dimension_numbers<[1], [0], [0], [1], [0, 0, 1, 1], [], []>} : vector<34x34xbf16>, vector<34x32xbf16>, vector<34x32xf32> -> vector<34x32xf32>
    %100 = tpu.concatenate %78, %99 in 1 : vector<34x32xf32>, vector<34x32xf32> -> vector<34x64xf32>
    %101 = arith.truncf %100 : vector<34x64xf32> to vector<34x64xbf16>
    %c0_52 = arith.constant 0 : index
    %c0_53 = arith.constant 0 : index
    %c0_54 = arith.constant 0 : index
    %102 = vector.load %arg9[%c0_52, %c0_53, %c0_54] : memref<2x64x64xbf16, #tpu.memory_space<vmem>>, vector<1x64x64xbf16>
    %103 = vector.shape_cast %102 : vector<1x64x64xbf16> to vector<64x64xbf16>
    %cst_55 = arith.constant dense<0.000000e+00> : vector<34x64xf32>
    %104 = tpu.matmul %101, %103, %cst_55 {dimension_numbers = #tpu.dot_dimension_numbers<[1], [0], [0], [1], [0, 0, 1, 1], [], []>} : vector<34x64xbf16>, vector<64x64xbf16>, vector<34x64xf32> -> vector<34x64xf32>
    %105 = arith.addf %14, %104 : vector<34x64xf32>
    %106 = vector.broadcast %25 : vector<1x64xf32> to vector<34x64xf32>
    %107 = arith.addf %105, %106 : vector<34x64xf32>
    %cst_56 = arith.constant dense<0.000000e+00> : vector<34xf32>
    %108 = vector.multi_reduction <add>, %107, %cst_56 [1] : vector<34x64xf32> to vector<34xf32>
    %109 = vector.shape_cast %108 : vector<34xf32> to vector<34x1xf32>
    %cst_57 = arith.constant 6.400000e+01 : f32
    %110 = vector.broadcast %cst_57 : f32 to vector<34x1xf32>
    %111 = arith.divf %109, %110 : vector<34x1xf32>
    %112 = vector.broadcast %111 : vector<34x1xf32> to vector<34x64xf32>
    %113 = arith.subf %107, %112 : vector<34x64xf32>
    %114 = arith.mulf %113, %113 : vector<34x64xf32>
    %cst_58 = arith.constant dense<0.000000e+00> : vector<34xf32>
    %115 = vector.multi_reduction <add>, %114, %cst_58 [1] : vector<34x64xf32> to vector<34xf32>
    %116 = vector.shape_cast %115 : vector<34xf32> to vector<34x1xf32>
    %cst_59 = arith.constant 6.400000e+01 : f32
    %117 = vector.broadcast %cst_59 : f32 to vector<34x1xf32>
    %118 = arith.divf %116, %117 : vector<34x1xf32>
    %119 = vector.broadcast %111 : vector<34x1xf32> to vector<34x64xf32>
    %120 = arith.subf %107, %119 : vector<34x64xf32>
    %cst_60 = arith.constant 9.99999997E-7 : f32
    %121 = vector.broadcast %cst_60 : f32 to vector<34x1xf32>
    %122 = arith.addf %118, %121 : vector<34x1xf32>
    %123 = math.rsqrt %122 : vector<34x1xf32>
    %124 = vector.broadcast %123 : vector<34x1xf32> to vector<34x64xf32>
    %125 = arith.mulf %120, %124 : vector<34x64xf32>
    %126 = vector.broadcast %21 : vector<1x64xf32> to vector<34x64xf32>
    %127 = arith.mulf %125, %126 : vector<34x64xf32>
    %128 = vector.broadcast %23 : vector<1x64xf32> to vector<34x64xf32>
    %129 = arith.addf %127, %128 : vector<34x64xf32>
    %130 = arith.truncf %129 : vector<34x64xf32> to vector<34x64xbf16>
    %c0_61 = arith.constant 0 : index
    %c0_62 = arith.constant 0 : index
    %c0_63 = arith.constant 0 : index
    %131 = vector.load %arg10[%c0_61, %c0_62, %c0_63] : memref<2x64x256xbf16, #tpu.memory_space<vmem>>, vector<1x64x256xbf16>
    %132 = vector.shape_cast %131 : vector<1x64x256xbf16> to vector<64x256xbf16>
    %cst_64 = arith.constant dense<0.000000e+00> : vector<34x256xf32>
    %133 = tpu.matmul %130, %132, %cst_64 {dimension_numbers = #tpu.dot_dimension_numbers<[1], [0], [0], [1], [0, 0, 1, 1], [], []>} : vector<34x64xbf16>, vector<64x256xbf16>, vector<34x256xf32> -> vector<34x256xf32>
    %c0_65 = arith.constant 0 : index
    %c0_66 = arith.constant 0 : index
    %c0_67 = arith.constant 0 : index
    %134 = vector.load %arg11[%c0_65, %c0_66, %c0_67] : memref<2x1x256xf32, #tpu.memory_space<vmem>>, vector<1x1x256xf32>
    %135 = vector.shape_cast %134 : vector<1x1x256xf32> to vector<1x256xf32>
    %136 = vector.broadcast %135 : vector<1x256xf32> to vector<34x256xf32>
    %137 = arith.addf %133, %136 : vector<34x256xf32>
    %cst_68 = arith.constant 5.000000e-01 : f32
    %138 = vector.broadcast %cst_68 : f32 to vector<34x256xf32>
    %139 = arith.mulf %138, %137 : vector<34x256xf32>
    %cst_69 = arith.constant 0.707106769 : f32
    %140 = vector.broadcast %cst_69 : f32 to vector<34x256xf32>
    %141 = arith.mulf %137, %140 : vector<34x256xf32>
    %142 = math.absf %141 : vector<34x256xf32>
    %cst_70 = arith.constant 0.327591091 : f32
    %143 = vector.broadcast %cst_70 : f32 to vector<34x256xf32>
    %144 = arith.mulf %143, %142 : vector<34x256xf32>
    %cst_71 = arith.constant 1.000000e+00 : f32
    %145 = vector.broadcast %cst_71 : f32 to vector<34x256xf32>
    %146 = arith.addf %145, %144 : vector<34x256xf32>
    %cst_72 = arith.constant 1.000000e+00 : f32
    %147 = vector.broadcast %cst_72 : f32 to vector<34x256xf32>
    %148 = arith.divf %147, %146 : vector<34x256xf32>
    %cst_73 = arith.constant 1.06140542 : f32
    %149 = vector.broadcast %cst_73 : f32 to vector<34x256xf32>
    %150 = arith.mulf %149, %148 : vector<34x256xf32>
    %cst_74 = arith.constant -1.45315206 : f32
    %151 = vector.broadcast %cst_74 : f32 to vector<34x256xf32>
    %152 = arith.addf %150, %151 : vector<34x256xf32>
    %153 = arith.mulf %152, %148 : vector<34x256xf32>
    %cst_75 = arith.constant 1.42141378 : f32
    %154 = vector.broadcast %cst_75 : f32 to vector<34x256xf32>
    %155 = arith.addf %153, %154 : vector<34x256xf32>
    %156 = arith.mulf %155, %148 : vector<34x256xf32>
    %cst_76 = arith.constant -0.284496725 : f32
    %157 = vector.broadcast %cst_76 : f32 to vector<34x256xf32>
    %158 = arith.addf %156, %157 : vector<34x256xf32>
    %159 = arith.mulf %158, %148 : vector<34x256xf32>
    %cst_77 = arith.constant 0.254829586 : f32
    %160 = vector.broadcast %cst_77 : f32 to vector<34x256xf32>
    %161 = arith.addf %159, %160 : vector<34x256xf32>
    %162 = arith.mulf %161, %148 : vector<34x256xf32>
    %cst_78 = arith.constant 0.000000e+00 : f32
    %163 = vector.broadcast %cst_78 : f32 to vector<34x256xf32>
    %164 = arith.subf %163, %142 : vector<34x256xf32>
    %165 = arith.mulf %164, %142 : vector<34x256xf32>
    %166 = math.exp %165 : vector<34x256xf32>
    %167 = arith.mulf %162, %166 : vector<34x256xf32>
    %cst_79 = arith.constant 1.000000e+00 : f32
    %168 = vector.broadcast %cst_79 : f32 to vector<34x256xf32>
    %169 = arith.subf %168, %167 : vector<34x256xf32>
    %cst_80 = arith.constant 0.000000e+00 : f32
    %170 = vector.broadcast %cst_80 : f32 to vector<34x256xf32>
    %171 = arith.cmpf oge, %141, %170 : vector<34x256xf32>
    %cst_81 = arith.constant 0.000000e+00 : f32
    %172 = vector.broadcast %cst_81 : f32 to vector<34x256xf32>
    %173 = arith.subf %172, %169 : vector<34x256xf32>
    %174 = arith.select %171, %169, %173 : vector<34x256xi1>, vector<34x256xf32>
    %cst_82 = arith.constant 1.000000e+00 : f32
    %175 = vector.broadcast %cst_82 : f32 to vector<34x256xf32>
    %176 = arith.addf %175, %174 : vector<34x256xf32>
    %177 = arith.mulf %139, %176 : vector<34x256xf32>
    %178 = arith.truncf %177 : vector<34x256xf32> to vector<34x256xbf16>
    %c0_83 = arith.constant 0 : index
    %c0_84 = arith.constant 0 : index
    %c0_85 = arith.constant 0 : index
    %179 = vector.load %arg12[%c0_83, %c0_84, %c0_85] : memref<2x256x64xbf16, #tpu.memory_space<vmem>>, vector<1x256x64xbf16>
    %180 = vector.shape_cast %179 : vector<1x256x64xbf16> to vector<256x64xbf16>
    %cst_86 = arith.constant dense<0.000000e+00> : vector<34x64xf32>
    %181 = tpu.matmul %178, %180, %cst_86 {dimension_numbers = #tpu.dot_dimension_numbers<[1], [0], [0], [1], [0, 0, 1, 1], [], []>} : vector<34x256xbf16>, vector<256x64xbf16>, vector<34x64xf32> -> vector<34x64xf32>
    %182 = arith.addf %107, %181 : vector<34x64xf32>
    %183 = vector.broadcast %27 : vector<1x64xf32> to vector<34x64xf32>
    %184 = arith.addf %182, %183 : vector<34x64xf32>
    %c1_87 = arith.constant 1 : index
    %c0_88 = arith.constant 0 : index
    %c0_89 = arith.constant 0 : index
    %185 = vector.load %arg6[%c1_87, %c0_88, %c0_89] : memref<2x6x64xf32, #tpu.memory_space<vmem>>, vector<1x1x64xf32>
    %186 = vector.shape_cast %185 : vector<1x1x64xf32> to vector<1x64xf32>
    %c1_90 = arith.constant 1 : index
    %c1_91 = arith.constant 1 : index
    %c0_92 = arith.constant 0 : index
    %187 = vector.load %arg6[%c1_90, %c1_91, %c0_92] : memref<2x6x64xf32, #tpu.memory_space<vmem>>, vector<1x1x64xf32>
    %188 = vector.shape_cast %187 : vector<1x1x64xf32> to vector<1x64xf32>
    %c1_93 = arith.constant 1 : index
    %c2_94 = arith.constant 2 : index
    %c0_95 = arith.constant 0 : index
    %189 = vector.load %arg6[%c1_93, %c2_94, %c0_95] : memref<2x6x64xf32, #tpu.memory_space<vmem>>, vector<1x1x64xf32>
    %190 = vector.shape_cast %189 : vector<1x1x64xf32> to vector<1x64xf32>
    %c1_96 = arith.constant 1 : index
    %c3_97 = arith.constant 3 : index
    %c0_98 = arith.constant 0 : index
    %191 = vector.load %arg6[%c1_96, %c3_97, %c0_98] : memref<2x6x64xf32, #tpu.memory_space<vmem>>, vector<1x1x64xf32>
    %192 = vector.shape_cast %191 : vector<1x1x64xf32> to vector<1x64xf32>
    %c1_99 = arith.constant 1 : index
    %c4_100 = arith.constant 4 : index
    %c0_101 = arith.constant 0 : index
    %193 = vector.load %arg6[%c1_99, %c4_100, %c0_101] : memref<2x6x64xf32, #tpu.memory_space<vmem>>, vector<1x1x64xf32>
    %194 = vector.shape_cast %193 : vector<1x1x64xf32> to vector<1x64xf32>
    %c1_102 = arith.constant 1 : index
    %c5_103 = arith.constant 5 : index
    %c0_104 = arith.constant 0 : index
    %195 = vector.load %arg6[%c1_102, %c5_103, %c0_104] : memref<2x6x64xf32, #tpu.memory_space<vmem>>, vector<1x1x64xf32>
    %196 = vector.shape_cast %195 : vector<1x1x64xf32> to vector<1x64xf32>
    %cst_105 = arith.constant dense<0.000000e+00> : vector<34xf32>
    %197 = vector.multi_reduction <add>, %184, %cst_105 [1] : vector<34x64xf32> to vector<34xf32>
    %198 = vector.shape_cast %197 : vector<34xf32> to vector<34x1xf32>
    %cst_106 = arith.constant 6.400000e+01 : f32
    %199 = vector.broadcast %cst_106 : f32 to vector<34x1xf32>
    %200 = arith.divf %198, %199 : vector<34x1xf32>
    %201 = vector.broadcast %200 : vector<34x1xf32> to vector<34x64xf32>
    %202 = arith.subf %184, %201 : vector<34x64xf32>
    %203 = arith.mulf %202, %202 : vector<34x64xf32>
    %cst_107 = arith.constant dense<0.000000e+00> : vector<34xf32>
    %204 = vector.multi_reduction <add>, %203, %cst_107 [1] : vector<34x64xf32> to vector<34xf32>
    %205 = vector.shape_cast %204 : vector<34xf32> to vector<34x1xf32>
    %cst_108 = arith.constant 6.400000e+01 : f32
    %206 = vector.broadcast %cst_108 : f32 to vector<34x1xf32>
    %207 = arith.divf %205, %206 : vector<34x1xf32>
    %208 = vector.broadcast %200 : vector<34x1xf32> to vector<34x64xf32>
    %209 = arith.subf %184, %208 : vector<34x64xf32>
    %cst_109 = arith.constant 9.99999997E-7 : f32
    %210 = vector.broadcast %cst_109 : f32 to vector<34x1xf32>
    %211 = arith.addf %207, %210 : vector<34x1xf32>
    %212 = math.rsqrt %211 : vector<34x1xf32>
    %213 = vector.broadcast %212 : vector<34x1xf32> to vector<34x64xf32>
    %214 = arith.mulf %209, %213 : vector<34x64xf32>
    %215 = vector.broadcast %186 : vector<1x64xf32> to vector<34x64xf32>
    %216 = arith.mulf %214, %215 : vector<34x64xf32>
    %217 = vector.broadcast %188 : vector<1x64xf32> to vector<34x64xf32>
    %218 = arith.addf %216, %217 : vector<34x64xf32>
    %219 = arith.truncf %218 : vector<34x64xf32> to vector<34x64xbf16>
    %c1_110 = arith.constant 1 : index
    %c0_111 = arith.constant 0 : index
    %c0_112 = arith.constant 0 : index
    %220 = vector.load %arg7[%c1_110, %c0_111, %c0_112] : memref<2x64x192xbf16, #tpu.memory_space<vmem>>, vector<1x64x192xbf16>
    %221 = vector.shape_cast %220 : vector<1x64x192xbf16> to vector<64x192xbf16>
    %cst_113 = arith.constant dense<0.000000e+00> : vector<34x192xf32>
    %222 = tpu.matmul %219, %221, %cst_113 {dimension_numbers = #tpu.dot_dimension_numbers<[1], [0], [0], [1], [0, 0, 1, 1], [], []>} : vector<34x64xbf16>, vector<64x192xbf16>, vector<34x192xf32> -> vector<34x192xf32>
    %c1_114 = arith.constant 1 : index
    %c0_115 = arith.constant 0 : index
    %c0_116 = arith.constant 0 : index
    %223 = vector.load %arg8[%c1_114, %c0_115, %c0_116] : memref<2x1x192xf32, #tpu.memory_space<vmem>>, vector<1x1x192xf32>
    %224 = vector.shape_cast %223 : vector<1x1x192xf32> to vector<1x192xf32>
    %225 = vector.broadcast %224 : vector<1x192xf32> to vector<34x192xf32>
    %226 = arith.addf %222, %225 : vector<34x192xf32>
    %227 = vector.extract_strided_slice %226 {offsets = [0, 0], sizes = [34, 32], strides = [1, 1]} : vector<34x192xf32> to vector<34x32xf32>
    %cst_117 = arith.constant 0.176776692 : f32
    %228 = vector.broadcast %cst_117 : f32 to vector<34x32xf32>
    %229 = arith.mulf %227, %228 : vector<34x32xf32>
    %230 = vector.extract_strided_slice %226 {offsets = [0, 64], sizes = [34, 32], strides = [1, 1]} : vector<34x192xf32> to vector<34x32xf32>
    %231 = vector.extract_strided_slice %226 {offsets = [0, 128], sizes = [34, 32], strides = [1, 1]} : vector<34x192xf32> to vector<34x32xf32>
    %232 = tpu.transpose %230, [1, 0] : vector<34x32xf32> -> vector<32x34xf32>
    %cst_118 = arith.constant dense<0.000000e+00> : vector<34x34xf32>
    %233 = tpu.matmul %229, %232, %cst_118 {dimension_numbers = #tpu.dot_dimension_numbers<[1], [0], [0], [1], [0, 0, 1, 1], [], []>} : vector<34x32xf32>, vector<32x34xf32>, vector<34x34xf32> -> vector<34x34xf32>
    %234 = arith.addf %233, %15 : vector<34x34xf32>
    %cst_119 = arith.constant dense<0xFF800000> : vector<34xf32>
    %235 = vector.multi_reduction <maximumf>, %234, %cst_119 [1] : vector<34x34xf32> to vector<34xf32>
    %236 = vector.shape_cast %235 : vector<34xf32> to vector<34x1xf32>
    %237 = vector.broadcast %236 : vector<34x1xf32> to vector<34x34xf32>
    %238 = arith.subf %234, %237 : vector<34x34xf32>
    %239 = math.exp %238 : vector<34x34xf32>
    %cst_120 = arith.constant dense<0.000000e+00> : vector<34xf32>
    %240 = vector.multi_reduction <add>, %239, %cst_120 [1] : vector<34x34xf32> to vector<34xf32>
    %241 = vector.shape_cast %240 : vector<34xf32> to vector<34x1xf32>
    %242 = tpu.reciprocal %241 {approx = true} : vector<34x1xf32> -> vector<34x1xf32>
    %243 = vector.broadcast %242 : vector<34x1xf32> to vector<34x34xf32>
    %244 = arith.mulf %239, %243 : vector<34x34xf32>
    %245 = arith.truncf %244 : vector<34x34xf32> to vector<34x34xbf16>
    %246 = arith.truncf %231 : vector<34x32xf32> to vector<34x32xbf16>
    %cst_121 = arith.constant dense<0.000000e+00> : vector<34x32xf32>
    %247 = tpu.matmul %245, %246, %cst_121 {dimension_numbers = #tpu.dot_dimension_numbers<[1], [0], [0], [1], [0, 0, 1, 1], [], []>} : vector<34x34xbf16>, vector<34x32xbf16>, vector<34x32xf32> -> vector<34x32xf32>
    %248 = vector.extract_strided_slice %226 {offsets = [0, 32], sizes = [34, 32], strides = [1, 1]} : vector<34x192xf32> to vector<34x32xf32>
    %cst_122 = arith.constant 0.176776692 : f32
    %249 = vector.broadcast %cst_122 : f32 to vector<34x32xf32>
    %250 = arith.mulf %248, %249 : vector<34x32xf32>
    %251 = vector.extract_strided_slice %226 {offsets = [0, 96], sizes = [34, 32], strides = [1, 1]} : vector<34x192xf32> to vector<34x32xf32>
    %252 = vector.extract_strided_slice %226 {offsets = [0, 160], sizes = [34, 32], strides = [1, 1]} : vector<34x192xf32> to vector<34x32xf32>
    %253 = tpu.transpose %251, [1, 0] : vector<34x32xf32> -> vector<32x34xf32>
    %cst_123 = arith.constant dense<0.000000e+00> : vector<34x34xf32>
    %254 = tpu.matmul %250, %253, %cst_123 {dimension_numbers = #tpu.dot_dimension_numbers<[1], [0], [0], [1], [0, 0, 1, 1], [], []>} : vector<34x32xf32>, vector<32x34xf32>, vector<34x34xf32> -> vector<34x34xf32>
    %255 = arith.addf %254, %15 : vector<34x34xf32>
    %cst_124 = arith.constant dense<0xFF800000> : vector<34xf32>
    %256 = vector.multi_reduction <maximumf>, %255, %cst_124 [1] : vector<34x34xf32> to vector<34xf32>
    %257 = vector.shape_cast %256 : vector<34xf32> to vector<34x1xf32>
    %258 = vector.broadcast %257 : vector<34x1xf32> to vector<34x34xf32>
    %259 = arith.subf %255, %258 : vector<34x34xf32>
    %260 = math.exp %259 : vector<34x34xf32>
    %cst_125 = arith.constant dense<0.000000e+00> : vector<34xf32>
    %261 = vector.multi_reduction <add>, %260, %cst_125 [1] : vector<34x34xf32> to vector<34xf32>
    %262 = vector.shape_cast %261 : vector<34xf32> to vector<34x1xf32>
    %263 = tpu.reciprocal %262 {approx = true} : vector<34x1xf32> -> vector<34x1xf32>
    %264 = vector.broadcast %263 : vector<34x1xf32> to vector<34x34xf32>
    %265 = arith.mulf %260, %264 : vector<34x34xf32>
    %266 = arith.truncf %265 : vector<34x34xf32> to vector<34x34xbf16>
    %267 = arith.truncf %252 : vector<34x32xf32> to vector<34x32xbf16>
    %cst_126 = arith.constant dense<0.000000e+00> : vector<34x32xf32>
    %268 = tpu.matmul %266, %267, %cst_126 {dimension_numbers = #tpu.dot_dimension_numbers<[1], [0], [0], [1], [0, 0, 1, 1], [], []>} : vector<34x34xbf16>, vector<34x32xbf16>, vector<34x32xf32> -> vector<34x32xf32>
    %269 = tpu.concatenate %247, %268 in 1 : vector<34x32xf32>, vector<34x32xf32> -> vector<34x64xf32>
    %270 = arith.truncf %269 : vector<34x64xf32> to vector<34x64xbf16>
    %c1_127 = arith.constant 1 : index
    %c0_128 = arith.constant 0 : index
    %c0_129 = arith.constant 0 : index
    %271 = vector.load %arg9[%c1_127, %c0_128, %c0_129] : memref<2x64x64xbf16, #tpu.memory_space<vmem>>, vector<1x64x64xbf16>
    %272 = vector.shape_cast %271 : vector<1x64x64xbf16> to vector<64x64xbf16>
    %cst_130 = arith.constant dense<0.000000e+00> : vector<34x64xf32>
    %273 = tpu.matmul %270, %272, %cst_130 {dimension_numbers = #tpu.dot_dimension_numbers<[1], [0], [0], [1], [0, 0, 1, 1], [], []>} : vector<34x64xbf16>, vector<64x64xbf16>, vector<34x64xf32> -> vector<34x64xf32>
    %274 = arith.addf %184, %273 : vector<34x64xf32>
    %275 = vector.broadcast %194 : vector<1x64xf32> to vector<34x64xf32>
    %276 = arith.addf %274, %275 : vector<34x64xf32>
    %cst_131 = arith.constant dense<0.000000e+00> : vector<34xf32>
    %277 = vector.multi_reduction <add>, %276, %cst_131 [1] : vector<34x64xf32> to vector<34xf32>
    %278 = vector.shape_cast %277 : vector<34xf32> to vector<34x1xf32>
    %cst_132 = arith.constant 6.400000e+01 : f32
    %279 = vector.broadcast %cst_132 : f32 to vector<34x1xf32>
    %280 = arith.divf %278, %279 : vector<34x1xf32>
    %281 = vector.broadcast %280 : vector<34x1xf32> to vector<34x64xf32>
    %282 = arith.subf %276, %281 : vector<34x64xf32>
    %283 = arith.mulf %282, %282 : vector<34x64xf32>
    %cst_133 = arith.constant dense<0.000000e+00> : vector<34xf32>
    %284 = vector.multi_reduction <add>, %283, %cst_133 [1] : vector<34x64xf32> to vector<34xf32>
    %285 = vector.shape_cast %284 : vector<34xf32> to vector<34x1xf32>
    %cst_134 = arith.constant 6.400000e+01 : f32
    %286 = vector.broadcast %cst_134 : f32 to vector<34x1xf32>
    %287 = arith.divf %285, %286 : vector<34x1xf32>
    %288 = vector.broadcast %280 : vector<34x1xf32> to vector<34x64xf32>
    %289 = arith.subf %276, %288 : vector<34x64xf32>
    %cst_135 = arith.constant 9.99999997E-7 : f32
    %290 = vector.broadcast %cst_135 : f32 to vector<34x1xf32>
    %291 = arith.addf %287, %290 : vector<34x1xf32>
    %292 = math.rsqrt %291 : vector<34x1xf32>
    %293 = vector.broadcast %292 : vector<34x1xf32> to vector<34x64xf32>
    %294 = arith.mulf %289, %293 : vector<34x64xf32>
    %295 = vector.broadcast %190 : vector<1x64xf32> to vector<34x64xf32>
    %296 = arith.mulf %294, %295 : vector<34x64xf32>
    %297 = vector.broadcast %192 : vector<1x64xf32> to vector<34x64xf32>
    %298 = arith.addf %296, %297 : vector<34x64xf32>
    %299 = arith.truncf %298 : vector<34x64xf32> to vector<34x64xbf16>
    %c1_136 = arith.constant 1 : index
    %c0_137 = arith.constant 0 : index
    %c0_138 = arith.constant 0 : index
    %300 = vector.load %arg10[%c1_136, %c0_137, %c0_138] : memref<2x64x256xbf16, #tpu.memory_space<vmem>>, vector<1x64x256xbf16>
    %301 = vector.shape_cast %300 : vector<1x64x256xbf16> to vector<64x256xbf16>
    %cst_139 = arith.constant dense<0.000000e+00> : vector<34x256xf32>
    %302 = tpu.matmul %299, %301, %cst_139 {dimension_numbers = #tpu.dot_dimension_numbers<[1], [0], [0], [1], [0, 0, 1, 1], [], []>} : vector<34x64xbf16>, vector<64x256xbf16>, vector<34x256xf32> -> vector<34x256xf32>
    %c1_140 = arith.constant 1 : index
    %c0_141 = arith.constant 0 : index
    %c0_142 = arith.constant 0 : index
    %303 = vector.load %arg11[%c1_140, %c0_141, %c0_142] : memref<2x1x256xf32, #tpu.memory_space<vmem>>, vector<1x1x256xf32>
    %304 = vector.shape_cast %303 : vector<1x1x256xf32> to vector<1x256xf32>
    %305 = vector.broadcast %304 : vector<1x256xf32> to vector<34x256xf32>
    %306 = arith.addf %302, %305 : vector<34x256xf32>
    %cst_143 = arith.constant 5.000000e-01 : f32
    %307 = vector.broadcast %cst_143 : f32 to vector<34x256xf32>
    %308 = arith.mulf %307, %306 : vector<34x256xf32>
    %cst_144 = arith.constant 0.707106769 : f32
    %309 = vector.broadcast %cst_144 : f32 to vector<34x256xf32>
    %310 = arith.mulf %306, %309 : vector<34x256xf32>
    %311 = math.absf %310 : vector<34x256xf32>
    %cst_145 = arith.constant 0.327591091 : f32
    %312 = vector.broadcast %cst_145 : f32 to vector<34x256xf32>
    %313 = arith.mulf %312, %311 : vector<34x256xf32>
    %cst_146 = arith.constant 1.000000e+00 : f32
    %314 = vector.broadcast %cst_146 : f32 to vector<34x256xf32>
    %315 = arith.addf %314, %313 : vector<34x256xf32>
    %cst_147 = arith.constant 1.000000e+00 : f32
    %316 = vector.broadcast %cst_147 : f32 to vector<34x256xf32>
    %317 = arith.divf %316, %315 : vector<34x256xf32>
    %cst_148 = arith.constant 1.06140542 : f32
    %318 = vector.broadcast %cst_148 : f32 to vector<34x256xf32>
    %319 = arith.mulf %318, %317 : vector<34x256xf32>
    %cst_149 = arith.constant -1.45315206 : f32
    %320 = vector.broadcast %cst_149 : f32 to vector<34x256xf32>
    %321 = arith.addf %319, %320 : vector<34x256xf32>
    %322 = arith.mulf %321, %317 : vector<34x256xf32>
    %cst_150 = arith.constant 1.42141378 : f32
    %323 = vector.broadcast %cst_150 : f32 to vector<34x256xf32>
    %324 = arith.addf %322, %323 : vector<34x256xf32>
    %325 = arith.mulf %324, %317 : vector<34x256xf32>
    %cst_151 = arith.constant -0.284496725 : f32
    %326 = vector.broadcast %cst_151 : f32 to vector<34x256xf32>
    %327 = arith.addf %325, %326 : vector<34x256xf32>
    %328 = arith.mulf %327, %317 : vector<34x256xf32>
    %cst_152 = arith.constant 0.254829586 : f32
    %329 = vector.broadcast %cst_152 : f32 to vector<34x256xf32>
    %330 = arith.addf %328, %329 : vector<34x256xf32>
    %331 = arith.mulf %330, %317 : vector<34x256xf32>
    %cst_153 = arith.constant 0.000000e+00 : f32
    %332 = vector.broadcast %cst_153 : f32 to vector<34x256xf32>
    %333 = arith.subf %332, %311 : vector<34x256xf32>
    %334 = arith.mulf %333, %311 : vector<34x256xf32>
    %335 = math.exp %334 : vector<34x256xf32>
    %336 = arith.mulf %331, %335 : vector<34x256xf32>
    %cst_154 = arith.constant 1.000000e+00 : f32
    %337 = vector.broadcast %cst_154 : f32 to vector<34x256xf32>
    %338 = arith.subf %337, %336 : vector<34x256xf32>
    %cst_155 = arith.constant 0.000000e+00 : f32
    %339 = vector.broadcast %cst_155 : f32 to vector<34x256xf32>
    %340 = arith.cmpf oge, %310, %339 : vector<34x256xf32>
    %cst_156 = arith.constant 0.000000e+00 : f32
    %341 = vector.broadcast %cst_156 : f32 to vector<34x256xf32>
    %342 = arith.subf %341, %338 : vector<34x256xf32>
    %343 = arith.select %340, %338, %342 : vector<34x256xi1>, vector<34x256xf32>
    %cst_157 = arith.constant 1.000000e+00 : f32
    %344 = vector.broadcast %cst_157 : f32 to vector<34x256xf32>
    %345 = arith.addf %344, %343 : vector<34x256xf32>
    %346 = arith.mulf %308, %345 : vector<34x256xf32>
    %347 = arith.truncf %346 : vector<34x256xf32> to vector<34x256xbf16>
    %c1_158 = arith.constant 1 : index
    %c0_159 = arith.constant 0 : index
    %c0_160 = arith.constant 0 : index
    %348 = vector.load %arg12[%c1_158, %c0_159, %c0_160] : memref<2x256x64xbf16, #tpu.memory_space<vmem>>, vector<1x256x64xbf16>
    %349 = vector.shape_cast %348 : vector<1x256x64xbf16> to vector<256x64xbf16>
    %cst_161 = arith.constant dense<0.000000e+00> : vector<34x64xf32>
    %350 = tpu.matmul %347, %349, %cst_161 {dimension_numbers = #tpu.dot_dimension_numbers<[1], [0], [0], [1], [0, 0, 1, 1], [], []>} : vector<34x256xbf16>, vector<256x64xbf16>, vector<34x64xf32> -> vector<34x64xf32>
    %351 = arith.addf %276, %350 : vector<34x64xf32>
    %352 = vector.broadcast %196 : vector<1x64xf32> to vector<34x64xf32>
    %353 = arith.addf %351, %352 : vector<34x64xf32>
    %c0_162 = arith.constant 0 : index
    %c0_163 = arith.constant 0 : index
    %354 = vector.load %arg14[%c0_162, %c0_163] : memref<34x64xf32, #tpu.memory_space<vmem>>, vector<34x64xf32>
    tpu.vector_store %arg14[%c0_162, %c0_163], %353 {strides = array<i32>} : memref<34x64xf32, #tpu.memory_space<vmem>>, vector<34x64xf32>,
    %c1_164 = arith.constant 1 : index
    %c0_165 = arith.constant 0 : index
    %355 = vector.load %arg5[%c1_164, %c0_165] : memref<3x64xf32, #tpu.memory_space<vmem>>, vector<1x64xf32>
    %c2_166 = arith.constant 2 : index
    %c0_167 = arith.constant 0 : index
    %356 = vector.load %arg5[%c2_166, %c0_167] : memref<3x64xf32, #tpu.memory_space<vmem>>, vector<1x64xf32>
    %c0_168 = arith.constant 0 : index
    %c0_169 = arith.constant 0 : index
    %357 = vector.load %arg14[%c0_168, %c0_169] : memref<34x64xf32, #tpu.memory_space<vmem>>, vector<1x64xf32>
    %cst_170 = arith.constant dense<0.000000e+00> : vector<1xf32>
    %358 = vector.multi_reduction <add>, %357, %cst_170 [1] : vector<1x64xf32> to vector<1xf32>
    %359 = vector.shape_cast %358 : vector<1xf32> to vector<1x1xf32>
    %cst_171 = arith.constant 6.400000e+01 : f32
    %360 = vector.broadcast %cst_171 : f32 to vector<1x1xf32>
    %361 = arith.divf %359, %360 : vector<1x1xf32>
    %362 = vector.broadcast %361 : vector<1x1xf32> to vector<1x64xf32>
    %363 = arith.subf %357, %362 : vector<1x64xf32>
    %364 = arith.mulf %363, %363 : vector<1x64xf32>
    %cst_172 = arith.constant dense<0.000000e+00> : vector<1xf32>
    %365 = vector.multi_reduction <add>, %364, %cst_172 [1] : vector<1x64xf32> to vector<1xf32>
    %366 = vector.shape_cast %365 : vector<1xf32> to vector<1x1xf32>
    %cst_173 = arith.constant 6.400000e+01 : f32
    %367 = vector.broadcast %cst_173 : f32 to vector<1x1xf32>
    %368 = arith.divf %366, %367 : vector<1x1xf32>
    %369 = vector.broadcast %361 : vector<1x1xf32> to vector<1x64xf32>
    %370 = arith.subf %357, %369 : vector<1x64xf32>
    %cst_174 = arith.constant 9.99999997E-7 : f32
    %371 = vector.broadcast %cst_174 : f32 to vector<1x1xf32>
    %372 = arith.addf %368, %371 : vector<1x1xf32>
    %373 = math.rsqrt %372 : vector<1x1xf32>
    %374 = vector.broadcast %373 : vector<1x1xf32> to vector<1x64xf32>
    %375 = arith.mulf %370, %374 : vector<1x64xf32>
    %376 = arith.mulf %375, %355 : vector<1x64xf32>
    %377 = arith.addf %376, %356 : vector<1x64xf32>
    %c0_175 = arith.constant 0 : index
    %c0_176 = arith.constant 0 : index
    %378 = vector.load %arg13[%c0_175, %c0_176] : memref<2x64xf32, #tpu.memory_space<vmem>>, vector<1x64xf32>
    tpu.vector_store %arg13[%c0_175, %c0_176], %377 {strides = array<i32>} : memref<2x64xf32, #tpu.memory_space<vmem>>, vector<1x64xf32>,
    %c17_177 = arith.constant 17 : index
    %c0_178 = arith.constant 0 : index
    %379 = vector.load %arg14[%c17_177, %c0_178] : memref<34x64xf32, #tpu.memory_space<vmem>>, vector<1x64xf32>
    %cst_179 = arith.constant dense<0.000000e+00> : vector<1xf32>
    %380 = vector.multi_reduction <add>, %379, %cst_179 [1] : vector<1x64xf32> to vector<1xf32>
    %381 = vector.shape_cast %380 : vector<1xf32> to vector<1x1xf32>
    %cst_180 = arith.constant 6.400000e+01 : f32
    %382 = vector.broadcast %cst_180 : f32 to vector<1x1xf32>
    %383 = arith.divf %381, %382 : vector<1x1xf32>
    %384 = vector.broadcast %383 : vector<1x1xf32> to vector<1x64xf32>
    %385 = arith.subf %379, %384 : vector<1x64xf32>
    %386 = arith.mulf %385, %385 : vector<1x64xf32>
    %cst_181 = arith.constant dense<0.000000e+00> : vector<1xf32>
    %387 = vector.multi_reduction <add>, %386, %cst_181 [1] : vector<1x64xf32> to vector<1xf32>
    %388 = vector.shape_cast %387 : vector<1xf32> to vector<1x1xf32>
    %cst_182 = arith.constant 6.400000e+01 : f32
    %389 = vector.broadcast %cst_182 : f32 to vector<1x1xf32>
    %390 = arith.divf %388, %389 : vector<1x1xf32>
    %391 = vector.broadcast %383 : vector<1x1xf32> to vector<1x64xf32>
    %392 = arith.subf %379, %391 : vector<1x64xf32>
    %cst_183 = arith.constant 9.99999997E-7 : f32
    %393 = vector.broadcast %cst_183 : f32 to vector<1x1xf32>
    %394 = arith.addf %390, %393 : vector<1x1xf32>
    %395 = math.rsqrt %394 : vector<1x1xf32>
    %396 = vector.broadcast %395 : vector<1x1xf32> to vector<1x64xf32>
    %397 = arith.mulf %392, %396 : vector<1x64xf32>
    %398 = arith.mulf %397, %355 : vector<1x64xf32>
    %399 = arith.addf %398, %356 : vector<1x64xf32>
    %c1_184 = arith.constant 1 : index
    %c0_185 = arith.constant 0 : index
    %400 = vector.load %arg13[%c1_184, %c0_185] : memref<2x64xf32, #tpu.memory_space<vmem>>, vector<1x64xf32>
    tpu.vector_store %arg13[%c1_184, %c0_185], %399 {strides = array<i32>} : memref<2x64xf32, #tpu.memory_space<vmem>>, vector<1x64xf32>,
    return
  }
  func.func @transform_0(%arg0: i32) -> (i32, i32) {
    %c0_i32 = arith.constant 0 : i32
    %c0_i32_0 = arith.constant 0 : i32
    %c0_i32_1 = arith.constant 0 : i32
    return %c0_i32, %c0_i32_0 : i32, i32
  }
  func.func @transform_1(%arg0: i32) -> (i32, i32) {
    %c0_i32 = arith.constant 0 : i32
    %c0_i32_0 = arith.constant 0 : i32
    %c0_i32_1 = arith.constant 0 : i32
    return %c0_i32, %c0_i32_0 : i32, i32
  }
  func.func @transform_2(%arg0: i32) -> (i32, i32) {
    %c0_i32 = arith.constant 0 : i32
    %c0_i32_0 = arith.constant 0 : i32
    %c0_i32_1 = arith.constant 0 : i32
    return %c0_i32, %c0_i32_0 : i32, i32
  }
  func.func @transform_3(%arg0: i32) -> (i32, i32) {
    %c0_i32 = arith.constant 0 : i32
    %c0_i32_0 = arith.constant 0 : i32
    %c0_i32_1 = arith.constant 0 : i32
    return %c0_i32, %c0_i32_0 : i32, i32
  }
  func.func @transform_4(%arg0: i32) -> (i32, i32) {
    %c0_i32 = arith.constant 0 : i32
    %c0_i32_0 = arith.constant 0 : i32
    %c0_i32_1 = arith.constant 0 : i32
    return %c0_i32, %c0_i32_0 : i32, i32
  }
  func.func @transform_5(%arg0: i32) -> (i32, i32, i32) {
    %c0_i32 = arith.constant 0 : i32
    %c0_i32_0 = arith.constant 0 : i32
    %c0_i32_1 = arith.constant 0 : i32
    %c0_i32_2 = arith.constant 0 : i32
    return %c0_i32, %c0_i32_0, %c0_i32_1 : i32, i32, i32
  }
  func.func @transform_6(%arg0: i32) -> (i32, i32, i32) {
    %c0_i32 = arith.constant 0 : i32
    %c0_i32_0 = arith.constant 0 : i32
    %c0_i32_1 = arith.constant 0 : i32
    %c0_i32_2 = arith.constant 0 : i32
    return %c0_i32, %c0_i32_0, %c0_i32_1 : i32, i32, i32
  }
  func.func @transform_7(%arg0: i32) -> (i32, i32, i32) {
    %c0_i32 = arith.constant 0 : i32
    %c0_i32_0 = arith.constant 0 : i32
    %c0_i32_1 = arith.constant 0 : i32
    %c0_i32_2 = arith.constant 0 : i32
    return %c0_i32, %c0_i32_0, %c0_i32_1 : i32, i32, i32
  }
  func.func @transform_8(%arg0: i32) -> (i32, i32, i32) {
    %c0_i32 = arith.constant 0 : i32
    %c0_i32_0 = arith.constant 0 : i32
    %c0_i32_1 = arith.constant 0 : i32
    %c0_i32_2 = arith.constant 0 : i32
    return %c0_i32, %c0_i32_0, %c0_i32_1 : i32, i32, i32
  }
  func.func @transform_9(%arg0: i32) -> (i32, i32, i32) {
    %c0_i32 = arith.constant 0 : i32
    %c0_i32_0 = arith.constant 0 : i32
    %c0_i32_1 = arith.constant 0 : i32
    %c0_i32_2 = arith.constant 0 : i32
    return %c0_i32, %c0_i32_0, %c0_i32_1 : i32, i32, i32
  }
  func.func @transform_10(%arg0: i32) -> (i32, i32, i32) {
    %c0_i32 = arith.constant 0 : i32
    %c0_i32_0 = arith.constant 0 : i32
    %c0_i32_1 = arith.constant 0 : i32
    %c0_i32_2 = arith.constant 0 : i32
    return %c0_i32, %c0_i32_0, %c0_i32_1 : i32, i32, i32
  }
  func.func @transform_11(%arg0: i32) -> (i32, i32, i32) {
    %c0_i32 = arith.constant 0 : i32
    %c0_i32_0 = arith.constant 0 : i32
    %c0_i32_1 = arith.constant 0 : i32
    %c0_i32_2 = arith.constant 0 : i32
    return %c0_i32, %c0_i32_0, %c0_i32_1 : i32, i32, i32
  }
  func.func @transform_12(%arg0: i32) -> (i32, i32) {
    %c0_i32 = arith.constant 0 : i32
    %c0_i32_0 = arith.constant 0 : i32
    %c0_i32_1 = arith.constant 0 : i32
    return %c0_i32, %c0_i32_0 : i32, i32
  }
}

</mosaic_0001>

<llo_original>
// kernel: backbone_forward.1
$region0: #{backbone_forward.1}
  #allocation0 [shape = 'u32[]', space=smem, size = 0x4, offset = 0x4, fixed_abs, tag = 'smem constant byte address 0x4 - core index']
  #allocation1 [shape = 'u32[144,128]{1,0:T(1,128)}', space=vmem, size = 0x12000, scoped, tag = 'internal scratch']
  #allocation2 [shape = 'f32[34,64]{1,0:T(8,128)}', space=vmem, size = 0x5000, scoped, tag = 'scratch operand']
  %s0 = inlined_call_operand.vmem [shape: f32[32,192], index: 0, kind: input, shape index: {}]
  %s1 = inlined_call_operand.vmem [shape: f32[34,34], index: 1, kind: input, shape index: {}]
  %s2 = inlined_call_operand.vmem [shape: bf16[192,64], index: 2, kind: input, shape index: {}]
  %s3 = inlined_call_operand.vmem [shape: f32[16,64], index: 3, kind: input, shape index: {}]
  %s4 = inlined_call_operand.vmem [shape: f32[3,64], index: 4, kind: input, shape index: {}]
  %s5 = inlined_call_operand.vmem [shape: f32[2,6,64], index: 5, kind: input, shape index: {}]
  %s6 = inlined_call_operand.vmem [shape: bf16[2,64,192], index: 6, kind: input, shape index: {}]
  %s7 = inlined_call_operand.vmem [shape: f32[2,1,192], index: 7, kind: input, shape index: {}]
  %s8 = inlined_call_operand.vmem [shape: bf16[2,64,64], index: 8, kind: input, shape index: {}]
  %s9 = inlined_call_operand.vmem [shape: bf16[2,64,256], index: 9, kind: input, shape index: {}]
  %s10 = inlined_call_operand.vmem [shape: f32[2,1,256], index: 10, kind: input, shape index: {}]
  %s11 = inlined_call_operand.vmem [shape: bf16[2,256,64], index: 11, kind: input, shape index: {}]
  %s12 = inlined_call_operand.hbm [shape: f32[2,64], index: 12, kind: output, shape index: {}]
  %s13 = sld [smem:[#allocation0]]
  $region58: #{backbone_forward.1} parent=0
    _
  %s15 = ssub.s32 1, %s13
  %s16 = scalar_select 0, %s15, %s13
  $region1: #{backbone_forward.1} parent=0
    #allocation3 [shape = 'u8[1024]{0}', space=vmem, size = 0x400, scoped, tag = 'output window, operand 0, single buffered']
    #allocation4 [shape = 's32[1]{0}', space=sflag, size = 0x4, scoped, tag = 'scoped memory for backbone_forward.1']
    %17 = vsyncpa [#allocation4], 0
    // Predicated region
    $region2: #{backbone_forward.1} parent=1 // pred_check
      _
    $region3: #{backbone_forward.1} parent=1 // pred_check_branch
      %19 = sbr.rel (0) target = $region5
    $region4: #{backbone_forward.1} parent=1 // pred_region
      _
    $region5: #{backbone_forward.1} parent=1 // pred_fallthru
      _
    // Predicated region
    $region6: #{backbone_forward.1} parent=1 // pred_check
      _
    $region7: #{backbone_forward.1} parent=1 // pred_check_branch
      %21 = sbr.rel (0) target = $region9
    $region8: #{backbone_forward.1} parent=1 // pred_region
      _
    $region9: #{backbone_forward.1} parent=1 // pred_fallthru
      _
    // Predicated region
    $region10: #{backbone_forward.1} parent=1 // pred_check
      _
    $region11: #{backbone_forward.1} parent=1 // pred_check_branch
      %23 = sbr.rel (0) target = $region13
    $region12: #{backbone_forward.1} parent=1 // pred_region
      _
    $region13: #{backbone_forward.1} parent=1 // pred_fallthru
      _
    // Predicated region
    $region14: #{backbone_forward.1} parent=1 // pred_check
      _
    $region15: #{backbone_forward.1} parent=1 // pred_check_branch
      %25 = sbr.rel (0) target = $region17
    $region16: #{backbone_forward.1} parent=1 // pred_region
      _
    $region17: #{backbone_forward.1} parent=1 // pred_fallthru
      _
    // Predicated region
    $region18: #{backbone_forward.1} parent=1 // pred_check
      _
    $region19: #{backbone_forward.1} parent=1 // pred_check_branch
      %27 = sbr.rel (0) target = $region21
    $region20: #{backbone_forward.1} parent=1 // pred_region
      _
    $region21: #{backbone_forward.1} parent=1 // pred_fallthru
      _
    // Predicated region
    $region22: #{backbone_forward.1} parent=1 // pred_check
      _
    $region23: #{backbone_forward.1} parent=1 // pred_check_branch
      %29 = sbr.rel (0) target = $region25
    $region24: #{backbone_forward.1} parent=1 // pred_region
      _
    $region25: #{backbone_forward.1} parent=1 // pred_fallthru
      _
    // Predicated region
    $region26: #{backbone_forward.1} parent=1 // pred_check
      _
    $region27: #{backbone_forward.1} parent=1 // pred_check_branch
      %31 = sbr.rel (0) target = $region29
    $region28: #{backbone_forward.1} parent=1 // pred_region
      _
    $region29: #{backbone_forward.1} parent=1 // pred_fallthru
      _
    // Predicated region
    $region30: #{backbone_forward.1} parent=1 // pred_check
      _
    $region31: #{backbone_forward.1} parent=1 // pred_check_branch
      %33 = sbr.rel (0) target = $region33
    $region32: #{backbone_forward.1} parent=1 // pred_region
      _
    $region33: #{backbone_forward.1} parent=1 // pred_fallthru
      _
    // Predicated region
    $region34: #{backbone_forward.1} parent=1 // pred_check
      _
    $region35: #{backbone_forward.1} parent=1 // pred_check_branch
      %35 = sbr.rel (0) target = $region37
    $region36: #{backbone_forward.1} parent=1 // pred_region
      _
    $region37: #{backbone_forward.1} parent=1 // pred_fallthru
      _
    // Predicated region
    $region38: #{backbone_forward.1} parent=1 // pred_check
      _
    $region39: #{backbone_forward.1} parent=1 // pred_check_branch
      %37 = sbr.rel (0) target = $region41
    $region40: #{backbone_forward.1} parent=1 // pred_region
      _
    $region41: #{backbone_forward.1} parent=1 // pred_fallthru
      _
    // Predicated region
    $region42: #{backbone_forward.1} parent=1 // pred_check
      _
    $region43: #{backbone_forward.1} parent=1 // pred_check_branch
      %39 = sbr.rel (0) target = $region45
    $region44: #{backbone_forward.1} parent=1 // pred_region
      _
    $region45: #{backbone_forward.1} parent=1 // pred_fallthru
      _
    // Predicated region
    $region46: #{backbone_forward.1} parent=1 // pred_check
      _
    $region47: #{backbone_forward.1} parent=1 // pred_check_branch
      %41 = sbr.rel (0) target = $region49
    $region48: #{backbone_forward.1} parent=1 // pred_region
      _
    $region49: #{backbone_forward.1} parent=1 // pred_fallthru
      _
    %v43 = vld [vmem:[%s0] sm:$0xff]
    %v44 = vld [vmem:[%s0 + $0x8] sm:$0xff]
    %v45 = vld [vmem:[%s0 + $0x10] sm:$0xff]
    %v46 = vld [vmem:[%s0 + $0x18] sm:$0xff]
    %v47 = vld [vmem:[%s0 + $0x20] sm:$0xff]
    %v48 = vld [vmem:[%s0 + $0x28] sm:$0xff]
    %v49 = vld [vmem:[%s0 + $0x30] sm:$0xff]
    %v50 = vld [vmem:[%s0 + $0x38] sm:$0xff]
    %v51 = vpack.c.bf16 %v45, %v43
    %v52 = vpack.c.bf16 %v46, %v44
    %v53 = vpack.c.bf16 %v49, %v47
    %v54 = vpack.c.bf16 %v50, %v48
    %v55 = vld [vmem:[%s2] sm:$0xf]
    %v56 = vld [vmem:[%s2 + $0x4] sm:$0xf]
    %v57 = vld [vmem:[%s2 + $0x8] sm:$0xf]
    %v58 = vld [vmem:[%s2 + $0xc] sm:$0xf]
    %v59 = vld [vmem:[%s2 + $0x10] sm:$0xf]
    %v60 = vld [vmem:[%s2 + $0x14] sm:$0xf]
    %v61 = vld [vmem:[%s2 + $0x18] sm:$0xf]
    %v62 = vld [vmem:[%s2 + $0x1c] sm:$0xf]
    %v63 = vld [vmem:[%s2 + $0x20] sm:$0xf]
    %v64 = vld [vmem:[%s2 + $0x24] sm:$0xf]
    %v65 = vld [vmem:[%s2 + $0x28] sm:$0xf]
    %v66 = vld [vmem:[%s2 + $0x2c] sm:$0xf]
    %v67 = vld [vmem:[%s2 + $0x30] sm:$0xf]
    %v68 = vld [vmem:[%s2 + $0x34] sm:$0xf]
    %v69 = vld [vmem:[%s2 + $0x38] sm:$0xf]
    %v70 = vld [vmem:[%s2 + $0x3c] sm:$0xf]
    %v71 = vld [vmem:[%s2 + $0x40] sm:$0xf]
    %v72 = vld [vmem:[%s2 + $0x44] sm:$0xf]
    %v73 = vld [vmem:[%s2 + $0x48] sm:$0xf]
    %v74 = vld [vmem:[%s2 + $0x4c] sm:$0xf]
    %v75 = vld [vmem:[%s2 + $0x50] sm:$0xf]
    %v76 = vld [vmem:[%s2 + $0x54] sm:$0xf]
    %v77 = vld [vmem:[%s2 + $0x58] sm:$0xf]
    %v78 = vld [vmem:[%s2 + $0x5c] sm:$0xf]
    %v103 = vunpack.c.l.b16 %v55
    %v104 = vunpack.c.l.b16 %v56
    %v105 = vunpack.c.l.b16 %v57
    %v106 = vunpack.c.l.b16 %v58
    %v107 = vunpack.c.l.b16 %v59
    %v108 = vunpack.c.l.b16 %v60
    %v109 = vunpack.c.l.b16 %v61
    %v110 = vunpack.c.l.b16 %v62
    %v111 = vunpack.c.l.b16 %v63
    %v112 = vunpack.c.l.b16 %v64
    %v113 = vunpack.c.l.b16 %v65
    %v114 = vunpack.c.l.b16 %v66
    %v115 = vunpack.c.l.b16 %v67
    %v116 = vunpack.c.l.b16 %v68
    %v117 = vunpack.c.l.b16 %v69
    %v118 = vunpack.c.l.b16 %v70
    %v119 = vunpack.c.l.b16 %v71
    %v120 = vunpack.c.l.b16 %v72
    %v121 = vunpack.c.l.b16 %v73
    %v122 = vunpack.c.l.b16 %v74
    %v123 = vunpack.c.l.b16 %v75
    %v124 = vunpack.c.l.b16 %v76
    %v125 = vunpack.c.l.b16 %v77
    %v126 = vunpack.c.l.b16 %v78
    %v127 = vpack.c.b16 %v104, %v103
    %v128 = vpack.c.b16 %v106, %v105
    %v129 = vpack.c.b16 %v108, %v107
    %v130 = vpack.c.b16 %v110, %v109
    %v131 = vpack.c.b16 %v112, %v111
    %v132 = vpack.c.b16 %v114, %v113
    %v133 = vpack.c.b16 %v116, %v115
    %v134 = vpack.c.b16 %v118, %v117
    %v135 = vpack.c.b16 %v120, %v119
    %v136 = vpack.c.b16 %v122, %v121
    %v137 = vpack.c.b16 %v124, %v123
    %v138 = vpack.c.b16 %v126, %v125
    %vm151 = vcmask 523264
    %v153 = vsel %vm151, %v52, 0
    %v156 = vsel %vm151, %v54, 0
    %158 = vmatprep.subr.bf16.mxu0 0
    %159 = vmatpush1.bf16.msra.mxu0 %v127
    %160 = vmatprep.subr.bf16.mxu0 0
    %161 = vmatpush1.bf16.msra.mxu0 %v128
    %162 = vmatprep.subr.bf16.mxu0 0
    %163 = vmatpush1.bf16.msra.mxu0 %v129
    %164 = vmatprep.subr.bf16.mxu0 0
    %165 = vmatpush1.bf16.msra.mxu0 %v130
    %166 = vmatprep.subr.bf16.mxu0 0
    %167 = vmatpush1.bf16.msra.mxu0 %v131
    %168 = vmatprep.subr.bf16.mxu0 0
    %169 = vmatpush1.bf16.msra.mxu0 %v132
    %170 = vmatprep.subr.bf16.mxu0 0
    %171 = vmatpush1.bf16.msra.mxu0 %v133
    %172 = vmatprep.subr.bf16.mxu0 0
    %173 = vmatpush1.bf16.msra.mxu0 %v134
    %174 = vmatprep.subr.bf16.mxu0 0
    %175 = vmatpush1.bf16.msra.mxu0 %v135
    %176 = vmatprep.subr.bf16.mxu0 0
    %177 = vmatpush1.bf16.msra.mxu0 %v136
    %178 = vmatprep.subr.bf16.mxu0 0
    %179 = vmatpush1.bf16.msra.mxu0 %v137
    %180 = vmatprep.subr.bf16.mxu0 0
    %181 = vmatpush1.bf16.msra.mxu0 %v138
    %182 = vmatprep.subr.bf16.mxu0 0
    %183 = vmatpush1.bf16.msra.mxu0 0
    %184 = vmatprep.subr.bf16.mxu0 0
    %185 = vmatpush1.bf16.msra.mxu0 0
    %186 = vmatprep.subr.bf16.mxu0 0
    %187 = vmatpush1.bf16.msra.mxu0 0
    %188 = vmatprep.subr.bf16.mxu0 0
    %189 = vmatpush1.bf16.msra.mxu0 0
    %190 = vmatprep.mubr.bf16.mxu0 %v153
    %191 = vmatmul.mubr.bf16.gmra.mrb[0].mxu0 %v51
    %v192 = vpop.f32.mrb[0].mxu0
    %v193 = vadd.f32 0.0, %v192
    %v194 = vpop.f32.mrb[0].mxu0
    %v195 = vpop.f32.mrb[0].mxu0
    %v196 = vadd.f32 0.0, %v195
    %v197 = vpop.f32.mrb[0].mxu0
    %198 = vmatprep.mubr.bf16.mxu0 %v156
    %199 = vmatmul.mubr.bf16.gmra.mrb[0].mxu0 %v53
    %v200 = vpop.f32.mrb[0].mxu0
    %v201 = vadd.f32 0.0, %v200
    %v202 = vpop.f32.mrb[0].mxu0
    %v203 = vpop.f32.mrb[0].mxu0
    %v204 = vadd.f32 0.0, %v203
    %v205 = vpop.f32.mrb[0].mxu0
    %206 = vdwg.mxu0
    %v207 = vld [vmem:[%s4] sm:$0x1]
    %v208 = vld [vmem:[%s3] sm:$0xff]
    %v209 = vld [vmem:[%s3 + $0x8] sm:$0xff]
    %vm210 = vcmask 516096
    %211 = vst.msk [vmem:[#allocation2] sm:$0x1] %vm210, %v207
    %v212 = vadd.f32 %v193, %v208
    %v213 = vadd.f32 %v196, %v209
    %214 = vst.msk [vmem:[#allocation2 + $0x1] sm:$0xff] %vm151, %v212
    %215 = vst.msk [vmem:[#allocation2 + $0x9] sm:$0xff] %vm151, %v213
    %216 = vst.msk [vmem:[#allocation2 + $0x11] sm:$0x1] %vm210, %v207
    %v217 = vadd.f32 %v201, %v208
    %v218 = vadd.f32 %v204, %v209
    %219 = vst.msk [vmem:[#allocation2 + $0x12] sm:$0xff] %vm151, %v217
    %220 = vst.msk [vmem:[#allocation2 + $0x1a] sm:$0xff] %vm151, %v218
    %v221 = vld [vmem:[#allocation2] sm:$0xff]
    %v222 = vld [vmem:[#allocation2 + $0x8] sm:$0xff]
    %v223 = vld [vmem:[#allocation2 + $0x10] sm:$0xff]
    %v224 = vld [vmem:[#allocation2 + $0x18] sm:$0xff]
    %v225 = vld [vmem:[#allocation2 + $0x20] sm:$0x3]
    %v226 = vld [vmem:[%s1] sm:$0xff]
    %v227 = vld [vmem:[%s1 + $0x8] sm:$0xff]
    %v228 = vld [vmem:[%s1 + $0x10] sm:$0xff]
    %v229 = vld [vmem:[%s1 + $0x18] sm:$0xff]
    %v230 = vld [vmem:[%s1 + $0x20] sm:$0x3]
    %v231 = vld [vmem:[%s5] sm:$0x1]
    %v232 = vld [vmem:[%s5 + $0x1] sm:$0x1]
    %v233 = vld [vmem:[%s5 + $0x2] sm:$0x1]
    %v234 = vld [vmem:[%s5 + $0x3] sm:$0x1]
    %v235 = vld [vmem:[%s5 + $0x4] sm:$0x1]
    %v236 = vld [vmem:[%s5 + $0x5] sm:$0x1]
    %v237 = vsel %vm151, %v221, 0.0
    %238 = vadd.xlane.f32.xlu0 %v237
    %v239 = vpop.xlane.xlu0 %238
    %v240 = vsel %vm151, %v222, 0.0
    %241 = vadd.xlane.f32.xlu0 %v240
    %v242 = vpop.xlane.xlu0 %241
    %v243 = vsel %vm151, %v223, 0.0
    %244 = vadd.xlane.f32.xlu0 %v243
    %v245 = vpop.xlane.xlu0 %244
    %v246 = vsel %vm151, %v224, 0.0
    %247 = vadd.xlane.f32.xlu0 %v246
    %v248 = vpop.xlane.xlu0 %247
    %vm249 = vcmask 517120
    %v250 = vsel %vm249, %v225, 0.0
    %251 = vadd.xlane.f32.xlu0 %v250
    %v252 = vpop.xlane.xlu0 %251
    %v253 = vrcp.pop 64.0
    %v254 = vmul.f32 %v239, %v253
    %v255 = vmul.f32 %v242, %v253
    %v256 = vmul.f32 %v245, %v253
    %v257 = vmul.f32 %v248, %v253
    %v258 = vmul.f32 %v252, %v253
    %v259 = vsub.f32 %v221, %v254
    %v260 = vsub.f32 %v222, %v255
    %v261 = vsub.f32 %v223, %v256
    %v262 = vsub.f32 %v224, %v257
    %v263 = vsub.f32 %v225, %v258
    %v264 = vmul.f32 %v259, %v259
    %v265 = vmul.f32 %v260, %v260
    %v266 = vmul.f32 %v261, %v261
    %v267 = vmul.f32 %v262, %v262
    %v268 = vmul.f32 %v263, %v263
    %v269 = vsel %vm151, %v264, 0.0
    %270 = vadd.xlane.f32.xlu0 %v269
    %v271 = vpop.xlane.xlu0 %270
    %v272 = vsel %vm151, %v265, 0.0
    %273 = vadd.xlane.f32.xlu0 %v272
    %v274 = vpop.xlane.xlu0 %273
    %v275 = vsel %vm151, %v266, 0.0
    %276 = vadd.xlane.f32.xlu0 %v275
    %v277 = vpop.xlane.xlu0 %276
    %v278 = vsel %vm151, %v267, 0.0
    %279 = vadd.xlane.f32.xlu0 %v278
    %v280 = vpop.xlane.xlu0 %279
    %v281 = vsel %vm249, %v268, 0.0
    %282 = vadd.xlane.f32.xlu0 %v281
    %v283 = vpop.xlane.xlu0 %282
    %v284 = vmul.f32 %v271, %v253
    %v285 = vmul.f32 %v274, %v253
    %v286 = vmul.f32 %v277, %v253
    %v287 = vmul.f32 %v280, %v253
    %v288 = vmul.f32 %v283, %v253
    %v289 = vadd.f32 %v284, 1e-06
    %v290 = vadd.f32 %v285, 1e-06
    %v291 = vadd.f32 %v286, 1e-06
    %v292 = vadd.f32 %v287, 1e-06
    %v293 = vadd.f32 %v288, 1e-06
    %v294 = vrsqrt.pop %v289
    %v295 = vrsqrt.pop %v290
    %v296 = vrsqrt.pop %v291
    %v297 = vrsqrt.pop %v292
    %v298 = vrsqrt.pop %v293
    %v299 = vmul.f32 %v259, %v294
    %v300 = vmul.f32 %v260, %v295
    %v301 = vmul.f32 %v261, %v296
    %v302 = vmul.f32 %v262, %v297
    %v303 = vmul.f32 %v263, %v298
    %v304 = vlaneseq
    %v305 = vshrl.u32 %v304, 7
    %v306 = vsub.s32 0, %v305
    %v307 = vrot.slane %v231, %v306
    %v308 = vmul.f32 %v299, %v307
    %v309 = vmul.f32 %v300, %v307
    %v310 = vmul.f32 %v301, %v307
    %v311 = vmul.f32 %v302, %v307
    %v312 = vmul.f32 %v303, %v307
    %v313 = vlaneseq
    %v314 = vshrl.u32 %v313, 7
    %v315 = vsub.s32 0, %v314
    %v316 = vrot.slane %v232, %v315
    %v317 = vadd.f32 %v308, %v316
    %v318 = vadd.f32 %v309, %v316
    %v319 = vadd.f32 %v310, %v316
    %v320 = vadd.f32 %v311, %v316
    %v321 = vadd.f32 %v312, %v316
    %v322 = vpack.c.bf16 %v318, %v317
    %v323 = vpack.c.bf16 %v320, %v319
    %v324 = vpack.c.bf16 %v321, %v321
    %v325 = vld [vmem:[%s6] sm:$0xff]
    %v326 = vld [vmem:[%s6 + $0x8] sm:$0xff]
    %v327 = vld [vmem:[%s6 + $0x10] sm:$0xff]
    %v328 = vld [vmem:[%s6 + $0x18] sm:$0xff]
    %v329 = vld [vmem:[%s6 + $0x20] sm:$0xff]
    %v330 = vld [vmem:[%s6 + $0x28] sm:$0xff]
    %v331 = vld [vmem:[%s6 + $0x30] sm:$0xff]
    %v332 = vld [vmem:[%s6 + $0x38] sm:$0xff]
    %v333 = vld [vmem:[%s7] sm:$0x3]
    %v335 = vlaneseq
    %v336 = vshrl.u32 %v335, 7
    %v337 = vsub.s32 0, %v336
    %v338 = vrot.slane %v333, %v337
    %v339 = vlaneseq
    %v340 = vshrl.u32 %v339, 7
    %v341 = vsub.s32 1, %v340
    %v342 = vrot.slane %v333, %v341
    %v353 = vunpack.c.l.b16 %v325
    %v354 = vunpack.c.h.b16 %v325
    %v355 = vunpack.c.l.b16 %v326
    %v356 = vunpack.c.h.b16 %v326
    %v357 = vunpack.c.l.b16 %v327
    %v358 = vunpack.c.h.b16 %v327
    %v359 = vunpack.c.l.b16 %v328
    %v360 = vunpack.c.h.b16 %v328
    %v361 = vunpack.c.l.b16 %v329
    %v362 = vunpack.c.h.b16 %v329
    %v363 = vunpack.c.l.b16 %v330
    %v364 = vunpack.c.h.b16 %v330
    %v365 = vunpack.c.l.b16 %v331
    %v366 = vunpack.c.h.b16 %v331
    %v367 = vunpack.c.l.b16 %v332
    %v368 = vunpack.c.h.b16 %v332
    %v369 = vpack.c.b16 %v355, %v353
    %v370 = vpack.c.b16 %v356, %v354
    %v371 = vpack.c.b16 %v359, %v357
    %v372 = vpack.c.b16 %v360, %v358
    %v373 = vpack.c.b16 %v363, %v361
    %v374 = vpack.c.b16 %v364, %v362
    %v375 = vpack.c.b16 %v367, %v365
    %v376 = vpack.c.b16 %v368, %v366
    %v386 = vsel %vm151, %v322, 0
    %v389 = vsel %vm151, %v323, 0
    %v392 = vsel %vm151, %v324, 0
    %394 = vmatprep.subr.bf16.mxu0 %v370
    %395 = vmatpush1.bf16.msra.mxu0 %v369
    %396 = vmatprep.subr.bf16.mxu0 %v372
    %397 = vmatpush1.bf16.msra.mxu0 %v371
    %398 = vmatprep.subr.bf16.mxu0 %v374
    %399 = vmatpush1.bf16.msra.mxu0 %v373
    %400 = vmatprep.subr.bf16.mxu0 %v376
    %401 = vmatpush1.bf16.msra.mxu0 %v375
    %402 = vmatprep.subr.bf16.mxu0 0
    %403 = vmatpush1.bf16.msra.mxu0 0
    %404 = vmatprep.subr.bf16.mxu0 0
    %405 = vmatpush1.bf16.msra.mxu0 0
    %406 = vmatprep.subr.bf16.mxu0 0
    %407 = vmatpush1.bf16.msra.mxu0 0
    %408 = vmatprep.subr.bf16.mxu0 0
    %409 = vmatpush1.bf16.msra.mxu0 0
    %410 = vmatprep.subr.bf16.mxu0 0
    %411 = vmatpush1.bf16.msra.mxu0 0
    %412 = vmatprep.subr.bf16.mxu0 0
    %413 = vmatpush1.bf16.msra.mxu0 0
    %414 = vmatprep.subr.bf16.mxu0 0
    %415 = vmatpush1.bf16.msra.mxu0 0
    %416 = vmatprep.subr.bf16.mxu0 0
    %417 = vmatpush1.bf16.msra.mxu0 0
    %418 = vmatprep.subr.bf16.mxu0 0
    %419 = vmatpush1.bf16.msra.mxu0 0
    %420 = vmatprep.subr.bf16.mxu0 0
    %421 = vmatpush1.bf16.msra.mxu0 0
    %422 = vmatprep.subr.bf16.mxu0 0
    %423 = vmatpush1.bf16.msra.mxu0 0
    %424 = vmatprep.subr.bf16.mxu0 0
    %425 = vmatpush1.bf16.msra.mxu0 0
    %426 = vmatprep.mubr.bf16.mxu0 0
    %427 = vmatmul.mubr.bf16.gmra.mrb[0].mxu0 %v386
    %v428 = vpop.f32.mrb[0].mxu0
    %v429 = vadd.f32 %v338, %v428
    %v430 = vpop.f32.mrb[0].mxu0
    %v431 = vadd.f32 %v342, %v430
    %v432 = vpop.f32.mrb[0].mxu0
    %v433 = vadd.f32 %v338, %v432
    %v434 = vpop.f32.mrb[0].mxu0
    %v435 = vadd.f32 %v342, %v434
    %436 = vmatprep.mubr.bf16.mxu0 0
    %437 = vmatmul.mubr.bf16.gmra.mrb[0].mxu0 %v389
    %v438 = vpop.f32.mrb[0].mxu0
    %v439 = vadd.f32 %v338, %v438
    %v440 = vpop.f32.mrb[0].mxu0
    %v441 = vadd.f32 %v342, %v440
    %v442 = vpop.f32.mrb[0].mxu0
    %v443 = vadd.f32 %v338, %v442
    %v444 = vpop.f32.mrb[0].mxu0
    %v445 = vadd.f32 %v342, %v444
    %446 = vmatprep.mubr.bf16.mxu0 0
    %447 = vmatmul.mubr.bf16.gmra.mrb[0].mxu0 %v392
    %v448 = vpop.f32.mrb[0].mxu0
    %v449 = vadd.f32 %v338, %v448
    %v450 = vpop.f32.mrb[0].mxu0
    %v451 = vadd.f32 %v342, %v450
    %v452 = vpop.f32.mrb[0].mxu0
    %v453 = vpop.f32.mrb[0].mxu0
    %454 = vdwg.mxu0
    %v455 = vmul.f32 %v429, 0.17677669
    %v456 = vmul.f32 %v433, 0.17677669
    %v457 = vmul.f32 %v439, 0.17677669
    %v458 = vmul.f32 %v443, 0.17677669
    %v459 = vmul.f32 %v449, 0.17677669
    %465 = vrot.lane.b32.xlu0 %v429, 64
    %v466 = vpop.permute.xlu0 %465
    %467 = vrot.lane.b32.xlu0 %v433, 64
    %v468 = vpop.permute.xlu0 %467
    %469 = vrot.lane.b32.xlu0 %v439, 64
    %v470 = vpop.permute.xlu0 %469
    %471 = vrot.lane.b32.xlu0 %v443, 64
    %v472 = vpop.permute.xlu0 %471
    %473 = vrot.lane.b32.xlu0 %v449, 64
    %v474 = vpop.permute.xlu0 %473
    %vm475 = vcmask 261120
    %v477 = vsel %vm475, %v455, 0
    %v480 = vsel %vm475, %v456, 0
    %v483 = vsel %vm475, %v457, 0
    %v486 = vsel %vm475, %v458, 0
    %v489 = vsel %vm475, %v459, 0
    %v491 = vsel %vm475, %v466, 0
    %v493 = vsel %vm475, %v468, 0
    %v495 = vsel %vm475, %v470, 0
    %v497 = vsel %vm475, %v472, 0
    %v499 = vsel %vm475, %v474, 0
    %501 = vmatprep.subr.mxu0 0.0
    %502 = vmatpush1.xpose.msra.mxu0 %v491
    %503 = vmatprep.subr.mxu0 0.0
    %504 = vmatpush1.xpose.msra.mxu0 %v493
    %505 = vmatprep.subr.mxu0 0.0
    %506 = vmatpush1.xpose.msra.mxu0 %v495
    %507 = vmatprep.subr.mxu0 0.0
    %508 = vmatpush1.xpose.msra.mxu0 %v497
    %509 = vmatprep.subr.mxu0 0.0
    %510 = vmatpush1.xpose.msra.mxu0 %v499
    %511 = vmatprep.subr.mxu0 0.0
    %512 = vmatpush1.xpose.msra.mxu0 0.0
    %513 = vmatprep.subr.mxu0 0.0
    %514 = vmatpush1.xpose.msra.mxu0 0.0
    %515 = vmatprep.subr.mxu0 0.0
    %516 = vmatpush1.xpose.msra.mxu0 0.0
    %517 = vmatprep.subr.mxu0 0.0
    %518 = vmatpush1.xpose.msra.mxu0 0.0
    %519 = vmatprep.subr.mxu0 0.0
    %520 = vmatpush1.xpose.msra.mxu0 0.0
    %521 = vmatprep.subr.mxu0 0.0
    %522 = vmatpush1.xpose.msra.mxu0 0.0
    %523 = vmatprep.subr.mxu0 0.0
    %524 = vmatpush1.xpose.msra.mxu0 0.0
    %525 = vmatprep.subr.mxu0 0.0
    %526 = vmatpush1.xpose.msra.mxu0 0.0
    %527 = vmatprep.subr.mxu0 0.0
    %528 = vmatpush1.xpose.msra.mxu0 0.0
    %529 = vmatprep.subr.mxu0 0.0
    %530 = vmatpush1.xpose.msra.mxu0 0.0
    %531 = vmatprep.subr.mxu0 0.0
    %532 = vmatpush1.xpose.msra.mxu0 0.0
    %533 = vmatprep.subr.mxu0 0.0
    %534 = vmatpush1.xpose.msra.mxu0 0.0
    %535 = vmatprep.subr.mxu0 0.0
    %536 = vmatpush1.xpose.msra.mxu0 0.0
    %537 = vmatprep.subr.mxu0 0.0
    %538 = vmatpush1.xpose.msra.mxu0 0.0
    %539 = vmatprep.subr.mxu0 0.0
    %540 = vmatpush1.xpose.msra.mxu0 0.0
    %541 = vmatprep.subr.mxu0 0.0
    %542 = vmatpush1.xpose.msra.mxu0 0.0
    %543 = vmatprep.subr.mxu0 0.0
    %544 = vmatpush1.xpose.msra.mxu0 0.0
    %545 = vmatprep.subr.mxu0 0.0
    %546 = vmatpush1.xpose.msra.mxu0 0.0
    %547 = vmatprep.subr.mxu0 0.0
    %548 = vmatpush1.xpose.msra.mxu0 0.0
    %549 = vmatprep.subr.mxu0 0.0
    %550 = vmatpush1.xpose.msra.mxu0 0.0
    %551 = vmatprep.subr.mxu0 0.0
    %552 = vmatpush1.xpose.msra.mxu0 0.0
    %553 = vmatprep.subr.mxu0 0.0
    %554 = vmatpush1.xpose.msra.mxu0 0.0
    %555 = vmatprep.subr.mxu0 0.0
    %556 = vmatpush1.xpose.msra.mxu0 0.0
    %557 = vmatprep.subr.mxu0 0.0
    %558 = vmatpush1.xpose.msra.mxu0 0.0
    %559 = vmatprep.subr.mxu0 0.0
    %560 = vmatpush1.xpose.msra.mxu0 0.0
    %561 = vmatprep.subr.mxu0 0.0
    %562 = vmatpush1.xpose.msra.mxu0 0.0
    %563 = vmatprep.subr.mxu0 0.0
    %564 = vmatpush1.xpose.msra.mxu0 0.0
    %565 = vmatprep.mubr.f32.mxu0 0.0
    %566 = vmatmul.mubr.f32.gmra.mrb[0].mxu0 %v477
    %v567 = vpop.f32.mrb[0].mxu0
    %v568 = vadd.f32 %v226, %v567
    %v569 = vpop.f32.mrb[0].mxu0
    %570 = vmatprep.mubr.f32.mxu0 0.0
    %571 = vmatmul.mubr.f32.gmra.mrb[0].mxu0 %v480
    %v572 = vpop.f32.mrb[0].mxu0
    %v573 = vadd.f32 %v227, %v572
    %v574 = vpop.f32.mrb[0].mxu0
    %575 = vmatprep.mubr.f32.mxu0 0.0
    %576 = vmatmul.mubr.f32.gmra.mrb[0].mxu0 %v483
    %v577 = vpop.f32.mrb[0].mxu0
    %v578 = vadd.f32 %v228, %v577
    %v579 = vpop.f32.mrb[0].mxu0
    %580 = vmatprep.mubr.f32.mxu0 0.0
    %581 = vmatmul.mubr.f32.gmra.mrb[0].mxu0 %v486
    %v582 = vpop.f32.mrb[0].mxu0
    %v583 = vadd.f32 %v229, %v582
    %v584 = vpop.f32.mrb[0].mxu0
    %585 = vmatprep.mubr.f32.mxu0 0.0
    %586 = vmatmul.mubr.f32.gmra.mrb[0].mxu0 %v489
    %v587 = vpop.f32.mrb[0].mxu0
    %v588 = vadd.f32 %v230, %v587
    %v589 = vpop.f32.mrb[0].mxu0
    %590 = vdwg.mxu0
    %vm591 = vcmask 277504
    %v592 = vsel %vm591, %v568, -inf
    %593 = vmax.xlane.f32.xlu0 %v592
    %v594 = vpop.xlane.xlu0 %593
    %v595 = vsel %vm591, %v573, -inf
    %596 = vmax.xlane.f32.xlu0 %v595
    %v597 = vpop.xlane.xlu0 %596
    %v598 = vsel %vm591, %v578, -inf
    %599 = vmax.xlane.f32.xlu0 %v598
    %v600 = vpop.xlane.xlu0 %599
    %v601 = vsel %vm591, %v583, -inf
    %602 = vmax.xlane.f32.xlu0 %v601
    %v603 = vpop.xlane.xlu0 %602
    %vm604 = vcmask 271360
    %v605 = vsel %vm604, %v588, -inf
    %606 = vmax.xlane.f32.xlu0 %v605
    %v607 = vpop.xlane.xlu0 %606
    %v608 = vsub.f32 %v568, %v594
    %v609 = vsub.f32 %v573, %v597
    %v610 = vsub.f32 %v578, %v600
    %v611 = vsub.f32 %v583, %v603
    %v612 = vsub.f32 %v588, %v607
    %v613 = vmul.f32 %v608, 1.442695
    %v614 = vpow.pop %v613
    %v615 = vmul.f32 %v609, 1.442695
    %v616 = vpow.pop %v615
    %v617 = vmul.f32 %v610, 1.442695
    %v618 = vpow.pop %v617
    %v619 = vmul.f32 %v611, 1.442695
    %v620 = vpow.pop %v619
    %v621 = vmul.f32 %v612, 1.442695
    %v622 = vpow.pop %v621
    %v623 = vsel %vm591, %v614, 0.0
    %624 = vadd.xlane.f32.xlu0 %v623
    %v625 = vpop.xlane.xlu0 %624
    %v626 = vsel %vm591, %v616, 0.0
    %627 = vadd.xlane.f32.xlu0 %v626
    %v628 = vpop.xlane.xlu0 %627
    %v629 = vsel %vm591, %v618, 0.0
    %630 = vadd.xlane.f32.xlu0 %v629
    %v631 = vpop.xlane.xlu0 %630
    %v632 = vsel %vm591, %v620, 0.0
    %633 = vadd.xlane.f32.xlu0 %v632
    %v634 = vpop.xlane.xlu0 %633
    %v635 = vsel %vm604, %v622, 0.0
    %636 = vadd.xlane.f32.xlu0 %v635
    %v637 = vpop.xlane.xlu0 %636
    %v638 = vrcp.pop %v625
    %v639 = vrcp.pop %v628
    %v640 = vrcp.pop %v631
    %v641 = vrcp.pop %v634
    %v642 = vrcp.pop %v637
    %v643 = vmul.f32 %v614, %v638
    %v644 = vmul.f32 %v616, %v639
    %v645 = vmul.f32 %v618, %v640
    %v646 = vmul.f32 %v620, %v641
    %v647 = vmul.f32 %v622, %v642
    %v648 = vpack.c.bf16 %v644, %v643
    %v649 = vpack.c.bf16 %v646, %v645
    %v650 = vpack.c.bf16 %v647, %v647
    %v651 = vpack.c.bf16 %v435, %v431
    %v652 = vpack.c.bf16 %v445, %v441
    %v653 = vpack.c.bf16 %v451, %v451
    %v655 = vsel %vm591, %v648, 0
    %v658 = vsel %vm591, %v649, 0
    %v661 = vsel %vm591, %v650, 0
    %vm663 = vcmask 1040384
    %v665 = vsel %vm663, %v653, 0
    %667 = vmatprep.subr.bf16.mxu0 0
    %668 = vmatpush1.bf16.msra.mxu0 %v651
    %669 = vmatprep.subr.bf16.mxu0 0
    %670 = vmatpush1.bf16.msra.mxu0 %v652
    %671 = vmatprep.subr.bf16.mxu0 0
    %672 = vmatpush1.bf16.msra.mxu0 %v665
    %673 = vmatprep.subr.bf16.mxu0 0
    %674 = vmatpush1.bf16.msra.mxu0 0
    %675 = vmatprep.subr.bf16.mxu0 0
    %676 = vmatpush1.bf16.msra.mxu0 0
    %677 = vmatprep.subr.bf16.mxu0 0
    %678 = vmatpush1.bf16.msra.mxu0 0
    %679 = vmatprep.subr.bf16.mxu0 0
    %680 = vmatpush1.bf16.msra.mxu0 0
    %681 = vmatprep.subr.bf16.mxu0 0
    %682 = vmatpush1.bf16.msra.mxu0 0
    %683 = vmatprep.subr.bf16.mxu0 0
    %684 = vmatpush1.bf16.msra.mxu0 0
    %685 = vmatprep.subr.bf16.mxu0 0
    %686 = vmatpush1.bf16.msra.mxu0 0
    %687 = vmatprep.subr.bf16.mxu0 0
    %688 = vmatpush1.bf16.msra.mxu0 0
    %689 = vmatprep.subr.bf16.mxu0 0
    %690 = vmatpush1.bf16.msra.mxu0 0
    %691 = vmatprep.subr.bf16.mxu0 0
    %692 = vmatpush1.bf16.msra.mxu0 0
    %693 = vmatprep.subr.bf16.mxu0 0
    %694 = vmatpush1.bf16.msra.mxu0 0
    %695 = vmatprep.subr.bf16.mxu0 0
    %696 = vmatpush1.bf16.msra.mxu0 0
    %697 = vmatprep.subr.bf16.mxu0 0
    %698 = vmatpush1.bf16.msra.mxu0 0
    %699 = vmatprep.mubr.bf16.mxu0 0
    %700 = vmatmul.mubr.bf16.gmra.mrb[0].mxu0 %v655
    %v701 = vpop.f32.mrb[0].mxu0
    %v702 = vadd.f32 0.0, %v701
    %v703 = vpop.f32.mrb[0].mxu0
    %v704 = vpop.f32.mrb[0].mxu0
    %v705 = vadd.f32 0.0, %v704
    %v706 = vpop.f32.mrb[0].mxu0
    %707 = vmatprep.mubr.bf16.mxu0 0
    %708 = vmatmul.mubr.bf16.gmra.mrb[0].mxu0 %v658
    %v709 = vpop.f32.mrb[0].mxu0
    %v710 = vadd.f32 0.0, %v709
    %v711 = vpop.f32.mrb[0].mxu0
    %v712 = vpop.f32.mrb[0].mxu0
    %v713 = vadd.f32 0.0, %v712
    %v714 = vpop.f32.mrb[0].mxu0
    %715 = vmatprep.mubr.bf16.mxu0 0
    %716 = vmatmul.mubr.bf16.gmra.mrb[0].mxu0 %v661
    %v717 = vpop.f32.mrb[0].mxu0
    %v718 = vadd.f32 0.0, %v717
    %v719 = vpop.f32.mrb[0].mxu0
    %v720 = vpop.f32.mrb[0].mxu0
    %v721 = vpop.f32.mrb[0].mxu0
    %722 = vdwg.mxu0
    %723 = vrot.lane.b32.xlu0 %v455, 96
    %v724 = vpop.permute.xlu0 %723
    %725 = vrot.lane.b32.xlu0 %v456, 96
    %v726 = vpop.permute.xlu0 %725
    %727 = vrot.lane.b32.xlu0 %v457, 96
    %v728 = vpop.permute.xlu0 %727
    %729 = vrot.lane.b32.xlu0 %v458, 96
    %v730 = vpop.permute.xlu0 %729
    %731 = vrot.lane.b32.xlu0 %v459, 96
    %v732 = vpop.permute.xlu0 %731
    %733 = vrot.lane.b32.xlu0 %v429, 32
    %v734 = vpop.permute.xlu0 %733
    %735 = vrot.lane.b32.xlu0 %v433, 32
    %v736 = vpop.permute.xlu0 %735
    %737 = vrot.lane.b32.xlu0 %v439, 32
    %v738 = vpop.permute.xlu0 %737
    %739 = vrot.lane.b32.xlu0 %v443, 32
    %v740 = vpop.permute.xlu0 %739
    %741 = vrot.lane.b32.xlu0 %v449, 32
    %v742 = vpop.permute.xlu0 %741
    %v743 = vsel %vm475, %v724, 0
    %v745 = vsel %vm475, %v726, 0
    %v747 = vsel %vm475, %v728, 0
    %v749 = vsel %vm475, %v730, 0
    %v751 = vsel %vm475, %v732, 0
    %v753 = vsel %vm475, %v734, 0
    %v755 = vsel %vm475, %v736, 0
    %v757 = vsel %vm475, %v738, 0
    %v759 = vsel %vm475, %v740, 0
    %v761 = vsel %vm475, %v742, 0
    %763 = vmatprep.subr.mxu0 0.0
    %764 = vmatpush1.xpose.msra.mxu0 %v753
    %765 = vmatprep.subr.mxu0 0.0
    %766 = vmatpush1.xpose.msra.mxu0 %v755
    %767 = vmatprep.subr.mxu0 0.0
    %768 = vmatpush1.xpose.msra.mxu0 %v757
    %769 = vmatprep.subr.mxu0 0.0
    %770 = vmatpush1.xpose.msra.mxu0 %v759
    %771 = vmatprep.subr.mxu0 0.0
    %772 = vmatpush1.xpose.msra.mxu0 %v761
    %773 = vmatprep.subr.mxu0 0.0
    %774 = vmatpush1.xpose.msra.mxu0 0.0
    %775 = vmatprep.subr.mxu0 0.0
    %776 = vmatpush1.xpose.msra.mxu0 0.0
    %777 = vmatprep.subr.mxu0 0.0
    %778 = vmatpush1.xpose.msra.mxu0 0.0
    %779 = vmatprep.subr.mxu0 0.0
    %780 = vmatpush1.xpose.msra.mxu0 0.0
    %781 = vmatprep.subr.mxu0 0.0
    %782 = vmatpush1.xpose.msra.mxu0 0.0
    %783 = vmatprep.subr.mxu0 0.0
    %784 = vmatpush1.xpose.msra.mxu0 0.0
    %785 = vmatprep.subr.mxu0 0.0
    %786 = vmatpush1.xpose.msra.mxu0 0.0
    %787 = vmatprep.subr.mxu0 0.0
    %788 = vmatpush1.xpose.msra.mxu0 0.0
    %789 = vmatprep.subr.mxu0 0.0
    %790 = vmatpush1.xpose.msra.mxu0 0.0
    %791 = vmatprep.subr.mxu0 0.0
    %792 = vmatpush1.xpose.msra.mxu0 0.0
    %793 = vmatprep.subr.mxu0 0.0
    %794 = vmatpush1.xpose.msra.mxu0 0.0
    %795 = vmatprep.subr.mxu0 0.0
    %796 = vmatpush1.xpose.msra.mxu0 0.0
    %797 = vmatprep.subr.mxu0 0.0
    %798 = vmatpush1.xpose.msra.mxu0 0.0
    %799 = vmatprep.subr.mxu0 0.0
    %800 = vmatpush1.xpose.msra.mxu0 0.0
    %801 = vmatprep.subr.mxu0 0.0
    %802 = vmatpush1.xpose.msra.mxu0 0.0
    %803 = vmatprep.subr.mxu0 0.0
    %804 = vmatpush1.xpose.msra.mxu0 0.0
    %805 = vmatprep.subr.mxu0 0.0
    %806 = vmatpush1.xpose.msra.mxu0 0.0
    %807 = vmatprep.subr.mxu0 0.0
    %808 = vmatpush1.xpose.msra.mxu0 0.0
    %809 = vmatprep.subr.mxu0 0.0
    %810 = vmatpush1.xpose.msra.mxu0 0.0
    %811 = vmatprep.subr.mxu0 0.0
    %812 = vmatpush1.xpose.msra.mxu0 0.0
    %813 = vmatprep.subr.mxu0 0.0
    %814 = vmatpush1.xpose.msra.mxu0 0.0
    %815 = vmatprep.subr.mxu0 0.0
    %816 = vmatpush1.xpose.msra.mxu0 0.0
    %817 = vmatprep.subr.mxu0 0.0
    %818 = vmatpush1.xpose.msra.mxu0 0.0
    %819 = vmatprep.subr.mxu0 0.0
    %820 = vmatpush1.xpose.msra.mxu0 0.0
    %821 = vmatprep.subr.mxu0 0.0
    %822 = vmatpush1.xpose.msra.mxu0 0.0
    %823 = vmatprep.subr.mxu0 0.0
    %824 = vmatpush1.xpose.msra.mxu0 0.0
    %825 = vmatprep.subr.mxu0 0.0
    %826 = vmatpush1.xpose.msra.mxu0 0.0
    %827 = vmatprep.mubr.f32.mxu0 0.0
    %828 = vmatmul.mubr.f32.gmra.mrb[0].mxu0 %v743
    %v829 = vpop.f32.mrb[0].mxu0
    %v830 = vadd.f32 %v226, %v829
    %v831 = vpop.f32.mrb[0].mxu0
    %832 = vmatprep.mubr.f32.mxu0 0.0
    %833 = vmatmul.mubr.f32.gmra.mrb[0].mxu0 %v745
    %v834 = vpop.f32.mrb[0].mxu0
    %v835 = vadd.f32 %v227, %v834
    %v836 = vpop.f32.mrb[0].mxu0
    %837 = vmatprep.mubr.f32.mxu0 0.0
    %838 = vmatmul.mubr.f32.gmra.mrb[0].mxu0 %v747
    %v839 = vpop.f32.mrb[0].mxu0
    %v840 = vadd.f32 %v228, %v839
    %v841 = vpop.f32.mrb[0].mxu0
    %842 = vmatprep.mubr.f32.mxu0 0.0
    %843 = vmatmul.mubr.f32.gmra.mrb[0].mxu0 %v749
    %v844 = vpop.f32.mrb[0].mxu0
    %v845 = vadd.f32 %v229, %v844
    %v846 = vpop.f32.mrb[0].mxu0
    %847 = vmatprep.mubr.f32.mxu0 0.0
    %848 = vmatmul.mubr.f32.gmra.mrb[0].mxu0 %v751
    %v849 = vpop.f32.mrb[0].mxu0
    %v850 = vadd.f32 %v230, %v849
    %v851 = vpop.f32.mrb[0].mxu0
    %852 = vdwg.mxu0
    %v853 = vsel %vm591, %v830, -inf
    %854 = vmax.xlane.f32.xlu0 %v853
    %v855 = vpop.xlane.xlu0 %854
    %v856 = vsel %vm591, %v835, -inf
    %857 = vmax.xlane.f32.xlu0 %v856
    %v858 = vpop.xlane.xlu0 %857
    %v859 = vsel %vm591, %v840, -inf
    %860 = vmax.xlane.f32.xlu0 %v859
    %v861 = vpop.xlane.xlu0 %860
    %v862 = vsel %vm591, %v845, -inf
    %863 = vmax.xlane.f32.xlu0 %v862
    %v864 = vpop.xlane.xlu0 %863
    %v865 = vsel %vm604, %v850, -inf
    %866 = vmax.xlane.f32.xlu0 %v865
    %v867 = vpop.xlane.xlu0 %866
    %v868 = vsub.f32 %v830, %v855
    %v869 = vsub.f32 %v835, %v858
    %v870 = vsub.f32 %v840, %v861
    %v871 = vsub.f32 %v845, %v864
    %v872 = vsub.f32 %v850, %v867
    %v873 = vmul.f32 %v868, 1.442695
    %v874 = vpow.pop %v873
    %v875 = vmul.f32 %v869, 1.442695
    %v876 = vpow.pop %v875
    %v877 = vmul.f32 %v870, 1.442695
    %v878 = vpow.pop %v877
    %v879 = vmul.f32 %v871, 1.442695
    %v880 = vpow.pop %v879
    %v881 = vmul.f32 %v872, 1.442695
    %v882 = vpow.pop %v881
    %v883 = vsel %vm591, %v874, 0.0
    %884 = vadd.xlane.f32.xlu0 %v883
    %v885 = vpop.xlane.xlu0 %884
    %v886 = vsel %vm591, %v876, 0.0
    %887 = vadd.xlane.f32.xlu0 %v886
    %v888 = vpop.xlane.xlu0 %887
    %v889 = vsel %vm591, %v878, 0.0
    %890 = vadd.xlane.f32.xlu0 %v889
    %v891 = vpop.xlane.xlu0 %890
    %v892 = vsel %vm591, %v880, 0.0
    %893 = vadd.xlane.f32.xlu0 %v892
    %v894 = vpop.xlane.xlu0 %893
    %v895 = vsel %vm604, %v882, 0.0
    %896 = vadd.xlane.f32.xlu0 %v895
    %v897 = vpop.xlane.xlu0 %896
    %v898 = vrcp.pop %v885
    %v899 = vrcp.pop %v888
    %v900 = vrcp.pop %v891
    %v901 = vrcp.pop %v894
    %v902 = vrcp.pop %v897
    %v903 = vmul.f32 %v874, %v898
    %v904 = vmul.f32 %v876, %v899
    %v905 = vmul.f32 %v878, %v900
    %v906 = vmul.f32 %v880, %v901
    %v907 = vmul.f32 %v882, %v902
    %v908 = vpack.c.bf16 %v904, %v903
    %v909 = vpack.c.bf16 %v906, %v905
    %v910 = vpack.c.bf16 %v907, %v907
    %914 = vrot.lane.b32.xlu0 %v651, 96
    %v915 = vpop.permute.xlu0 %914
    %916 = vrot.lane.b32.xlu0 %v652, 96
    %v917 = vpop.permute.xlu0 %916
    %918 = vrot.lane.b32.xlu0 %v653, 96
    %v919 = vpop.permute.xlu0 %918
    %v923 = vsel %vm591, %v908, 0
    %v926 = vsel %vm591, %v909, 0
    %v929 = vsel %vm591, %v910, 0
    %v932 = vsel %vm663, %v919, 0
    %934 = vmatprep.subr.bf16.mxu0 0
    %935 = vmatpush1.bf16.msra.mxu0 %v915
    %936 = vmatprep.subr.bf16.mxu0 0
    %937 = vmatpush1.bf16.msra.mxu0 %v917
    %938 = vmatprep.subr.bf16.mxu0 0
    %939 = vmatpush1.bf16.msra.mxu0 %v932
    %940 = vmatprep.subr.bf16.mxu0 0
    %941 = vmatpush1.bf16.msra.mxu0 0
    %942 = vmatprep.subr.bf16.mxu0 0
    %943 = vmatpush1.bf16.msra.mxu0 0
    %944 = vmatprep.subr.bf16.mxu0 0
    %945 = vmatpush1.bf16.msra.mxu0 0
    %946 = vmatprep.subr.bf16.mxu0 0
    %947 = vmatpush1.bf16.msra.mxu0 0
    %948 = vmatprep.subr.bf16.mxu0 0
    %949 = vmatpush1.bf16.msra.mxu0 0
    %950 = vmatprep.subr.bf16.mxu0 0
    %951 = vmatpush1.bf16.msra.mxu0 0
    %952 = vmatprep.subr.bf16.mxu0 0
    %953 = vmatpush1.bf16.msra.mxu0 0
    %954 = vmatprep.subr.bf16.mxu0 0
    %955 = vmatpush1.bf16.msra.mxu0 0
    %956 = vmatprep.subr.bf16.mxu0 0
    %957 = vmatpush1.bf16.msra.mxu0 0
    %958 = vmatprep.subr.bf16.mxu0 0
    %959 = vmatpush1.bf16.msra.mxu0 0
    %960 = vmatprep.subr.bf16.mxu0 0
    %961 = vmatpush1.bf16.msra.mxu0 0
    %962 = vmatprep.subr.bf16.mxu0 0
    %963 = vmatpush1.bf16.msra.mxu0 0
    %964 = vmatprep.subr.bf16.mxu0 0
    %965 = vmatpush1.bf16.msra.mxu0 0
    %966 = vmatprep.mubr.bf16.mxu0 0
    %967 = vmatmul.mubr.bf16.gmra.mrb[0].mxu0 %v923
    %v968 = vpop.f32.mrb[0].mxu0
    %v969 = vadd.f32 0.0, %v968
    %v970 = vpop.f32.mrb[0].mxu0
    %v971 = vpop.f32.mrb[0].mxu0
    %v972 = vadd.f32 0.0, %v971
    %v973 = vpop.f32.mrb[0].mxu0
    %974 = vmatprep.mubr.bf16.mxu0 0
    %975 = vmatmul.mubr.bf16.gmra.mrb[0].mxu0 %v926
    %v976 = vpop.f32.mrb[0].mxu0
    %v977 = vadd.f32 0.0, %v976
    %v978 = vpop.f32.mrb[0].mxu0
    %v979 = vpop.f32.mrb[0].mxu0
    %v980 = vadd.f32 0.0, %v979
    %v981 = vpop.f32.mrb[0].mxu0
    %982 = vmatprep.mubr.bf16.mxu0 0
    %983 = vmatmul.mubr.bf16.gmra.mrb[0].mxu0 %v929
    %v984 = vpop.f32.mrb[0].mxu0
    %v985 = vadd.f32 0.0, %v984
    %v986 = vpop.f32.mrb[0].mxu0
    %v987 = vpop.f32.mrb[0].mxu0
    %v988 = vpop.f32.mrb[0].mxu0
    %989 = vdwg.mxu0
    %995 = vrot.lane.b32.xlu0 %v969, 32
    %v996 = vpop.permute.xlu0 %995
    %997 = vrot.lane.b32.xlu0 %v972, 32
    %v998 = vpop.permute.xlu0 %997
    %999 = vrot.lane.b32.xlu0 %v977, 32
    %v1000 = vpop.permute.xlu0 %999
    %1001 = vrot.lane.b32.xlu0 %v980, 32
    %v1002 = vpop.permute.xlu0 %1001
    %1003 = vrot.lane.b32.xlu0 %v985, 32
    %v1004 = vpop.permute.xlu0 %1003
    %v1010 = vsel %vm475, %v702, %v996
    %v1011 = vsel %vm475, %v705, %v998
    %v1012 = vsel %vm475, %v710, %v1000
    %v1013 = vsel %vm475, %v713, %v1002
    %v1014 = vsel %vm475, %v718, %v1004
    %v1015 = vpack.c.bf16 %v1011, %v1010
    %v1016 = vpack.c.bf16 %v1013, %v1012
    %v1017 = vpack.c.bf16 %v1014, %v1014
    %v1018 = vld [vmem:[%s8] sm:$0xf]
    %v1019 = vld [vmem:[%s8 + $0x4] sm:$0xf]
    %v1020 = vld [vmem:[%s8 + $0x8] sm:$0xf]
    %v1021 = vld [vmem:[%s8 + $0xc] sm:$0xf]
    %v1022 = vld [vmem:[%s8 + $0x10] sm:$0xf]
    %v1023 = vld [vmem:[%s8 + $0x14] sm:$0xf]
    %v1024 = vld [vmem:[%s8 + $0x18] sm:$0xf]
    %v1025 = vld [vmem:[%s8 + $0x1c] sm:$0xf]
    %v1034 = vunpack.c.l.b16 %v1018
    %v1035 = vunpack.c.l.b16 %v1019
    %v1036 = vunpack.c.l.b16 %v1020
    %v1037 = vunpack.c.l.b16 %v1021
    %v1038 = vunpack.c.l.b16 %v1022
    %v1039 = vunpack.c.l.b16 %v1023
    %v1040 = vunpack.c.l.b16 %v1024
    %v1041 = vunpack.c.l.b16 %v1025
    %v1042 = vpack.c.b16 %v1035, %v1034
    %v1043 = vpack.c.b16 %v1037, %v1036
    %v1044 = vpack.c.b16 %v1039, %v1038
    %v1045 = vpack.c.b16 %v1041, %v1040
    %v1051 = vsel %vm151, %v1015, 0
    %v1054 = vsel %vm151, %v1016, 0
    %v1057 = vsel %vm151, %v1017, 0
    %1059 = vmatprep.subr.bf16.mxu0 0
    %1060 = vmatpush1.bf16.msra.mxu0 %v1042
    %1061 = vmatprep.subr.bf16.mxu0 0
    %1062 = vmatpush1.bf16.msra.mxu0 %v1043
    %1063 = vmatprep.subr.bf16.mxu0 0
    %1064 = vmatpush1.bf16.msra.mxu0 %v1044
    %1065 = vmatprep.subr.bf16.mxu0 0
    %1066 = vmatpush1.bf16.msra.mxu0 %v1045
    %1067 = vmatprep.subr.bf16.mxu0 0
    %1068 = vmatpush1.bf16.msra.mxu0 0
    %1069 = vmatprep.subr.bf16.mxu0 0
    %1070 = vmatpush1.bf16.msra.mxu0 0
    %1071 = vmatprep.subr.bf16.mxu0 0
    %1072 = vmatpush1.bf16.msra.mxu0 0
    %1073 = vmatprep.subr.bf16.mxu0 0
    %1074 = vmatpush1.bf16.msra.mxu0 0
    %1075 = vmatprep.subr.bf16.mxu0 0
    %1076 = vmatpush1.bf16.msra.mxu0 0
    %1077 = vmatprep.subr.bf16.mxu0 0
    %1078 = vmatpush1.bf16.msra.mxu0 0
    %1079 = vmatprep.subr.bf16.mxu0 0
    %1080 = vmatpush1.bf16.msra.mxu0 0
    %1081 = vmatprep.subr.bf16.mxu0 0
    %1082 = vmatpush1.bf16.msra.mxu0 0
    %1083 = vmatprep.subr.bf16.mxu0 0
    %1084 = vmatpush1.bf16.msra.mxu0 0
    %1085 = vmatprep.subr.bf16.mxu0 0
    %1086 = vmatpush1.bf16.msra.mxu0 0
    %1087 = vmatprep.subr.bf16.mxu0 0
    %1088 = vmatpush1.bf16.msra.mxu0 0
    %1089 = vmatprep.subr.bf16.mxu0 0
    %1090 = vmatpush1.bf16.msra.mxu0 0
    %1091 = vmatprep.mubr.bf16.mxu0 0
    %1092 = vmatmul.mubr.bf16.gmra.mrb[0].mxu0 %v1051
    %v1093 = vpop.f32.mrb[0].mxu0
    %v1094 = vadd.f32 0.0, %v1093
    %v1095 = vpop.f32.mrb[0].mxu0
    %v1096 = vpop.f32.mrb[0].mxu0
    %v1097 = vadd.f32 0.0, %v1096
    %v1098 = vpop.f32.mrb[0].mxu0
    %1099 = vmatprep.mubr.bf16.mxu0 0
    %1100 = vmatmul.mubr.bf16.gmra.mrb[0].mxu0 %v1054
    %v1101 = vpop.f32.mrb[0].mxu0
    %v1102 = vadd.f32 0.0, %v1101
    %v1103 = vpop.f32.mrb[0].mxu0
    %v1104 = vpop.f32.mrb[0].mxu0
    %v1105 = vadd.f32 0.0, %v1104
    %v1106 = vpop.f32.mrb[0].mxu0
    %1107 = vmatprep.mubr.bf16.mxu0 0
    %1108 = vmatmul.mubr.bf16.gmra.mrb[0].mxu0 %v1057
    %v1109 = vpop.f32.mrb[0].mxu0
    %v1110 = vadd.f32 0.0, %v1109
    %v1111 = vpop.f32.mrb[0].mxu0
    %v1112 = vpop.f32.mrb[0].mxu0
    %v1113 = vpop.f32.mrb[0].mxu0
    %1114 = vdwg.mxu0
    %v1115 = vadd.f32 %v221, %v1094
    %v1116 = vadd.f32 %v222, %v1097
    %v1117 = vadd.f32 %v223, %v1102
    %v1118 = vadd.f32 %v224, %v1105
    %v1119 = vadd.f32 %v225, %v1110
    %v1120 = vlaneseq
    %v1121 = vshrl.u32 %v1120, 7
    %v1122 = vsub.s32 0, %v1121
    %v1123 = vrot.slane %v235, %v1122
    %v1124 = vadd.f32 %v1115, %v1123
    %v1125 = vadd.f32 %v1116, %v1123
    %v1126 = vadd.f32 %v1117, %v1123
    %v1127 = vadd.f32 %v1118, %v1123
    %v1128 = vadd.f32 %v1119, %v1123
    %v1129 = vsel %vm151, %v1124, 0.0
    %1130 = vadd.xlane.f32.xlu0 %v1129
    %v1131 = vpop.xlane.xlu0 %1130
    %v1132 = vsel %vm151, %v1125, 0.0
    %1133 = vadd.xlane.f32.xlu0 %v1132
    %v1134 = vpop.xlane.xlu0 %1133
    %v1135 = vsel %vm151, %v1126, 0.0
    %1136 = vadd.xlane.f32.xlu0 %v1135
    %v1137 = vpop.xlane.xlu0 %1136
    %v1138 = vsel %vm151, %v1127, 0.0
    %1139 = vadd.xlane.f32.xlu0 %v1138
    %v1140 = vpop.xlane.xlu0 %1139
    %v1141 = vsel %vm249, %v1128, 0.0
    %1142 = vadd.xlane.f32.xlu0 %v1141
    %v1143 = vpop.xlane.xlu0 %1142
    %v1144 = vmul.f32 %v1131, %v253
    %v1145 = vmul.f32 %v1134, %v253
    %v1146 = vmul.f32 %v1137, %v253
    %v1147 = vmul.f32 %v1140, %v253
    %v1148 = vmul.f32 %v1143, %v253
    %v1149 = vsub.f32 %v1124, %v1144
    %v1150 = vsub.f32 %v1125, %v1145
    %v1151 = vsub.f32 %v1126, %v1146
    %v1152 = vsub.f32 %v1127, %v1147
    %v1153 = vsub.f32 %v1128, %v1148
    %v1154 = vmul.f32 %v1149, %v1149
    %v1155 = vmul.f32 %v1150, %v1150
    %v1156 = vmul.f32 %v1151, %v1151
    %v1157 = vmul.f32 %v1152, %v1152
    %v1158 = vmul.f32 %v1153, %v1153
    %v1159 = vsel %vm151, %v1154, 0.0
    %1160 = vadd.xlane.f32.xlu0 %v1159
    %v1161 = vpop.xlane.xlu0 %1160
    %v1162 = vsel %vm151, %v1155, 0.0
    %1163 = vadd.xlane.f32.xlu0 %v1162
    %v1164 = vpop.xlane.xlu0 %1163
    %v1165 = vsel %vm151, %v1156, 0.0
    %1166 = vadd.xlane.f32.xlu0 %v1165
    %v1167 = vpop.xlane.xlu0 %1166
    %v1168 = vsel %vm151, %v1157, 0.0
    %1169 = vadd.xlane.f32.xlu0 %v1168
    %v1170 = vpop.xlane.xlu0 %1169
    %v1171 = vsel %vm249, %v1158, 0.0
    %1172 = vadd.xlane.f32.xlu0 %v1171
    %v1173 = vpop.xlane.xlu0 %1172
    %v1174 = vmul.f32 %v1161, %v253
    %v1175 = vmul.f32 %v1164, %v253
    %v1176 = vmul.f32 %v1167, %v253
    %v1177 = vmul.f32 %v1170, %v253
    %v1178 = vmul.f32 %v1173, %v253
    %v1179 = vadd.f32 %v1174, 1e-06
    %v1180 = vadd.f32 %v1175, 1e-06
    %v1181 = vadd.f32 %v1176, 1e-06
    %v1182 = vadd.f32 %v1177, 1e-06
    %v1183 = vadd.f32 %v1178, 1e-06
    %v1184 = vrsqrt.pop %v1179
    %v1185 = vrsqrt.pop %v1180
    %v1186 = vrsqrt.pop %v1181
    %v1187 = vrsqrt.pop %v1182
    %v1188 = vrsqrt.pop %v1183
    %v1189 = vmul.f32 %v1149, %v1184
    %v1190 = vmul.f32 %v1150, %v1185
    %v1191 = vmul.f32 %v1151, %v1186
    %v1192 = vmul.f32 %v1152, %v1187
    %v1193 = vmul.f32 %v1153, %v1188
    %v1194 = vlaneseq
    %v1195 = vshrl.u32 %v1194, 7
    %v1196 = vsub.s32 0, %v1195
    %v1197 = vrot.slane %v233, %v1196
    %v1198 = vmul.f32 %v1189, %v1197
    %v1199 = vmul.f32 %v1190, %v1197
    %v1200 = vmul.f32 %v1191, %v1197
    %v1201 = vmul.f32 %v1192, %v1197
    %v1202 = vmul.f32 %v1193, %v1197
    %v1203 = vlaneseq
    %v1204 = vshrl.u32 %v1203, 7
    %v1205 = vsub.s32 0, %v1204
    %v1206 = vrot.slane %v234, %v1205
    %v1207 = vadd.f32 %v1198, %v1206
    %v1208 = vadd.f32 %v1199, %v1206
    %v1209 = vadd.f32 %v1200, %v1206
    %v1210 = vadd.f32 %v1201, %v1206
    %v1211 = vadd.f32 %v1202, %v1206
    %v1212 = vpack.c.bf16 %v1208, %v1207
    %v1213 = vpack.c.bf16 %v1210, %v1209
    %v1214 = vpack.c.bf16 %v1211, %v1211
    %v1215 = vld [vmem:[%s9] sm:$0xff]
    %v1216 = vld [vmem:[%s9 + $0x8] sm:$0xff]
    %v1217 = vld [vmem:[%s9 + $0x10] sm:$0xff]
    %v1218 = vld [vmem:[%s9 + $0x18] sm:$0xff]
    %v1219 = vld [vmem:[%s9 + $0x20] sm:$0xff]
    %v1220 = vld [vmem:[%s9 + $0x28] sm:$0xff]
    %v1221 = vld [vmem:[%s9 + $0x30] sm:$0xff]
    %v1222 = vld [vmem:[%s9 + $0x38] sm:$0xff]
    %v1223 = vld [vmem:[%s10] sm:$0x3]
    %v1225 = vlaneseq
    %v1226 = vshrl.u32 %v1225, 7
    %v1227 = vsub.s32 0, %v1226
    %v1228 = vrot.slane %v1223, %v1227
    %v1229 = vlaneseq
    %v1230 = vshrl.u32 %v1229, 7
    %v1231 = vsub.s32 1, %v1230
    %v1232 = vrot.slane %v1223, %v1231
    %v1243 = vunpack.c.l.b16 %v1215
    %v1244 = vunpack.c.h.b16 %v1215
    %v1245 = vunpack.c.l.b16 %v1216
    %v1246 = vunpack.c.h.b16 %v1216
    %v1247 = vunpack.c.l.b16 %v1217
    %v1248 = vunpack.c.h.b16 %v1217
    %v1249 = vunpack.c.l.b16 %v1218
    %v1250 = vunpack.c.h.b16 %v1218
    %v1251 = vunpack.c.l.b16 %v1219
    %v1252 = vunpack.c.h.b16 %v1219
    %v1253 = vunpack.c.l.b16 %v1220
    %v1254 = vunpack.c.h.b16 %v1220
    %v1255 = vunpack.c.l.b16 %v1221
    %v1256 = vunpack.c.h.b16 %v1221
    %v1257 = vunpack.c.l.b16 %v1222
    %v1258 = vunpack.c.h.b16 %v1222
    %v1259 = vpack.c.b16 %v1245, %v1243
    %v1260 = vpack.c.b16 %v1246, %v1244
    %v1261 = vpack.c.b16 %v1249, %v1247
    %v1262 = vpack.c.b16 %v1250, %v1248
    %v1263 = vpack.c.b16 %v1253, %v1251
    %v1264 = vpack.c.b16 %v1254, %v1252
    %v1265 = vpack.c.b16 %v1257, %v1255
    %v1266 = vpack.c.b16 %v1258, %v1256
    %v1276 = vsel %vm151, %v1212, 0
    %v1279 = vsel %vm151, %v1213, 0
    %v1282 = vsel %vm151, %v1214, 0
    %1284 = vmatprep.subr.bf16.mxu0 %v1260
    %1285 = vmatpush1.bf16.msra.mxu0 %v1259
    %1286 = vmatprep.subr.bf16.mxu0 %v1262
    %1287 = vmatpush1.bf16.msra.mxu0 %v1261
    %1288 = vmatprep.subr.bf16.mxu0 %v1264
    %1289 = vmatpush1.bf16.msra.mxu0 %v1263
    %1290 = vmatprep.subr.bf16.mxu0 %v1266
    %1291 = vmatpush1.bf16.msra.mxu0 %v1265
    %1292 = vmatprep.subr.bf16.mxu0 0
    %1293 = vmatpush1.bf16.msra.mxu0 0
    %1294 = vmatprep.subr.bf16.mxu0 0
    %1295 = vmatpush1.bf16.msra.mxu0 0
    %1296 = vmatprep.subr.bf16.mxu0 0
    %1297 = vmatpush1.bf16.msra.mxu0 0
    %1298 = vmatprep.subr.bf16.mxu0 0
    %1299 = vmatpush1.bf16.msra.mxu0 0
    %1300 = vmatprep.subr.bf16.mxu0 0
    %1301 = vmatpush1.bf16.msra.mxu0 0
    %1302 = vmatprep.subr.bf16.mxu0 0
    %1303 = vmatpush1.bf16.msra.mxu0 0
    %1304 = vmatprep.subr.bf16.mxu0 0
    %1305 = vmatpush1.bf16.msra.mxu0 0
    %1306 = vmatprep.subr.bf16.mxu0 0
    %1307 = vmatpush1.bf16.msra.mxu0 0
    %1308 = vmatprep.subr.bf16.mxu0 0
    %1309 = vmatpush1.bf16.msra.mxu0 0
    %1310 = vmatprep.subr.bf16.mxu0 0
    %1311 = vmatpush1.bf16.msra.mxu0 0
    %1312 = vmatprep.subr.bf16.mxu0 0
    %1313 = vmatpush1.bf16.msra.mxu0 0
    %1314 = vmatprep.subr.bf16.mxu0 0
    %1315 = vmatpush1.bf16.msra.mxu0 0
    %1316 = vmatprep.mubr.bf16.mxu0 0
    %1317 = vmatmul.mubr.bf16.gmra.mrb[0].mxu0 %v1276
    %v1318 = vpop.f32.mrb[0].mxu0
    %v1319 = vadd.f32 %v1228, %v1318
    %v1320 = vpop.f32.mrb[0].mxu0
    %v1321 = vadd.f32 %v1232, %v1320
    %v1322 = vpop.f32.mrb[0].mxu0
    %v1323 = vadd.f32 %v1228, %v1322
    %v1324 = vpop.f32.mrb[0].mxu0
    %v1325 = vadd.f32 %v1232, %v1324
    %1326 = vmatprep.mubr.bf16.mxu0 0
    %1327 = vmatmul.mubr.bf16.gmra.mrb[0].mxu0 %v1279
    %v1328 = vpop.f32.mrb[0].mxu0
    %v1329 = vadd.f32 %v1228, %v1328
    %v1330 = vpop.f32.mrb[0].mxu0
    %v1331 = vadd.f32 %v1232, %v1330
    %v1332 = vpop.f32.mrb[0].mxu0
    %v1333 = vadd.f32 %v1228, %v1332
    %v1334 = vpop.f32.mrb[0].mxu0
    %v1335 = vadd.f32 %v1232, %v1334
    %1336 = vmatprep.mubr.bf16.mxu0 0
    %1337 = vmatmul.mubr.bf16.gmra.mrb[0].mxu0 %v1282
    %v1338 = vpop.f32.mrb[0].mxu0
    %v1339 = vadd.f32 %v1228, %v1338
    %v1340 = vpop.f32.mrb[0].mxu0
    %v1341 = vadd.f32 %v1232, %v1340
    %v1342 = vpop.f32.mrb[0].mxu0
    %v1343 = vpop.f32.mrb[0].mxu0
    %1344 = vdwg.mxu0
    %v1345 = vmul.f32 %v1319, 0.5
    %v1346 = vmul.f32 %v1321, 0.5
    %v1347 = vmul.f32 %v1323, 0.5
    %v1348 = vmul.f32 %v1325, 0.5
    %v1349 = vmul.f32 %v1329, 0.5
    %v1350 = vmul.f32 %v1331, 0.5
    %v1351 = vmul.f32 %v1333, 0.5
    %v1352 = vmul.f32 %v1335, 0.5
    %v1353 = vmul.f32 %v1339, 0.5
    %v1354 = vmul.f32 %v1341, 0.5
    %v1355 = vmul.f32 %v1319, 0.70710677
    %v1356 = vmul.f32 %v1321, 0.70710677
    %v1357 = vmul.f32 %v1323, 0.70710677
    %v1358 = vmul.f32 %v1325, 0.70710677
    %v1359 = vmul.f32 %v1329, 0.70710677
    %v1360 = vmul.f32 %v1331, 0.70710677
    %v1361 = vmul.f32 %v1333, 0.70710677
    %v1362 = vmul.f32 %v1335, 0.70710677
    %v1363 = vmul.f32 %v1339, 0.70710677
    %v1364 = vmul.f32 %v1341, 0.70710677
    %v1365 = vand.u32 2147483647, %v1355
    %v1366 = vand.u32 2147483647, %v1356
    %v1367 = vand.u32 2147483647, %v1357
    %v1368 = vand.u32 2147483647, %v1358
    %v1369 = vand.u32 2147483647, %v1359
    %v1370 = vand.u32 2147483647, %v1360
    %v1371 = vand.u32 2147483647, %v1361
    %v1372 = vand.u32 2147483647, %v1362
    %v1373 = vand.u32 2147483647, %v1363
    %v1374 = vand.u32 2147483647, %v1364
    %v1375 = vmul.f32 %v1365, 0.3275911
    %v1376 = vmul.f32 %v1366, 0.3275911
    %v1377 = vmul.f32 %v1367, 0.3275911
    %v1378 = vmul.f32 %v1368, 0.3275911
    %v1379 = vmul.f32 %v1369, 0.3275911
    %v1380 = vmul.f32 %v1370, 0.3275911
    %v1381 = vmul.f32 %v1371, 0.3275911
    %v1382 = vmul.f32 %v1372, 0.3275911
    %v1383 = vmul.f32 %v1373, 0.3275911
    %v1384 = vmul.f32 %v1374, 0.3275911
    %v1385 = vadd.f32 %v1375, 1.0
    %v1386 = vadd.f32 %v1376, 1.0
    %v1387 = vadd.f32 %v1377, 1.0
    %v1388 = vadd.f32 %v1378, 1.0
    %v1389 = vadd.f32 %v1379, 1.0
    %v1390 = vadd.f32 %v1380, 1.0
    %v1391 = vadd.f32 %v1381, 1.0
    %v1392 = vadd.f32 %v1382, 1.0
    %v1393 = vadd.f32 %v1383, 1.0
    %v1394 = vadd.f32 %v1384, 1.0
    %v1395 = vrcp.pop %v1385
    %v1396 = vmul.f32 1.0, %v1395
    %v1397 = vrcp.pop %v1386
    %v1398 = vmul.f32 1.0, %v1397
    %v1399 = vrcp.pop %v1387
    %v1400 = vmul.f32 1.0, %v1399
    %v1401 = vrcp.pop %v1388
    %v1402 = vmul.f32 1.0, %v1401
    %v1403 = vrcp.pop %v1389
    %v1404 = vmul.f32 1.0, %v1403
    %v1405 = vrcp.pop %v1390
    %v1406 = vmul.f32 1.0, %v1405
    %v1407 = vrcp.pop %v1391
    %v1408 = vmul.f32 1.0, %v1407
    %v1409 = vrcp.pop %v1392
    %v1410 = vmul.f32 1.0, %v1409
    %v1411 = vrcp.pop %v1393
    %v1412 = vmul.f32 1.0, %v1411
    %v1413 = vrcp.pop %v1394
    %v1414 = vmul.f32 1.0, %v1413
    %v1415 = vmul.f32 %v1396, 1.0614054
    %v1416 = vmul.f32 %v1398, 1.0614054
    %v1417 = vmul.f32 %v1400, 1.0614054
    %v1418 = vmul.f32 %v1402, 1.0614054
    %v1419 = vmul.f32 %v1404, 1.0614054
    %v1420 = vmul.f32 %v1406, 1.0614054
    %v1421 = vmul.f32 %v1408, 1.0614054
    %v1422 = vmul.f32 %v1410, 1.0614054
    %v1423 = vmul.f32 %v1412, 1.0614054
    %v1424 = vmul.f32 %v1414, 1.0614054
    %v1425 = vadd.f32 %v1415, -1.4531521
    %v1426 = vadd.f32 %v1416, -1.4531521
    %v1427 = vadd.f32 %v1417, -1.4531521
    %v1428 = vadd.f32 %v1418, -1.4531521
    %v1429 = vadd.f32 %v1419, -1.4531521
    %v1430 = vadd.f32 %v1420, -1.4531521
    %v1431 = vadd.f32 %v1421, -1.4531521
    %v1432 = vadd.f32 %v1422, -1.4531521
    %v1433 = vadd.f32 %v1423, -1.4531521
    %v1434 = vadd.f32 %v1424, -1.4531521
    %v1435 = vmul.f32 %v1425, %v1396
    %v1436 = vmul.f32 %v1426, %v1398
    %v1437 = vmul.f32 %v1427, %v1400
    %v1438 = vmul.f32 %v1428, %v1402
    %v1439 = vmul.f32 %v1429, %v1404
    %v1440 = vmul.f32 %v1430, %v1406
    %v1441 = vmul.f32 %v1431, %v1408
    %v1442 = vmul.f32 %v1432, %v1410
    %v1443 = vmul.f32 %v1433, %v1412
    %v1444 = vmul.f32 %v1434, %v1414
    %v1445 = vadd.f32 %v1435, 1.4214138
    %v1446 = vadd.f32 %v1436, 1.4214138
    %v1447 = vadd.f32 %v1437, 1.4214138
    %v1448 = vadd.f32 %v1438, 1.4214138
    %v1449 = vadd.f32 %v1439, 1.4214138
    %v1450 = vadd.f32 %v1440, 1.4214138
    %v1451 = vadd.f32 %v1441, 1.4214138
    %v1452 = vadd.f32 %v1442, 1.4214138
    %v1453 = vadd.f32 %v1443, 1.4214138
    %v1454 = vadd.f32 %v1444, 1.4214138
    %v1455 = vmul.f32 %v1445, %v1396
    %v1456 = vmul.f32 %v1446, %v1398
    %v1457 = vmul.f32 %v1447, %v1400
    %v1458 = vmul.f32 %v1448, %v1402
    %v1459 = vmul.f32 %v1449, %v1404
    %v1460 = vmul.f32 %v1450, %v1406
    %v1461 = vmul.f32 %v1451, %v1408
    %v1462 = vmul.f32 %v1452, %v1410
    %v1463 = vmul.f32 %v1453, %v1412
    %v1464 = vmul.f32 %v1454, %v1414
    %v1465 = vadd.f32 %v1455, -0.28449672
    %v1466 = vadd.f32 %v1456, -0.28449672
    %v1467 = vadd.f32 %v1457, -0.28449672
    %v1468 = vadd.f32 %v1458, -0.28449672
    %v1469 = vadd.f32 %v1459, -0.28449672
    %v1470 = vadd.f32 %v1460, -0.28449672
    %v1471 = vadd.f32 %v1461, -0.28449672
    %v1472 = vadd.f32 %v1462, -0.28449672
    %v1473 = vadd.f32 %v1463, -0.28449672
    %v1474 = vadd.f32 %v1464, -0.28449672
    %v1475 = vmul.f32 %v1465, %v1396
    %v1476 = vmul.f32 %v1466, %v1398
    %v1477 = vmul.f32 %v1467, %v1400
    %v1478 = vmul.f32 %v1468, %v1402
    %v1479 = vmul.f32 %v1469, %v1404
    %v1480 = vmul.f32 %v1470, %v1406
    %v1481 = vmul.f32 %v1471, %v1408
    %v1482 = vmul.f32 %v1472, %v1410
    %v1483 = vmul.f32 %v1473, %v1412
    %v1484 = vmul.f32 %v1474, %v1414
    %v1485 = vadd.f32 %v1475, 0.2548296
    %v1486 = vadd.f32 %v1476, 0.2548296
    %v1487 = vadd.f32 %v1477, 0.2548296
    %v1488 = vadd.f32 %v1478, 0.2548296
    %v1489 = vadd.f32 %v1479, 0.2548296
    %v1490 = vadd.f32 %v1480, 0.2548296
    %v1491 = vadd.f32 %v1481, 0.2548296
    %v1492 = vadd.f32 %v1482, 0.2548296
    %v1493 = vadd.f32 %v1483, 0.2548296
    %v1494 = vadd.f32 %v1484, 0.2548296
    %v1495 = vmul.f32 %v1485, %v1396
    %v1496 = vmul.f32 %v1486, %v1398
    %v1497 = vmul.f32 %v1487, %v1400
    %v1498 = vmul.f32 %v1488, %v1402
    %v1499 = vmul.f32 %v1489, %v1404
    %v1500 = vmul.f32 %v1490, %v1406
    %v1501 = vmul.f32 %v1491, %v1408
    %v1502 = vmul.f32 %v1492, %v1410
    %v1503 = vmul.f32 %v1493, %v1412
    %v1504 = vmul.f32 %v1494, %v1414
    %v1505 = vsub.f32 0.0, %v1365
    %v1506 = vsub.f32 0.0, %v1366
    %v1507 = vsub.f32 0.0, %v1367
    %v1508 = vsub.f32 0.0, %v1368
    %v1509 = vsub.f32 0.0, %v1369
    %v1510 = vsub.f32 0.0, %v1370
    %v1511 = vsub.f32 0.0, %v1371
    %v1512 = vsub.f32 0.0, %v1372
    %v1513 = vsub.f32 0.0, %v1373
    %v1514 = vsub.f32 0.0, %v1374
    %v1515 = vmul.f32 %v1505, %v1365
    %v1516 = vmul.f32 %v1506, %v1366
    %v1517 = vmul.f32 %v1507, %v1367
    %v1518 = vmul.f32 %v1508, %v1368
    %v1519 = vmul.f32 %v1509, %v1369
    %v1520 = vmul.f32 %v1510, %v1370
    %v1521 = vmul.f32 %v1511, %v1371
    %v1522 = vmul.f32 %v1512, %v1372
    %v1523 = vmul.f32 %v1513, %v1373
    %v1524 = vmul.f32 %v1514, %v1374
    %v1525 = vmul.f32 %v1515, 1.442695
    %v1526 = vpow.pop %v1525
    %v1527 = vmul.f32 %v1516, 1.442695
    %v1528 = vpow.pop %v1527
    %v1529 = vmul.f32 %v1517, 1.442695
    %v1530 = vpow.pop %v1529
    %v1531 = vmul.f32 %v1518, 1.442695
    %v1532 = vpow.pop %v1531
    %v1533 = vmul.f32 %v1519, 1.442695
    %v1534 = vpow.pop %v1533
    %v1535 = vmul.f32 %v1520, 1.442695
    %v1536 = vpow.pop %v1535
    %v1537 = vmul.f32 %v1521, 1.442695
    %v1538 = vpow.pop %v1537
    %v1539 = vmul.f32 %v1522, 1.442695
    %v1540 = vpow.pop %v1539
    %v1541 = vmul.f32 %v1523, 1.442695
    %v1542 = vpow.pop %v1541
    %v1543 = vmul.f32 %v1524, 1.442695
    %v1544 = vpow.pop %v1543
    %v1545 = vmul.f32 %v1495, %v1526
    %v1546 = vmul.f32 %v1496, %v1528
    %v1547 = vmul.f32 %v1497, %v1530
    %v1548 = vmul.f32 %v1498, %v1532
    %v1549 = vmul.f32 %v1499, %v1534
    %v1550 = vmul.f32 %v1500, %v1536
    %v1551 = vmul.f32 %v1501, %v1538
    %v1552 = vmul.f32 %v1502, %v1540
    %v1553 = vmul.f32 %v1503, %v1542
    %v1554 = vmul.f32 %v1504, %v1544
    %v1555 = vsub.f32 1.0, %v1545
    %v1556 = vsub.f32 1.0, %v1546
    %v1557 = vsub.f32 1.0, %v1547
    %v1558 = vsub.f32 1.0, %v1548
    %v1559 = vsub.f32 1.0, %v1549
    %v1560 = vsub.f32 1.0, %v1550
    %v1561 = vsub.f32 1.0, %v1551
    %v1562 = vsub.f32 1.0, %v1552
    %v1563 = vsub.f32 1.0, %v1553
    %v1564 = vsub.f32 1.0, %v1554
    %vm1565 = vcmp.ge.f32.partialorder %v1355, 0.0
    %vm1566 = vcmp.ge.f32.partialorder %v1356, 0.0
    %vm1567 = vcmp.ge.f32.partialorder %v1357, 0.0
    %vm1568 = vcmp.ge.f32.partialorder %v1358, 0.0
    %vm1569 = vcmp.ge.f32.partialorder %v1359, 0.0
    %vm1570 = vcmp.ge.f32.partialorder %v1360, 0.0
    %vm1571 = vcmp.ge.f32.partialorder %v1361, 0.0
    %vm1572 = vcmp.ge.f32.partialorder %v1362, 0.0
    %vm1573 = vcmp.ge.f32.partialorder %v1363, 0.0
    %vm1574 = vcmp.ge.f32.partialorder %v1364, 0.0
    %v1575 = vsub.f32 0.0, %v1555
    %v1576 = vsub.f32 0.0, %v1556
    %v1577 = vsub.f32 0.0, %v1557
    %v1578 = vsub.f32 0.0, %v1558
    %v1579 = vsub.f32 0.0, %v1559
    %v1580 = vsub.f32 0.0, %v1560
    %v1581 = vsub.f32 0.0, %v1561
    %v1582 = vsub.f32 0.0, %v1562
    %v1583 = vsub.f32 0.0, %v1563
    %v1584 = vsub.f32 0.0, %v1564
    %v1585 = vsel %vm1565, %v1555, %v1575
    %v1586 = vsel %vm1566, %v1556, %v1576
    %v1587 = vsel %vm1567, %v1557, %v1577
    %v1588 = vsel %vm1568, %v1558, %v1578
    %v1589 = vsel %vm1569, %v1559, %v1579
    %v1590 = vsel %vm1570, %v1560, %v1580
    %v1591 = vsel %vm1571, %v1561, %v1581
    %v1592 = vsel %vm1572, %v1562, %v1582
    %v1593 = vsel %vm1573, %v1563, %v1583
    %v1594 = vsel %vm1574, %v1564, %v1584
    %v1595 = vadd.f32 %v1585, 1.0
    %v1596 = vadd.f32 %v1586, 1.0
    %v1597 = vadd.f32 %v1587, 1.0
    %v1598 = vadd.f32 %v1588, 1.0
    %v1599 = vadd.f32 %v1589, 1.0
    %v1600 = vadd.f32 %v1590, 1.0
    %v1601 = vadd.f32 %v1591, 1.0
    %v1602 = vadd.f32 %v1592, 1.0
    %v1603 = vadd.f32 %v1593, 1.0
    %v1604 = vadd.f32 %v1594, 1.0
    %v1605 = vmul.f32 %v1345, %v1595
    %v1606 = vmul.f32 %v1346, %v1596
    %v1607 = vmul.f32 %v1347, %v1597
    %v1608 = vmul.f32 %v1348, %v1598
    %v1609 = vmul.f32 %v1349, %v1599
    %v1610 = vmul.f32 %v1350, %v1600
    %v1611 = vmul.f32 %v1351, %v1601
    %v1612 = vmul.f32 %v1352, %v1602
    %v1613 = vmul.f32 %v1353, %v1603
    %v1614 = vmul.f32 %v1354, %v1604
    %v1615 = vpack.c.bf16 %v1607, %v1605
    %v1616 = vpack.c.bf16 %v1608, %v1606
    %v1617 = vpack.c.bf16 %v1611, %v1609
    %v1618 = vpack.c.bf16 %v1612, %v1610
    %v1619 = vpack.c.bf16 %v1613, %v1613
    %v1620 = vpack.c.bf16 %v1614, %v1614
    %v1621 = vld [vmem:[%s11] sm:$0xf]
    %v1622 = vld [vmem:[%s11 + $0x4] sm:$0xf]
    %v1623 = vld [vmem:[%s11 + $0x8] sm:$0xf]
    %v1624 = vld [vmem:[%s11 + $0xc] sm:$0xf]
    %v1625 = vld [vmem:[%s11 + $0x10] sm:$0xf]
    %v1626 = vld [vmem:[%s11 + $0x14] sm:$0xf]
    %v1627 = vld [vmem:[%s11 + $0x18] sm:$0xf]
    %v1628 = vld [vmem:[%s11 + $0x1c] sm:$0xf]
    %v1629 = vld [vmem:[%s11 + $0x20] sm:$0xf]
    %v1630 = vld [vmem:[%s11 + $0x24] sm:$0xf]
    %v1631 = vld [vmem:[%s11 + $0x28] sm:$0xf]
    %v1632 = vld [vmem:[%s11 + $0x2c] sm:$0xf]
    %v1633 = vld [vmem:[%s11 + $0x30] sm:$0xf]
    %v1634 = vld [vmem:[%s11 + $0x34] sm:$0xf]
    %v1635 = vld [vmem:[%s11 + $0x38] sm:$0xf]
    %v1636 = vld [vmem:[%s11 + $0x3c] sm:$0xf]
    %v1637 = vld [vmem:[%s11 + $0x40] sm:$0xf]
    %v1638 = vld [vmem:[%s11 + $0x44] sm:$0xf]
    %v1639 = vld [vmem:[%s11 + $0x48] sm:$0xf]
    %v1640 = vld [vmem:[%s11 + $0x4c] sm:$0xf]
    %v1641 = vld [vmem:[%s11 + $0x50] sm:$0xf]
    %v1642 = vld [vmem:[%s11 + $0x54] sm:$0xf]
    %v1643 = vld [vmem:[%s11 + $0x58] sm:$0xf]
    %v1644 = vld [vmem:[%s11 + $0x5c] sm:$0xf]
    %v1645 = vld [vmem:[%s11 + $0x60] sm:$0xf]
    %v1646 = vld [vmem:[%s11 + $0x64] sm:$0xf]
    %v1647 = vld [vmem:[%s11 + $0x68] sm:$0xf]
    %v1648 = vld [vmem:[%s11 + $0x6c] sm:$0xf]
    %v1649 = vld [vmem:[%s11 + $0x70] sm:$0xf]
    %v1650 = vld [vmem:[%s11 + $0x74] sm:$0xf]
    %v1651 = vld [vmem:[%s11 + $0x78] sm:$0xf]
    %v1652 = vld [vmem:[%s11 + $0x7c] sm:$0xf]
    %v1685 = vunpack.c.l.b16 %v1621
    %v1686 = vunpack.c.l.b16 %v1622
    %v1687 = vunpack.c.l.b16 %v1623
    %v1688 = vunpack.c.l.b16 %v1624
    %v1689 = vunpack.c.l.b16 %v1625
    %v1690 = vunpack.c.l.b16 %v1626
    %v1691 = vunpack.c.l.b16 %v1627
    %v1692 = vunpack.c.l.b16 %v1628
    %v1693 = vunpack.c.l.b16 %v1629
    %v1694 = vunpack.c.l.b16 %v1630
    %v1695 = vunpack.c.l.b16 %v1631
    %v1696 = vunpack.c.l.b16 %v1632
    %v1697 = vunpack.c.l.b16 %v1633
    %v1698 = vunpack.c.l.b16 %v1634
    %v1699 = vunpack.c.l.b16 %v1635
    %v1700 = vunpack.c.l.b16 %v1636
    %v1701 = vunpack.c.l.b16 %v1637
    %v1702 = vunpack.c.l.b16 %v1638
    %v1703 = vunpack.c.l.b16 %v1639
    %v1704 = vunpack.c.l.b16 %v1640
    %v1705 = vunpack.c.l.b16 %v1641
    %v1706 = vunpack.c.l.b16 %v1642
    %v1707 = vunpack.c.l.b16 %v1643
    %v1708 = vunpack.c.l.b16 %v1644
    %v1709 = vunpack.c.l.b16 %v1645
    %v1710 = vunpack.c.l.b16 %v1646
    %v1711 = vunpack.c.l.b16 %v1647
    %v1712 = vunpack.c.l.b16 %v1648
    %v1713 = vunpack.c.l.b16 %v1649
    %v1714 = vunpack.c.l.b16 %v1650
    %v1715 = vunpack.c.l.b16 %v1651
    %v1716 = vunpack.c.l.b16 %v1652
    %v1717 = vpack.c.b16 %v1686, %v1685
    %v1718 = vpack.c.b16 %v1688, %v1687
    %v1719 = vpack.c.b16 %v1690, %v1689
    %v1720 = vpack.c.b16 %v1692, %v1691
    %v1721 = vpack.c.b16 %v1694, %v1693
    %v1722 = vpack.c.b16 %v1696, %v1695
    %v1723 = vpack.c.b16 %v1698, %v1697
    %v1724 = vpack.c.b16 %v1700, %v1699
    %v1725 = vpack.c.b16 %v1702, %v1701
    %v1726 = vpack.c.b16 %v1704, %v1703
    %v1727 = vpack.c.b16 %v1706, %v1705
    %v1728 = vpack.c.b16 %v1708, %v1707
    %v1729 = vpack.c.b16 %v1710, %v1709
    %v1730 = vpack.c.b16 %v1712, %v1711
    %v1731 = vpack.c.b16 %v1714, %v1713
    %v1732 = vpack.c.b16 %v1716, %v1715
    %1749 = vmatprep.subr.bf16.mxu0 0
    %1750 = vmatpush1.bf16.msra.mxu0 %v1717
    %1751 = vmatprep.subr.bf16.mxu0 0
    %1752 = vmatpush1.bf16.msra.mxu0 %v1718
    %1753 = vmatprep.subr.bf16.mxu0 0
    %1754 = vmatpush1.bf16.msra.mxu0 %v1719
    %1755 = vmatprep.subr.bf16.mxu0 0
    %1756 = vmatpush1.bf16.msra.mxu0 %v1720
    %1757 = vmatprep.subr.bf16.mxu0 0
    %1758 = vmatpush1.bf16.msra.mxu0 %v1721
    %1759 = vmatprep.subr.bf16.mxu0 0
    %1760 = vmatpush1.bf16.msra.mxu0 %v1722
    %1761 = vmatprep.subr.bf16.mxu0 0
    %1762 = vmatpush1.bf16.msra.mxu0 %v1723
    %1763 = vmatprep.subr.bf16.mxu0 0
    %1764 = vmatpush1.bf16.msra.mxu0 %v1724
    %1765 = vmatprep.subr.bf16.mxu0 0
    %1766 = vmatpush1.bf16.msra.mxu0 %v1725
    %1767 = vmatprep.subr.bf16.mxu0 0
    %1768 = vmatpush1.bf16.msra.mxu0 %v1726
    %1769 = vmatprep.subr.bf16.mxu0 0
    %1770 = vmatpush1.bf16.msra.mxu0 %v1727
    %1771 = vmatprep.subr.bf16.mxu0 0
    %1772 = vmatpush1.bf16.msra.mxu0 %v1728
    %1773 = vmatprep.subr.bf16.mxu0 0
    %1774 = vmatpush1.bf16.msra.mxu0 %v1729
    %1775 = vmatprep.subr.bf16.mxu0 0
    %1776 = vmatpush1.bf16.msra.mxu0 %v1730
    %1777 = vmatprep.subr.bf16.mxu0 0
    %1778 = vmatpush1.bf16.msra.mxu0 %v1731
    %1779 = vmatprep.subr.bf16.mxu0 0
    %1780 = vmatpush1.bf16.msra.mxu0 %v1732
    %1781 = vmatprep.mubr.bf16.mxu0 %v1616
    %1782 = vmatmul.mubr.bf16.gmra.mrb[0].mxu0 %v1615
    %v1783 = vpop.f32.mrb[0].mxu0
    %v1784 = vadd.f32 0.0, %v1783
    %v1785 = vpop.f32.mrb[0].mxu0
    %v1786 = vpop.f32.mrb[0].mxu0
    %v1787 = vadd.f32 0.0, %v1786
    %v1788 = vpop.f32.mrb[0].mxu0
    %1789 = vmatprep.mubr.bf16.mxu0 %v1618
    %1790 = vmatmul.mubr.bf16.gmra.mrb[0].mxu0 %v1617
    %v1791 = vpop.f32.mrb[0].mxu0
    %v1792 = vadd.f32 0.0, %v1791
    %v1793 = vpop.f32.mrb[0].mxu0
    %v1794 = vpop.f32.mrb[0].mxu0
    %v1795 = vadd.f32 0.0, %v1794
    %v1796 = vpop.f32.mrb[0].mxu0
    %1797 = vmatprep.mubr.bf16.mxu0 %v1620
    %1798 = vmatmul.mubr.bf16.gmra.mrb[0].mxu0 %v1619
    %v1799 = vpop.f32.mrb[0].mxu0
    %v1800 = vadd.f32 0.0, %v1799
    %v1801 = vpop.f32.mrb[0].mxu0
    %v1802 = vpop.f32.mrb[0].mxu0
    %v1803 = vpop.f32.mrb[0].mxu0
    %1804 = vdwg.mxu0
    %v1805 = vadd.f32 %v1124, %v1784
    %v1806 = vadd.f32 %v1125, %v1787
    %v1807 = vadd.f32 %v1126, %v1792
    %v1808 = vadd.f32 %v1127, %v1795
    %v1809 = vadd.f32 %v1128, %v1800
    %v1810 = vlaneseq
    %v1811 = vshrl.u32 %v1810, 7
    %v1812 = vsub.s32 0, %v1811
    %v1813 = vrot.slane %v236, %v1812
    %v1814 = vadd.f32 %v1805, %v1813
    %v1815 = vadd.f32 %v1806, %v1813
    %v1816 = vadd.f32 %v1807, %v1813
    %v1817 = vadd.f32 %v1808, %v1813
    %v1818 = vadd.f32 %v1809, %v1813
    %s1819 = scalar_lea.vmem %s5, 8
    %v1820 = vld [vmem:[%s1819] sm:$0x1]
    %v1821 = vld [vmem:[%s1819 + $0x1] sm:$0x1]
    %v1822 = vld [vmem:[%s1819 + $0x2] sm:$0x1]
    %v1823 = vld [vmem:[%s1819 + $0x3] sm:$0x1]
    %v1824 = vld [vmem:[%s1819 + $0x4] sm:$0x1]
    %v1825 = vld [vmem:[%s1819 + $0x5] sm:$0x1]
    %v1826 = vsel %vm151, %v1814, 0.0
    %1827 = vadd.xlane.f32.xlu0 %v1826
    %v1828 = vpop.xlane.xlu0 %1827
    %v1829 = vsel %vm151, %v1815, 0.0
    %1830 = vadd.xlane.f32.xlu0 %v1829
    %v1831 = vpop.xlane.xlu0 %1830
    %v1832 = vsel %vm151, %v1816, 0.0
    %1833 = vadd.xlane.f32.xlu0 %v1832
    %v1834 = vpop.xlane.xlu0 %1833
    %v1835 = vsel %vm151, %v1817, 0.0
    %1836 = vadd.xlane.f32.xlu0 %v1835
    %v1837 = vpop.xlane.xlu0 %1836
    %v1838 = vsel %vm249, %v1818, 0.0
    %1839 = vadd.xlane.f32.xlu0 %v1838
    %v1840 = vpop.xlane.xlu0 %1839
    %v1841 = vmul.f32 %v1828, %v253
    %v1842 = vmul.f32 %v1831, %v253
    %v1843 = vmul.f32 %v1834, %v253
    %v1844 = vmul.f32 %v1837, %v253
    %v1845 = vmul.f32 %v1840, %v253
    %v1846 = vsub.f32 %v1814, %v1841
    %v1847 = vsub.f32 %v1815, %v1842
    %v1848 = vsub.f32 %v1816, %v1843
    %v1849 = vsub.f32 %v1817, %v1844
    %v1850 = vsub.f32 %v1818, %v1845
    %v1851 = vmul.f32 %v1846, %v1846
    %v1852 = vmul.f32 %v1847, %v1847
    %v1853 = vmul.f32 %v1848, %v1848
    %v1854 = vmul.f32 %v1849, %v1849
    %v1855 = vmul.f32 %v1850, %v1850
    %v1856 = vsel %vm151, %v1851, 0.0
    %1857 = vadd.xlane.f32.xlu0 %v1856
    %v1858 = vpop.xlane.xlu0 %1857
    %v1859 = vsel %vm151, %v1852, 0.0
    %1860 = vadd.xlane.f32.xlu0 %v1859
    %v1861 = vpop.xlane.xlu0 %1860
    %v1862 = vsel %vm151, %v1853, 0.0
    %1863 = vadd.xlane.f32.xlu0 %v1862
    %v1864 = vpop.xlane.xlu0 %1863
    %v1865 = vsel %vm151, %v1854, 0.0
    %1866 = vadd.xlane.f32.xlu0 %v1865
    %v1867 = vpop.xlane.xlu0 %1866
    %v1868 = vsel %vm249, %v1855, 0.0
    %1869 = vadd.xlane.f32.xlu0 %v1868
    %v1870 = vpop.xlane.xlu0 %1869
    %v1871 = vmul.f32 %v1858, %v253
    %v1872 = vmul.f32 %v1861, %v253
    %v1873 = vmul.f32 %v1864, %v253
    %v1874 = vmul.f32 %v1867, %v253
    %v1875 = vmul.f32 %v1870, %v253
    %v1876 = vadd.f32 %v1871, 1e-06
    %v1877 = vadd.f32 %v1872, 1e-06
    %v1878 = vadd.f32 %v1873, 1e-06
    %v1879 = vadd.f32 %v1874, 1e-06
    %v1880 = vadd.f32 %v1875, 1e-06
    %v1881 = vrsqrt.pop %v1876
    %v1882 = vrsqrt.pop %v1877
    %v1883 = vrsqrt.pop %v1878
    %v1884 = vrsqrt.pop %v1879
    %v1885 = vrsqrt.pop %v1880
    %v1886 = vmul.f32 %v1846, %v1881
    %v1887 = vmul.f32 %v1847, %v1882
    %v1888 = vmul.f32 %v1848, %v1883
    %v1889 = vmul.f32 %v1849, %v1884
    %v1890 = vmul.f32 %v1850, %v1885
    %v1891 = vlaneseq
    %v1892 = vshrl.u32 %v1891, 7
    %v1893 = vsub.s32 0, %v1892
    %v1894 = vrot.slane %v1820, %v1893
    %v1895 = vmul.f32 %v1886, %v1894
    %v1896 = vmul.f32 %v1887, %v1894
    %v1897 = vmul.f32 %v1888, %v1894
    %v1898 = vmul.f32 %v1889, %v1894
    %v1899 = vmul.f32 %v1890, %v1894
    %v1900 = vlaneseq
    %v1901 = vshrl.u32 %v1900, 7
    %v1902 = vsub.s32 0, %v1901
    %v1903 = vrot.slane %v1821, %v1902
    %v1904 = vadd.f32 %v1895, %v1903
    %v1905 = vadd.f32 %v1896, %v1903
    %v1906 = vadd.f32 %v1897, %v1903
    %v1907 = vadd.f32 %v1898, %v1903
    %v1908 = vadd.f32 %v1899, %v1903
    %v1909 = vpack.c.bf16 %v1905, %v1904
    %v1910 = vpack.c.bf16 %v1907, %v1906
    %v1911 = vpack.c.bf16 %v1908, %v1908
    %s1912 = scalar_lea.vmem %s6, 64
    %v1913 = vld [vmem:[%s1912] sm:$0xff]
    %v1914 = vld [vmem:[%s1912 + $0x8] sm:$0xff]
    %v1915 = vld [vmem:[%s1912 + $0x10] sm:$0xff]
    %v1916 = vld [vmem:[%s1912 + $0x18] sm:$0xff]
    %v1917 = vld [vmem:[%s1912 + $0x20] sm:$0xff]
    %v1918 = vld [vmem:[%s1912 + $0x28] sm:$0xff]
    %v1919 = vld [vmem:[%s1912 + $0x30] sm:$0xff]
    %v1920 = vld [vmem:[%s1912 + $0x38] sm:$0xff]
    %s1921 = scalar_lea.vmem %s7, 2
    %v1922 = vld [vmem:[%s1921] sm:$0x3]
    %v1924 = vlaneseq
    %v1925 = vshrl.u32 %v1924, 7
    %v1926 = vsub.s32 0, %v1925
    %v1927 = vrot.slane %v1922, %v1926
    %v1928 = vlaneseq
    %v1929 = vshrl.u32 %v1928, 7
    %v1930 = vsub.s32 1, %v1929
    %v1931 = vrot.slane %v1922, %v1930
    %v1942 = vunpack.c.l.b16 %v1913
    %v1943 = vunpack.c.h.b16 %v1913
    %v1944 = vunpack.c.l.b16 %v1914
    %v1945 = vunpack.c.h.b16 %v1914
    %v1946 = vunpack.c.l.b16 %v1915
    %v1947 = vunpack.c.h.b16 %v1915
    %v1948 = vunpack.c.l.b16 %v1916
    %v1949 = vunpack.c.h.b16 %v1916
    %v1950 = vunpack.c.l.b16 %v1917
    %v1951 = vunpack.c.h.b16 %v1917
    %v1952 = vunpack.c.l.b16 %v1918
    %v1953 = vunpack.c.h.b16 %v1918
    %v1954 = vunpack.c.l.b16 %v1919
    %v1955 = vunpack.c.h.b16 %v1919
    %v1956 = vunpack.c.l.b16 %v1920
    %v1957 = vunpack.c.h.b16 %v1920
    %v1958 = vpack.c.b16 %v1944, %v1942
    %v1959 = vpack.c.b16 %v1945, %v1943
    %v1960 = vpack.c.b16 %v1948, %v1946
    %v1961 = vpack.c.b16 %v1949, %v1947
    %v1962 = vpack.c.b16 %v1952, %v1950
    %v1963 = vpack.c.b16 %v1953, %v1951
    %v1964 = vpack.c.b16 %v1956, %v1954
    %v1965 = vpack.c.b16 %v1957, %v1955
    %v1975 = vsel %vm151, %v1909, 0
    %v1978 = vsel %vm151, %v1910, 0
    %v1981 = vsel %vm151, %v1911, 0
    %1983 = vmatprep.subr.bf16.mxu0 %v1959
    %1984 = vmatpush1.bf16.msra.mxu0 %v1958
    %1985 = vmatprep.subr.bf16.mxu0 %v1961
    %1986 = vmatpush1.bf16.msra.mxu0 %v1960
    %1987 = vmatprep.subr.bf16.mxu0 %v1963
    %1988 = vmatpush1.bf16.msra.mxu0 %v1962
    %1989 = vmatprep.subr.bf16.mxu0 %v1965
    %1990 = vmatpush1.bf16.msra.mxu0 %v1964
    %1991 = vmatprep.subr.bf16.mxu0 0
    %1992 = vmatpush1.bf16.msra.mxu0 0
    %1993 = vmatprep.subr.bf16.mxu0 0
    %1994 = vmatpush1.bf16.msra.mxu0 0
    %1995 = vmatprep.subr.bf16.mxu0 0
    %1996 = vmatpush1.bf16.msra.mxu0 0
    %1997 = vmatprep.subr.bf16.mxu0 0
    %1998 = vmatpush1.bf16.msra.mxu0 0
    %1999 = vmatprep.subr.bf16.mxu0 0
    %2000 = vmatpush1.bf16.msra.mxu0 0
    %2001 = vmatprep.subr.bf16.mxu0 0
    %2002 = vmatpush1.bf16.msra.mxu0 0
    %2003 = vmatprep.subr.bf16.mxu0 0
    %2004 = vmatpush1.bf16.msra.mxu0 0
    %2005 = vmatprep.subr.bf16.mxu0 0
    %2006 = vmatpush1.bf16.msra.mxu0 0
    %2007 = vmatprep.subr.bf16.mxu0 0
    %2008 = vmatpush1.bf16.msra.mxu0 0
    %2009 = vmatprep.subr.bf16.mxu0 0
    %2010 = vmatpush1.bf16.msra.mxu0 0
    %2011 = vmatprep.subr.bf16.mxu0 0
    %2012 = vmatpush1.bf16.msra.mxu0 0
    %2013 = vmatprep.subr.bf16.mxu0 0
    %2014 = vmatpush1.bf16.msra.mxu0 0
    %2015 = vmatprep.mubr.bf16.mxu0 0
    %2016 = vmatmul.mubr.bf16.gmra.mrb[0].mxu0 %v1975
    %v2017 = vpop.f32.mrb[0].mxu0
    %v2018 = vadd.f32 %v1927, %v2017
    %v2019 = vpop.f32.mrb[0].mxu0
    %v2020 = vadd.f32 %v1931, %v2019
    %v2021 = vpop.f32.mrb[0].mxu0
    %v2022 = vadd.f32 %v1927, %v2021
    %v2023 = vpop.f32.mrb[0].mxu0
    %v2024 = vadd.f32 %v1931, %v2023
    %2025 = vmatprep.mubr.bf16.mxu0 0
    %2026 = vmatmul.mubr.bf16.gmra.mrb[0].mxu0 %v1978
    %v2027 = vpop.f32.mrb[0].mxu0
    %v2028 = vadd.f32 %v1927, %v2027
    %v2029 = vpop.f32.mrb[0].mxu0
    %v2030 = vadd.f32 %v1931, %v2029
    %v2031 = vpop.f32.mrb[0].mxu0
    %v2032 = vadd.f32 %v1927, %v2031
    %v2033 = vpop.f32.mrb[0].mxu0
    %v2034 = vadd.f32 %v1931, %v2033
    %2035 = vmatprep.mubr.bf16.mxu0 0
    %2036 = vmatmul.mubr.bf16.gmra.mrb[0].mxu0 %v1981
    %v2037 = vpop.f32.mrb[0].mxu0
    %v2038 = vadd.f32 %v1927, %v2037
    %v2039 = vpop.f32.mrb[0].mxu0
    %v2040 = vadd.f32 %v1931, %v2039
    %v2041 = vpop.f32.mrb[0].mxu0
    %v2042 = vpop.f32.mrb[0].mxu0
    %2043 = vdwg.mxu0
    %v2044 = vmul.f32 %v2018, 0.17677669
    %v2045 = vmul.f32 %v2022, 0.17677669
    %v2046 = vmul.f32 %v2028, 0.17677669
    %v2047 = vmul.f32 %v2032, 0.17677669
    %v2048 = vmul.f32 %v2038, 0.17677669
    %2054 = vrot.lane.b32.xlu0 %v2018, 64
    %v2055 = vpop.permute.xlu0 %2054
    %2056 = vrot.lane.b32.xlu0 %v2022, 64
    %v2057 = vpop.permute.xlu0 %2056
    %2058 = vrot.lane.b32.xlu0 %v2028, 64
    %v2059 = vpop.permute.xlu0 %2058
    %2060 = vrot.lane.b32.xlu0 %v2032, 64
    %v2061 = vpop.permute.xlu0 %2060
    %2062 = vrot.lane.b32.xlu0 %v2038, 64
    %v2063 = vpop.permute.xlu0 %2062
    %v2065 = vsel %vm475, %v2044, 0
    %v2068 = vsel %vm475, %v2045, 0
    %v2071 = vsel %vm475, %v2046, 0
    %v2074 = vsel %vm475, %v2047, 0
    %v2077 = vsel %vm475, %v2048, 0
    %v2079 = vsel %vm475, %v2055, 0
    %v2081 = vsel %vm475, %v2057, 0
    %v2083 = vsel %vm475, %v2059, 0
    %v2085 = vsel %vm475, %v2061, 0
    %v2087 = vsel %vm475, %v2063, 0
    %2089 = vmatprep.subr.mxu0 0.0
    %2090 = vmatpush1.xpose.msra.mxu0 %v2079
    %2091 = vmatprep.subr.mxu0 0.0
    %2092 = vmatpush1.xpose.msra.mxu0 %v2081
    %2093 = vmatprep.subr.mxu0 0.0
    %2094 = vmatpush1.xpose.msra.mxu0 %v2083
    %2095 = vmatprep.subr.mxu0 0.0
    %2096 = vmatpush1.xpose.msra.mxu0 %v2085
    %2097 = vmatprep.subr.mxu0 0.0
    %2098 = vmatpush1.xpose.msra.mxu0 %v2087
    %2099 = vmatprep.subr.mxu0 0.0
    %2100 = vmatpush1.xpose.msra.mxu0 0.0
    %2101 = vmatprep.subr.mxu0 0.0
    %2102 = vmatpush1.xpose.msra.mxu0 0.0
    %2103 = vmatprep.subr.mxu0 0.0
    %2104 = vmatpush1.xpose.msra.mxu0 0.0
    %2105 = vmatprep.subr.mxu0 0.0
    %2106 = vmatpush1.xpose.msra.mxu0 0.0
    %2107 = vmatprep.subr.mxu0 0.0
    %2108 = vmatpush1.xpose.msra.mxu0 0.0
    %2109 = vmatprep.subr.mxu0 0.0
    %2110 = vmatpush1.xpose.msra.mxu0 0.0
    %2111 = vmatprep.subr.mxu0 0.0
    %2112 = vmatpush1.xpose.msra.mxu0 0.0
    %2113 = vmatprep.subr.mxu0 0.0
    %2114 = vmatpush1.xpose.msra.mxu0 0.0
    %2115 = vmatprep.subr.mxu0 0.0
    %2116 = vmatpush1.xpose.msra.mxu0 0.0
    %2117 = vmatprep.subr.mxu0 0.0
    %2118 = vmatpush1.xpose.msra.mxu0 0.0
    %2119 = vmatprep.subr.mxu0 0.0
    %2120 = vmatpush1.xpose.msra.mxu0 0.0
    %2121 = vmatprep.subr.mxu0 0.0
    %2122 = vmatpush1.xpose.msra.mxu0 0.0
    %2123 = vmatprep.subr.mxu0 0.0
    %2124 = vmatpush1.xpose.msra.mxu0 0.0
    %2125 = vmatprep.subr.mxu0 0.0
    %2126 = vmatpush1.xpose.msra.mxu0 0.0
    %2127 = vmatprep.subr.mxu0 0.0
    %2128 = vmatpush1.xpose.msra.mxu0 0.0
    %2129 = vmatprep.subr.mxu0 0.0
    %2130 = vmatpush1.xpose.msra.mxu0 0.0
    %2131 = vmatprep.subr.mxu0 0.0
    %2132 = vmatpush1.xpose.msra.mxu0 0.0
    %2133 = vmatprep.subr.mxu0 0.0
    %2134 = vmatpush1.xpose.msra.mxu0 0.0
    %2135 = vmatprep.subr.mxu0 0.0
    %2136 = vmatpush1.xpose.msra.mxu0 0.0
    %2137 = vmatprep.subr.mxu0 0.0
    %2138 = vmatpush1.xpose.msra.mxu0 0.0
    %2139 = vmatprep.subr.mxu0 0.0
    %2140 = vmatpush1.xpose.msra.mxu0 0.0
    %2141 = vmatprep.subr.mxu0 0.0
    %2142 = vmatpush1.xpose.msra.mxu0 0.0
    %2143 = vmatprep.subr.mxu0 0.0
    %2144 = vmatpush1.xpose.msra.mxu0 0.0
    %2145 = vmatprep.subr.mxu0 0.0
    %2146 = vmatpush1.xpose.msra.mxu0 0.0
    %2147 = vmatprep.subr.mxu0 0.0
    %2148 = vmatpush1.xpose.msra.mxu0 0.0
    %2149 = vmatprep.subr.mxu0 0.0
    %2150 = vmatpush1.xpose.msra.mxu0 0.0
    %2151 = vmatprep.subr.mxu0 0.0
    %2152 = vmatpush1.xpose.msra.mxu0 0.0
    %2153 = vmatprep.mubr.f32.mxu0 0.0
    %2154 = vmatmul.mubr.f32.gmra.mrb[0].mxu0 %v2065
    %v2155 = vpop.f32.mrb[0].mxu0
    %v2156 = vadd.f32 %v226, %v2155
    %v2157 = vpop.f32.mrb[0].mxu0
    %2158 = vmatprep.mubr.f32.mxu0 0.0
    %2159 = vmatmul.mubr.f32.gmra.mrb[0].mxu0 %v2068
    %v2160 = vpop.f32.mrb[0].mxu0
    %v2161 = vadd.f32 %v227, %v2160
    %v2162 = vpop.f32.mrb[0].mxu0
    %2163 = vmatprep.mubr.f32.mxu0 0.0
    %2164 = vmatmul.mubr.f32.gmra.mrb[0].mxu0 %v2071
    %v2165 = vpop.f32.mrb[0].mxu0
    %v2166 = vadd.f32 %v228, %v2165
    %v2167 = vpop.f32.mrb[0].mxu0
    %2168 = vmatprep.mubr.f32.mxu0 0.0
    %2169 = vmatmul.mubr.f32.gmra.mrb[0].mxu0 %v2074
    %v2170 = vpop.f32.mrb[0].mxu0
    %v2171 = vadd.f32 %v229, %v2170
    %v2172 = vpop.f32.mrb[0].mxu0
    %2173 = vmatprep.mubr.f32.mxu0 0.0
    %2174 = vmatmul.mubr.f32.gmra.mrb[0].mxu0 %v2077
    %v2175 = vpop.f32.mrb[0].mxu0
    %v2176 = vadd.f32 %v230, %v2175
    %v2177 = vpop.f32.mrb[0].mxu0
    %2178 = vdwg.mxu0
    %v2179 = vsel %vm591, %v2156, -inf
    %2180 = vmax.xlane.f32.xlu0 %v2179
    %v2181 = vpop.xlane.xlu0 %2180
    %v2182 = vsel %vm591, %v2161, -inf
    %2183 = vmax.xlane.f32.xlu0 %v2182
    %v2184 = vpop.xlane.xlu0 %2183
    %v2185 = vsel %vm591, %v2166, -inf
    %2186 = vmax.xlane.f32.xlu0 %v2185
    %v2187 = vpop.xlane.xlu0 %2186
    %v2188 = vsel %vm591, %v2171, -inf
    %2189 = vmax.xlane.f32.xlu0 %v2188
    %v2190 = vpop.xlane.xlu0 %2189
    %v2191 = vsel %vm604, %v2176, -inf
    %2192 = vmax.xlane.f32.xlu0 %v2191
    %v2193 = vpop.xlane.xlu0 %2192
    %v2194 = vsub.f32 %v2156, %v2181
    %v2195 = vsub.f32 %v2161, %v2184
    %v2196 = vsub.f32 %v2166, %v2187
    %v2197 = vsub.f32 %v2171, %v2190
    %v2198 = vsub.f32 %v2176, %v2193
    %v2199 = vmul.f32 %v2194, 1.442695
    %v2200 = vpow.pop %v2199
    %v2201 = vmul.f32 %v2195, 1.442695
    %v2202 = vpow.pop %v2201
    %v2203 = vmul.f32 %v2196, 1.442695
    %v2204 = vpow.pop %v2203
    %v2205 = vmul.f32 %v2197, 1.442695
    %v2206 = vpow.pop %v2205
    %v2207 = vmul.f32 %v2198, 1.442695
    %v2208 = vpow.pop %v2207
    %v2209 = vsel %vm591, %v2200, 0.0
    %2210 = vadd.xlane.f32.xlu0 %v2209
    %v2211 = vpop.xlane.xlu0 %2210
    %v2212 = vsel %vm591, %v2202, 0.0
    %2213 = vadd.xlane.f32.xlu0 %v2212
    %v2214 = vpop.xlane.xlu0 %2213
    %v2215 = vsel %vm591, %v2204, 0.0
    %2216 = vadd.xlane.f32.xlu0 %v2215
    %v2217 = vpop.xlane.xlu0 %2216
    %v2218 = vsel %vm591, %v2206, 0.0
    %2219 = vadd.xlane.f32.xlu0 %v2218
    %v2220 = vpop.xlane.xlu0 %2219
    %v2221 = vsel %vm604, %v2208, 0.0
    %2222 = vadd.xlane.f32.xlu0 %v2221
    %v2223 = vpop.xlane.xlu0 %2222
    %v2224 = vrcp.pop %v2211
    %v2225 = vrcp.pop %v2214
    %v2226 = vrcp.pop %v2217
    %v2227 = vrcp.pop %v2220
    %v2228 = vrcp.pop %v2223
    %v2229 = vmul.f32 %v2200, %v2224
    %v2230 = vmul.f32 %v2202, %v2225
    %v2231 = vmul.f32 %v2204, %v2226
    %v2232 = vmul.f32 %v2206, %v2227
    %v2233 = vmul.f32 %v2208, %v2228
    %v2234 = vpack.c.bf16 %v2230, %v2229
    %v2235 = vpack.c.bf16 %v2232, %v2231
    %v2236 = vpack.c.bf16 %v2233, %v2233
    %v2237 = vpack.c.bf16 %v2024, %v2020
    %v2238 = vpack.c.bf16 %v2034, %v2030
    %v2239 = vpack.c.bf16 %v2040, %v2040
    %v2241 = vsel %vm591, %v2234, 0
    %v2244 = vsel %vm591, %v2235, 0
    %v2247 = vsel %vm591, %v2236, 0
    %v2250 = vsel %vm663, %v2239, 0
    %2252 = vmatprep.subr.bf16.mxu0 0
    %2253 = vmatpush1.bf16.msra.mxu0 %v2237
    %2254 = vmatprep.subr.bf16.mxu0 0
    %2255 = vmatpush1.bf16.msra.mxu0 %v2238
    %2256 = vmatprep.subr.bf16.mxu0 0
    %2257 = vmatpush1.bf16.msra.mxu0 %v2250
    %2258 = vmatprep.subr.bf16.mxu0 0
    %2259 = vmatpush1.bf16.msra.mxu0 0
    %2260 = vmatprep.subr.bf16.mxu0 0
    %2261 = vmatpush1.bf16.msra.mxu0 0
    %2262 = vmatprep.subr.bf16.mxu0 0
    %2263 = vmatpush1.bf16.msra.mxu0 0
    %2264 = vmatprep.subr.bf16.mxu0 0
    %2265 = vmatpush1.bf16.msra.mxu0 0
    %2266 = vmatprep.subr.bf16.mxu0 0
    %2267 = vmatpush1.bf16.msra.mxu0 0
    %2268 = vmatprep.subr.bf16.mxu0 0
    %2269 = vmatpush1.bf16.msra.mxu0 0
    %2270 = vmatprep.subr.bf16.mxu0 0
    %2271 = vmatpush1.bf16.msra.mxu0 0
    %2272 = vmatprep.subr.bf16.mxu0 0
    %2273 = vmatpush1.bf16.msra.mxu0 0
    %2274 = vmatprep.subr.bf16.mxu0 0
    %2275 = vmatpush1.bf16.msra.mxu0 0
    %2276 = vmatprep.subr.bf16.mxu0 0
    %2277 = vmatpush1.bf16.msra.mxu0 0
    %2278 = vmatprep.subr.bf16.mxu0 0
    %2279 = vmatpush1.bf16.msra.mxu0 0
    %2280 = vmatprep.subr.bf16.mxu0 0
    %2281 = vmatpush1.bf16.msra.mxu0 0
    %2282 = vmatprep.subr.bf16.mxu0 0
    %2283 = vmatpush1.bf16.msra.mxu0 0
    %2284 = vmatprep.mubr.bf16.mxu0 0
    %2285 = vmatmul.mubr.bf16.gmra.mrb[0].mxu0 %v2241
    %v2286 = vpop.f32.mrb[0].mxu0
    %v2287 = vadd.f32 0.0, %v2286
    %v2288 = vpop.f32.mrb[0].mxu0
    %v2289 = vpop.f32.mrb[0].mxu0
    %v2290 = vadd.f32 0.0, %v2289
    %v2291 = vpop.f32.mrb[0].mxu0
    %2292 = vmatprep.mubr.bf16.mxu0 0
    %2293 = vmatmul.mubr.bf16.gmra.mrb[0].mxu0 %v2244
    %v2294 = vpop.f32.mrb[0].mxu0
    %v2295 = vadd.f32 0.0, %v2294
    %v2296 = vpop.f32.mrb[0].mxu0
    %v2297 = vpop.f32.mrb[0].mxu0
    %v2298 = vadd.f32 0.0, %v2297
    %v2299 = vpop.f32.mrb[0].mxu0
    %2300 = vmatprep.mubr.bf16.mxu0 0
    %2301 = vmatmul.mubr.bf16.gmra.mrb[0].mxu0 %v2247
    %v2302 = vpop.f32.mrb[0].mxu0
    %v2303 = vadd.f32 0.0, %v2302
    %v2304 = vpop.f32.mrb[0].mxu0
    %v2305 = vpop.f32.mrb[0].mxu0
    %v2306 = vpop.f32.mrb[0].mxu0
    %2307 = vdwg.mxu0
    %2308 = vrot.lane.b32.xlu0 %v2044, 96
    %v2309 = vpop.permute.xlu0 %2308
    %2310 = vrot.lane.b32.xlu0 %v2045, 96
    %v2311 = vpop.permute.xlu0 %2310
    %2312 = vrot.lane.b32.xlu0 %v2046, 96
    %v2313 = vpop.permute.xlu0 %2312
    %2314 = vrot.lane.b32.xlu0 %v2047, 96
    %v2315 = vpop.permute.xlu0 %2314
    %2316 = vrot.lane.b32.xlu0 %v2048, 96
    %v2317 = vpop.permute.xlu0 %2316
    %2318 = vrot.lane.b32.xlu0 %v2018, 32
    %v2319 = vpop.permute.xlu0 %2318
    %2320 = vrot.lane.b32.xlu0 %v2022, 32
    %v2321 = vpop.permute.xlu0 %2320
    %2322 = vrot.lane.b32.xlu0 %v2028, 32
    %v2323 = vpop.permute.xlu0 %2322
    %2324 = vrot.lane.b32.xlu0 %v2032, 32
    %v2325 = vpop.permute.xlu0 %2324
    %2326 = vrot.lane.b32.xlu0 %v2038, 32
    %v2327 = vpop.permute.xlu0 %2326
    %v2328 = vsel %vm475, %v2309, 0
    %v2330 = vsel %vm475, %v2311, 0
    %v2332 = vsel %vm475, %v2313, 0
    %v2334 = vsel %vm475, %v2315, 0
    %v2336 = vsel %vm475, %v2317, 0
    %v2338 = vsel %vm475, %v2319, 0
    %v2340 = vsel %vm475, %v2321, 0
    %v2342 = vsel %vm475, %v2323, 0
    %v2344 = vsel %vm475, %v2325, 0
    %v2346 = vsel %vm475, %v2327, 0
    %2348 = vmatprep.subr.mxu0 0.0
    %2349 = vmatpush1.xpose.msra.mxu0 %v2338
    %2350 = vmatprep.subr.mxu0 0.0
    %2351 = vmatpush1.xpose.msra.mxu0 %v2340
    %2352 = vmatprep.subr.mxu0 0.0
    %2353 = vmatpush1.xpose.msra.mxu0 %v2342
    %2354 = vmatprep.subr.mxu0 0.0
    %2355 = vmatpush1.xpose.msra.mxu0 %v2344
    %2356 = vmatprep.subr.mxu0 0.0
    %2357 = vmatpush1.xpose.msra.mxu0 %v2346
    %2358 = vmatprep.subr.mxu0 0.0
    %2359 = vmatpush1.xpose.msra.mxu0 0.0
    %2360 = vmatprep.subr.mxu0 0.0
    %2361 = vmatpush1.xpose.msra.mxu0 0.0
    %2362 = vmatprep.subr.mxu0 0.0
    %2363 = vmatpush1.xpose.msra.mxu0 0.0
    %2364 = vmatprep.subr.mxu0 0.0
    %2365 = vmatpush1.xpose.msra.mxu0 0.0
    %2366 = vmatprep.subr.mxu0 0.0
    %2367 = vmatpush1.xpose.msra.mxu0 0.0
    %2368 = vmatprep.subr.mxu0 0.0
    %2369 = vmatpush1.xpose.msra.mxu0 0.0
    %2370 = vmatprep.subr.mxu0 0.0
    %2371 = vmatpush1.xpose.msra.mxu0 0.0
    %2372 = vmatprep.subr.mxu0 0.0
    %2373 = vmatpush1.xpose.msra.mxu0 0.0
    %2374 = vmatprep.subr.mxu0 0.0
    %2375 = vmatpush1.xpose.msra.mxu0 0.0
    %2376 = vmatprep.subr.mxu0 0.0
    %2377 = vmatpush1.xpose.msra.mxu0 0.0
    %2378 = vmatprep.subr.mxu0 0.0
    %2379 = vmatpush1.xpose.msra.mxu0 0.0
    %2380 = vmatprep.subr.mxu0 0.0
    %2381 = vmatpush1.xpose.msra.mxu0 0.0
    %2382 = vmatprep.subr.mxu0 0.0
    %2383 = vmatpush1.xpose.msra.mxu0 0.0
    %2384 = vmatprep.subr.mxu0 0.0
    %2385 = vmatpush1.xpose.msra.mxu0 0.0
    %2386 = vmatprep.subr.mxu0 0.0
    %2387 = vmatpush1.xpose.msra.mxu0 0.0
    %2388 = vmatprep.subr.mxu0 0.0
    %2389 = vmatpush1.xpose.msra.mxu0 0.0
    %2390 = vmatprep.subr.mxu0 0.0
    %2391 = vmatpush1.xpose.msra.mxu0 0.0
    %2392 = vmatprep.subr.mxu0 0.0
    %2393 = vmatpush1.xpose.msra.mxu0 0.0
    %2394 = vmatprep.subr.mxu0 0.0
    %2395 = vmatpush1.xpose.msra.mxu0 0.0
    %2396 = vmatprep.subr.mxu0 0.0
    %2397 = vmatpush1.xpose.msra.mxu0 0.0
    %2398 = vmatprep.subr.mxu0 0.0
    %2399 = vmatpush1.xpose.msra.mxu0 0.0
    %2400 = vmatprep.subr.mxu0 0.0
    %2401 = vmatpush1.xpose.msra.mxu0 0.0
    %2402 = vmatprep.subr.mxu0 0.0
    %2403 = vmatpush1.xpose.msra.mxu0 0.0
    %2404 = vmatprep.subr.mxu0 0.0
    %2405 = vmatpush1.xpose.msra.mxu0 0.0
    %2406 = vmatprep.subr.mxu0 0.0
    %2407 = vmatpush1.xpose.msra.mxu0 0.0
    %2408 = vmatprep.subr.mxu0 0.0
    %2409 = vmatpush1.xpose.msra.mxu0 0.0
    %2410 = vmatprep.subr.mxu0 0.0
    %2411 = vmatpush1.xpose.msra.mxu0 0.0
    %2412 = vmatprep.mubr.f32.mxu0 0.0
    %2413 = vmatmul.mubr.f32.gmra.mrb[0].mxu0 %v2328
    %v2414 = vpop.f32.mrb[0].mxu0
    %v2415 = vadd.f32 %v226, %v2414
    %v2416 = vpop.f32.mrb[0].mxu0
    %2417 = vmatprep.mubr.f32.mxu0 0.0
    %2418 = vmatmul.mubr.f32.gmra.mrb[0].mxu0 %v2330
    %v2419 = vpop.f32.mrb[0].mxu0
    %v2420 = vadd.f32 %v227, %v2419
    %v2421 = vpop.f32.mrb[0].mxu0
    %2422 = vmatprep.mubr.f32.mxu0 0.0
    %2423 = vmatmul.mubr.f32.gmra.mrb[0].mxu0 %v2332
    %v2424 = vpop.f32.mrb[0].mxu0
    %v2425 = vadd.f32 %v228, %v2424
    %v2426 = vpop.f32.mrb[0].mxu0
    %2427 = vmatprep.mubr.f32.mxu0 0.0
    %2428 = vmatmul.mubr.f32.gmra.mrb[0].mxu0 %v2334
    %v2429 = vpop.f32.mrb[0].mxu0
    %v2430 = vadd.f32 %v229, %v2429
    %v2431 = vpop.f32.mrb[0].mxu0
    %2432 = vmatprep.mubr.f32.mxu0 0.0
    %2433 = vmatmul.mubr.f32.gmra.mrb[0].mxu0 %v2336
    %v2434 = vpop.f32.mrb[0].mxu0
    %v2435 = vadd.f32 %v230, %v2434
    %v2436 = vpop.f32.mrb[0].mxu0
    %2437 = vdwg.mxu0
    %v2438 = vsel %vm591, %v2415, -inf
    %2439 = vmax.xlane.f32.xlu0 %v2438
    %v2440 = vpop.xlane.xlu0 %2439
    %v2441 = vsel %vm591, %v2420, -inf
    %2442 = vmax.xlane.f32.xlu0 %v2441
    %v2443 = vpop.xlane.xlu0 %2442
    %v2444 = vsel %vm591, %v2425, -inf
    %2445 = vmax.xlane.f32.xlu0 %v2444
    %v2446 = vpop.xlane.xlu0 %2445
    %v2447 = vsel %vm591, %v2430, -inf
    %2448 = vmax.xlane.f32.xlu0 %v2447
    %v2449 = vpop.xlane.xlu0 %2448
    %v2450 = vsel %vm604, %v2435, -inf
    %2451 = vmax.xlane.f32.xlu0 %v2450
    %v2452 = vpop.xlane.xlu0 %2451
    %v2453 = vsub.f32 %v2415, %v2440
    %v2454 = vsub.f32 %v2420, %v2443
    %v2455 = vsub.f32 %v2425, %v2446
    %v2456 = vsub.f32 %v2430, %v2449
    %v2457 = vsub.f32 %v2435, %v2452
    %v2458 = vmul.f32 %v2453, 1.442695
    %v2459 = vpow.pop %v2458
    %v2460 = vmul.f32 %v2454, 1.442695
    %v2461 = vpow.pop %v2460
    %v2462 = vmul.f32 %v2455, 1.442695
    %v2463 = vpow.pop %v2462
    %v2464 = vmul.f32 %v2456, 1.442695
    %v2465 = vpow.pop %v2464
    %v2466 = vmul.f32 %v2457, 1.442695
    %v2467 = vpow.pop %v2466
    %v2468 = vsel %vm591, %v2459, 0.0
    %2469 = vadd.xlane.f32.xlu0 %v2468
    %v2470 = vpop.xlane.xlu0 %2469
    %v2471 = vsel %vm591, %v2461, 0.0
    %2472 = vadd.xlane.f32.xlu0 %v2471
    %v2473 = vpop.xlane.xlu0 %2472
    %v2474 = vsel %vm591, %v2463, 0.0
    %2475 = vadd.xlane.f32.xlu0 %v2474
    %v2476 = vpop.xlane.xlu0 %2475
    %v2477 = vsel %vm591, %v2465, 0.0
    %2478 = vadd.xlane.f32.xlu0 %v2477
    %v2479 = vpop.xlane.xlu0 %2478
    %v2480 = vsel %vm604, %v2467, 0.0
    %2481 = vadd.xlane.f32.xlu0 %v2480
    %v2482 = vpop.xlane.xlu0 %2481
    %v2483 = vrcp.pop %v2470
    %v2484 = vrcp.pop %v2473
    %v2485 = vrcp.pop %v2476
    %v2486 = vrcp.pop %v2479
    %v2487 = vrcp.pop %v2482
    %v2488 = vmul.f32 %v2459, %v2483
    %v2489 = vmul.f32 %v2461, %v2484
    %v2490 = vmul.f32 %v2463, %v2485
    %v2491 = vmul.f32 %v2465, %v2486
    %v2492 = vmul.f32 %v2467, %v2487
    %v2493 = vpack.c.bf16 %v2489, %v2488
    %v2494 = vpack.c.bf16 %v2491, %v2490
    %v2495 = vpack.c.bf16 %v2492, %v2492
    %2499 = vrot.lane.b32.xlu0 %v2237, 96
    %v2500 = vpop.permute.xlu0 %2499
    %2501 = vrot.lane.b32.xlu0 %v2238, 96
    %v2502 = vpop.permute.xlu0 %2501
    %2503 = vrot.lane.b32.xlu0 %v2239, 96
    %v2504 = vpop.permute.xlu0 %2503
    %v2508 = vsel %vm591, %v2493, 0
    %v2511 = vsel %vm591, %v2494, 0
    %v2514 = vsel %vm591, %v2495, 0
    %v2517 = vsel %vm663, %v2504, 0
    %2519 = vmatprep.subr.bf16.mxu0 0
    %2520 = vmatpush1.bf16.msra.mxu0 %v2500
    %2521 = vmatprep.subr.bf16.mxu0 0
    %2522 = vmatpush1.bf16.msra.mxu0 %v2502
    %2523 = vmatprep.subr.bf16.mxu0 0
    %2524 = vmatpush1.bf16.msra.mxu0 %v2517
    %2525 = vmatprep.subr.bf16.mxu0 0
    %2526 = vmatpush1.bf16.msra.mxu0 0
    %2527 = vmatprep.subr.bf16.mxu0 0
    %2528 = vmatpush1.bf16.msra.mxu0 0
    %2529 = vmatprep.subr.bf16.mxu0 0
    %2530 = vmatpush1.bf16.msra.mxu0 0
    %2531 = vmatprep.subr.bf16.mxu0 0
    %2532 = vmatpush1.bf16.msra.mxu0 0
    %2533 = vmatprep.subr.bf16.mxu0 0
    %2534 = vmatpush1.bf16.msra.mxu0 0
    %2535 = vmatprep.subr.bf16.mxu0 0
    %2536 = vmatpush1.bf16.msra.mxu0 0
    %2537 = vmatprep.subr.bf16.mxu0 0
    %2538 = vmatpush1.bf16.msra.mxu0 0
    %2539 = vmatprep.subr.bf16.mxu0 0
    %2540 = vmatpush1.bf16.msra.mxu0 0
    %2541 = vmatprep.subr.bf16.mxu0 0
    %2542 = vmatpush1.bf16.msra.mxu0 0
    %2543 = vmatprep.subr.bf16.mxu0 0
    %2544 = vmatpush1.bf16.msra.mxu0 0
    %2545 = vmatprep.subr.bf16.mxu0 0
    %2546 = vmatpush1.bf16.msra.mxu0 0
    %2547 = vmatprep.subr.bf16.mxu0 0
    %2548 = vmatpush1.bf16.msra.mxu0 0
    %2549 = vmatprep.subr.bf16.mxu0 0
    %2550 = vmatpush1.bf16.msra.mxu0 0
    %2551 = vmatprep.mubr.bf16.mxu0 0
    %2552 = vmatmul.mubr.bf16.gmra.mrb[0].mxu0 %v2508
    %v2553 = vpop.f32.mrb[0].mxu0
    %v2554 = vadd.f32 0.0, %v2553
    %v2555 = vpop.f32.mrb[0].mxu0
    %v2556 = vpop.f32.mrb[0].mxu0
    %v2557 = vadd.f32 0.0, %v2556
    %v2558 = vpop.f32.mrb[0].mxu0
    %2559 = vmatprep.mubr.bf16.mxu0 0
    %2560 = vmatmul.mubr.bf16.gmra.mrb[0].mxu0 %v2511
    %v2561 = vpop.f32.mrb[0].mxu0
    %v2562 = vadd.f32 0.0, %v2561
    %v2563 = vpop.f32.mrb[0].mxu0
    %v2564 = vpop.f32.mrb[0].mxu0
    %v2565 = vadd.f32 0.0, %v2564
    %v2566 = vpop.f32.mrb[0].mxu0
    %2567 = vmatprep.mubr.bf16.mxu0 0
    %2568 = vmatmul.mubr.bf16.gmra.mrb[0].mxu0 %v2514
    %v2569 = vpop.f32.mrb[0].mxu0
    %v2570 = vadd.f32 0.0, %v2569
    %v2571 = vpop.f32.mrb[0].mxu0
    %v2572 = vpop.f32.mrb[0].mxu0
    %v2573 = vpop.f32.mrb[0].mxu0
    %2574 = vdwg.mxu0
    %2580 = vrot.lane.b32.xlu0 %v2554, 32
    %v2581 = vpop.permute.xlu0 %2580
    %2582 = vrot.lane.b32.xlu0 %v2557, 32
    %v2583 = vpop.permute.xlu0 %2582
    %2584 = vrot.lane.b32.xlu0 %v2562, 32
    %v2585 = vpop.permute.xlu0 %2584
    %2586 = vrot.lane.b32.xlu0 %v2565, 32
    %v2587 = vpop.permute.xlu0 %2586
    %2588 = vrot.lane.b32.xlu0 %v2570, 32
    %v2589 = vpop.permute.xlu0 %2588
    %v2595 = vsel %vm475, %v2287, %v2581
    %v2596 = vsel %vm475, %v2290, %v2583
    %v2597 = vsel %vm475, %v2295, %v2585
    %v2598 = vsel %vm475, %v2298, %v2587
    %v2599 = vsel %vm475, %v2303, %v2589
    %v2600 = vpack.c.bf16 %v2596, %v2595
    %v2601 = vpack.c.bf16 %v2598, %v2597
    %v2602 = vpack.c.bf16 %v2599, %v2599
    %s2603 = scalar_lea.vmem %s8, 32
    %v2604 = vld [vmem:[%s2603] sm:$0xf]
    %v2605 = vld [vmem:[%s2603 + $0x4] sm:$0xf]
    %v2606 = vld [vmem:[%s2603 + $0x8] sm:$0xf]
    %v2607 = vld [vmem:[%s2603 + $0xc] sm:$0xf]
    %v2608 = vld [vmem:[%s2603 + $0x10] sm:$0xf]
    %v2609 = vld [vmem:[%s2603 + $0x14] sm:$0xf]
    %v2610 = vld [vmem:[%s2603 + $0x18] sm:$0xf]
    %v2611 = vld [vmem:[%s2603 + $0x1c] sm:$0xf]
    %v2620 = vunpack.c.l.b16 %v2604
    %v2621 = vunpack.c.l.b16 %v2605
    %v2622 = vunpack.c.l.b16 %v2606
    %v2623 = vunpack.c.l.b16 %v2607
    %v2624 = vunpack.c.l.b16 %v2608
    %v2625 = vunpack.c.l.b16 %v2609
    %v2626 = vunpack.c.l.b16 %v2610
    %v2627 = vunpack.c.l.b16 %v2611
    %v2628 = vpack.c.b16 %v2621, %v2620
    %v2629 = vpack.c.b16 %v2623, %v2622
    %v2630 = vpack.c.b16 %v2625, %v2624
    %v2631 = vpack.c.b16 %v2627, %v2626
    %v2637 = vsel %vm151, %v2600, 0
    %v2640 = vsel %vm151, %v2601, 0
    %v2643 = vsel %vm151, %v2602, 0
    %2645 = vmatprep.subr.bf16.mxu0 0
    %2646 = vmatpush1.bf16.msra.mxu0 %v2628
    %2647 = vmatprep.subr.bf16.mxu0 0
    %2648 = vmatpush1.bf16.msra.mxu0 %v2629
    %2649 = vmatprep.subr.bf16.mxu0 0
    %2650 = vmatpush1.bf16.msra.mxu0 %v2630
    %2651 = vmatprep.subr.bf16.mxu0 0
    %2652 = vmatpush1.bf16.msra.mxu0 %v2631
    %2653 = vmatprep.subr.bf16.mxu0 0
    %2654 = vmatpush1.bf16.msra.mxu0 0
    %2655 = vmatprep.subr.bf16.mxu0 0
    %2656 = vmatpush1.bf16.msra.mxu0 0
    %2657 = vmatprep.subr.bf16.mxu0 0
    %2658 = vmatpush1.bf16.msra.mxu0 0
    %2659 = vmatprep.subr.bf16.mxu0 0
    %2660 = vmatpush1.bf16.msra.mxu0 0
    %2661 = vmatprep.subr.bf16.mxu0 0
    %2662 = vmatpush1.bf16.msra.mxu0 0
    %2663 = vmatprep.subr.bf16.mxu0 0
    %2664 = vmatpush1.bf16.msra.mxu0 0
    %2665 = vmatprep.subr.bf16.mxu0 0
    %2666 = vmatpush1.bf16.msra.mxu0 0
    %2667 = vmatprep.subr.bf16.mxu0 0
    %2668 = vmatpush1.bf16.msra.mxu0 0
    %2669 = vmatprep.subr.bf16.mxu0 0
    %2670 = vmatpush1.bf16.msra.mxu0 0
    %2671 = vmatprep.subr.bf16.mxu0 0
    %2672 = vmatpush1.bf16.msra.mxu0 0
    %2673 = vmatprep.subr.bf16.mxu0 0
    %2674 = vmatpush1.bf16.msra.mxu0 0
    %2675 = vmatprep.subr.bf16.mxu0 0
    %2676 = vmatpush1.bf16.msra.mxu0 0
    %2677 = vmatprep.mubr.bf16.mxu0 0
    %2678 = vmatmul.mubr.bf16.gmra.mrb[0].mxu0 %v2637
    %v2679 = vpop.f32.mrb[0].mxu0
    %v2680 = vadd.f32 0.0, %v2679
    %v2681 = vpop.f32.mrb[0].mxu0
    %v2682 = vpop.f32.mrb[0].mxu0
    %v2683 = vadd.f32 0.0, %v2682
    %v2684 = vpop.f32.mrb[0].mxu0
    %2685 = vmatprep.mubr.bf16.mxu0 0
    %2686 = vmatmul.mubr.bf16.gmra.mrb[0].mxu0 %v2640
    %v2687 = vpop.f32.mrb[0].mxu0
    %v2688 = vadd.f32 0.0, %v2687
    %v2689 = vpop.f32.mrb[0].mxu0
    %v2690 = vpop.f32.mrb[0].mxu0
    %v2691 = vadd.f32 0.0, %v2690
    %v2692 = vpop.f32.mrb[0].mxu0
    %2693 = vmatprep.mubr.bf16.mxu0 0
    %2694 = vmatmul.mubr.bf16.gmra.mrb[0].mxu0 %v2643
    %v2695 = vpop.f32.mrb[0].mxu0
    %v2696 = vadd.f32 0.0, %v2695
    %v2697 = vpop.f32.mrb[0].mxu0
    %v2698 = vpop.f32.mrb[0].mxu0
    %v2699 = vpop.f32.mrb[0].mxu0
    %2700 = vdwg.mxu0
    %v2701 = vadd.f32 %v1814, %v2680
    %v2702 = vadd.f32 %v1815, %v2683
    %v2703 = vadd.f32 %v1816, %v2688
    %v2704 = vadd.f32 %v1817, %v2691
    %v2705 = vadd.f32 %v1818, %v2696
    %v2706 = vlaneseq
    %v2707 = vshrl.u32 %v2706, 7
    %v2708 = vsub.s32 0, %v2707
    %v2709 = vrot.slane %v1824, %v2708
    %v2710 = vadd.f32 %v2701, %v2709
    %v2711 = vadd.f32 %v2702, %v2709
    %v2712 = vadd.f32 %v2703, %v2709
    %v2713 = vadd.f32 %v2704, %v2709
    %v2714 = vadd.f32 %v2705, %v2709
    %v2715 = vsel %vm151, %v2710, 0.0
    %2716 = vadd.xlane.f32.xlu0 %v2715
    %v2717 = vpop.xlane.xlu0 %2716
    %v2718 = vsel %vm151, %v2711, 0.0
    %2719 = vadd.xlane.f32.xlu0 %v2718
    %v2720 = vpop.xlane.xlu0 %2719
    %v2721 = vsel %vm151, %v2712, 0.0
    %2722 = vadd.xlane.f32.xlu0 %v2721
    %v2723 = vpop.xlane.xlu0 %2722
    %v2724 = vsel %vm151, %v2713, 0.0
    %2725 = vadd.xlane.f32.xlu0 %v2724
    %v2726 = vpop.xlane.xlu0 %2725
    %v2727 = vsel %vm249, %v2714, 0.0
    %2728 = vadd.xlane.f32.xlu0 %v2727
    %v2729 = vpop.xlane.xlu0 %2728
    %v2730 = vmul.f32 %v2717, %v253
    %v2731 = vmul.f32 %v2720, %v253
    %v2732 = vmul.f32 %v2723, %v253
    %v2733 = vmul.f32 %v2726, %v253
    %v2734 = vmul.f32 %v2729, %v253
    %v2735 = vsub.f32 %v2710, %v2730
    %v2736 = vsub.f32 %v2711, %v2731
    %v2737 = vsub.f32 %v2712, %v2732
    %v2738 = vsub.f32 %v2713, %v2733
    %v2739 = vsub.f32 %v2714, %v2734
    %v2740 = vmul.f32 %v2735, %v2735
    %v2741 = vmul.f32 %v2736, %v2736
    %v2742 = vmul.f32 %v2737, %v2737
    %v2743 = vmul.f32 %v2738, %v2738
    %v2744 = vmul.f32 %v2739, %v2739
    %v2745 = vsel %vm151, %v2740, 0.0
    %2746 = vadd.xlane.f32.xlu0 %v2745
    %v2747 = vpop.xlane.xlu0 %2746
    %v2748 = vsel %vm151, %v2741, 0.0
    %2749 = vadd.xlane.f32.xlu0 %v2748
    %v2750 = vpop.xlane.xlu0 %2749
    %v2751 = vsel %vm151, %v2742, 0.0
    %2752 = vadd.xlane.f32.xlu0 %v2751
    %v2753 = vpop.xlane.xlu0 %2752
    %v2754 = vsel %vm151, %v2743, 0.0
    %2755 = vadd.xlane.f32.xlu0 %v2754
    %v2756 = vpop.xlane.xlu0 %2755
    %v2757 = vsel %vm249, %v2744, 0.0
    %2758 = vadd.xlane.f32.xlu0 %v2757
    %v2759 = vpop.xlane.xlu0 %2758
    %v2760 = vmul.f32 %v2747, %v253
    %v2761 = vmul.f32 %v2750, %v253
    %v2762 = vmul.f32 %v2753, %v253
    %v2763 = vmul.f32 %v2756, %v253
    %v2764 = vmul.f32 %v2759, %v253
    %v2765 = vadd.f32 %v2760, 1e-06
    %v2766 = vadd.f32 %v2761, 1e-06
    %v2767 = vadd.f32 %v2762, 1e-06
    %v2768 = vadd.f32 %v2763, 1e-06
    %v2769 = vadd.f32 %v2764, 1e-06
    %v2770 = vrsqrt.pop %v2765
    %v2771 = vrsqrt.pop %v2766
    %v2772 = vrsqrt.pop %v2767
    %v2773 = vrsqrt.pop %v2768
    %v2774 = vrsqrt.pop %v2769
    %v2775 = vmul.f32 %v2735, %v2770
    %v2776 = vmul.f32 %v2736, %v2771
    %v2777 = vmul.f32 %v2737, %v2772
    %v2778 = vmul.f32 %v2738, %v2773
    %v2779 = vmul.f32 %v2739, %v2774
    %v2780 = vlaneseq
    %v2781 = vshrl.u32 %v2780, 7
    %v2782 = vsub.s32 0, %v2781
    %v2783 = vrot.slane %v1822, %v2782
    %v2784 = vmul.f32 %v2775, %v2783
    %v2785 = vmul.f32 %v2776, %v2783
    %v2786 = vmul.f32 %v2777, %v2783
    %v2787 = vmul.f32 %v2778, %v2783
    %v2788 = vmul.f32 %v2779, %v2783
    %v2789 = vlaneseq
    %v2790 = vshrl.u32 %v2789, 7
    %v2791 = vsub.s32 0, %v2790
    %v2792 = vrot.slane %v1823, %v2791
    %v2793 = vadd.f32 %v2784, %v2792
    %v2794 = vadd.f32 %v2785, %v2792
    %v2795 = vadd.f32 %v2786, %v2792
    %v2796 = vadd.f32 %v2787, %v2792
    %v2797 = vadd.f32 %v2788, %v2792
    %v2798 = vpack.c.bf16 %v2794, %v2793
    %v2799 = vpack.c.bf16 %v2796, %v2795
    %v2800 = vpack.c.bf16 %v2797, %v2797
    %s2801 = scalar_lea.vmem %s9, 64
    %v2802 = vld [vmem:[%s2801] sm:$0xff]
    %v2803 = vld [vmem:[%s2801 + $0x8] sm:$0xff]
    %v2804 = vld [vmem:[%s2801 + $0x10] sm:$0xff]
    %v2805 = vld [vmem:[%s2801 + $0x18] sm:$0xff]
    %v2806 = vld [vmem:[%s2801 + $0x20] sm:$0xff]
    %v2807 = vld [vmem:[%s2801 + $0x28] sm:$0xff]
    %v2808 = vld [vmem:[%s2801 + $0x30] sm:$0xff]
    %v2809 = vld [vmem:[%s2801 + $0x38] sm:$0xff]
    %s2810 = scalar_lea.vmem %s10, 2
    %v2811 = vld [vmem:[%s2810] sm:$0x3]
    %v2813 = vlaneseq
    %v2814 = vshrl.u32 %v2813, 7
    %v2815 = vsub.s32 0, %v2814
    %v2816 = vrot.slane %v2811, %v2815
    %v2817 = vlaneseq
    %v2818 = vshrl.u32 %v2817, 7
    %v2819 = vsub.s32 1, %v2818
    %v2820 = vrot.slane %v2811, %v2819
    %v2831 = vunpack.c.l.b16 %v2802
    %v2832 = vunpack.c.h.b16 %v2802
    %v2833 = vunpack.c.l.b16 %v2803
    %v2834 = vunpack.c.h.b16 %v2803
    %v2835 = vunpack.c.l.b16 %v2804
    %v2836 = vunpack.c.h.b16 %v2804
    %v2837 = vunpack.c.l.b16 %v2805
    %v2838 = vunpack.c.h.b16 %v2805
    %v2839 = vunpack.c.l.b16 %v2806
    %v2840 = vunpack.c.h.b16 %v2806
    %v2841 = vunpack.c.l.b16 %v2807
    %v2842 = vunpack.c.h.b16 %v2807
    %v2843 = vunpack.c.l.b16 %v2808
    %v2844 = vunpack.c.h.b16 %v2808
    %v2845 = vunpack.c.l.b16 %v2809
    %v2846 = vunpack.c.h.b16 %v2809
    %v2847 = vpack.c.b16 %v2833, %v2831
    %v2848 = vpack.c.b16 %v2834, %v2832
    %v2849 = vpack.c.b16 %v2837, %v2835
    %v2850 = vpack.c.b16 %v2838, %v2836
    %v2851 = vpack.c.b16 %v2841, %v2839
    %v2852 = vpack.c.b16 %v2842, %v2840
    %v2853 = vpack.c.b16 %v2845, %v2843
    %v2854 = vpack.c.b16 %v2846, %v2844
    %v2864 = vsel %vm151, %v2798, 0
    %v2867 = vsel %vm151, %v2799, 0
    %v2870 = vsel %vm151, %v2800, 0
    %2872 = vmatprep.subr.bf16.mxu0 %v2848
    %2873 = vmatpush1.bf16.msra.mxu0 %v2847
    %2874 = vmatprep.subr.bf16.mxu0 %v2850
    %2875 = vmatpush1.bf16.msra.mxu0 %v2849
    %2876 = vmatprep.subr.bf16.mxu0 %v2852
    %2877 = vmatpush1.bf16.msra.mxu0 %v2851
    %2878 = vmatprep.subr.bf16.mxu0 %v2854
    %2879 = vmatpush1.bf16.msra.mxu0 %v2853
    %2880 = vmatprep.subr.bf16.mxu0 0
    %2881 = vmatpush1.bf16.msra.mxu0 0
    %2882 = vmatprep.subr.bf16.mxu0 0
    %2883 = vmatpush1.bf16.msra.mxu0 0
    %2884 = vmatprep.subr.bf16.mxu0 0
    %2885 = vmatpush1.bf16.msra.mxu0 0
    %2886 = vmatprep.subr.bf16.mxu0 0
    %2887 = vmatpush1.bf16.msra.mxu0 0
    %2888 = vmatprep.subr.bf16.mxu0 0
    %2889 = vmatpush1.bf16.msra.mxu0 0
    %2890 = vmatprep.subr.bf16.mxu0 0
    %2891 = vmatpush1.bf16.msra.mxu0 0
    %2892 = vmatprep.subr.bf16.mxu0 0
    %2893 = vmatpush1.bf16.msra.mxu0 0
    %2894 = vmatprep.subr.bf16.mxu0 0
    %2895 = vmatpush1.bf16.msra.mxu0 0
    %2896 = vmatprep.subr.bf16.mxu0 0
    %2897 = vmatpush1.bf16.msra.mxu0 0
    %2898 = vmatprep.subr.bf16.mxu0 0
    %2899 = vmatpush1.bf16.msra.mxu0 0
    %2900 = vmatprep.subr.bf16.mxu0 0
    %2901 = vmatpush1.bf16.msra.mxu0 0
    %2902 = vmatprep.subr.bf16.mxu0 0
    %2903 = vmatpush1.bf16.msra.mxu0 0
    %2904 = vmatprep.mubr.bf16.mxu0 0
    %2905 = vmatmul.mubr.bf16.gmra.mrb[0].mxu0 %v2864
    %v2906 = vpop.f32.mrb[0].mxu0
    %v2907 = vadd.f32 %v2816, %v2906
    %v2908 = vpop.f32.mrb[0].mxu0
    %v2909 = vadd.f32 %v2820, %v2908
    %v2910 = vpop.f32.mrb[0].mxu0
    %v2911 = vadd.f32 %v2816, %v2910
    %v2912 = vpop.f32.mrb[0].mxu0
    %v2913 = vadd.f32 %v2820, %v2912
    %2914 = vmatprep.mubr.bf16.mxu0 0
    %2915 = vmatmul.mubr.bf16.gmra.mrb[0].mxu0 %v2867
    %v2916 = vpop.f32.mrb[0].mxu0
    %v2917 = vadd.f32 %v2816, %v2916
    %v2918 = vpop.f32.mrb[0].mxu0
    %v2919 = vadd.f32 %v2820, %v2918
    %v2920 = vpop.f32.mrb[0].mxu0
    %v2921 = vadd.f32 %v2816, %v2920
    %v2922 = vpop.f32.mrb[0].mxu0
    %v2923 = vadd.f32 %v2820, %v2922
    %2924 = vmatprep.mubr.bf16.mxu0 0
    %2925 = vmatmul.mubr.bf16.gmra.mrb[0].mxu0 %v2870
    %v2926 = vpop.f32.mrb[0].mxu0
    %v2927 = vadd.f32 %v2816, %v2926
    %v2928 = vpop.f32.mrb[0].mxu0
    %v2929 = vadd.f32 %v2820, %v2928
    %v2930 = vpop.f32.mrb[0].mxu0
    %v2931 = vpop.f32.mrb[0].mxu0
    %2932 = vdwg.mxu0
    %v2933 = vmul.f32 %v2907, 0.5
    %v2934 = vmul.f32 %v2909, 0.5
    %v2935 = vmul.f32 %v2911, 0.5
    %v2936 = vmul.f32 %v2913, 0.5
    %v2937 = vmul.f32 %v2917, 0.5
    %v2938 = vmul.f32 %v2919, 0.5
    %v2939 = vmul.f32 %v2921, 0.5
    %v2940 = vmul.f32 %v2923, 0.5
    %v2941 = vmul.f32 %v2927, 0.5
    %v2942 = vmul.f32 %v2929, 0.5
    %v2943 = vmul.f32 %v2907, 0.70710677
    %v2944 = vmul.f32 %v2909, 0.70710677
    %v2945 = vmul.f32 %v2911, 0.70710677
    %v2946 = vmul.f32 %v2913, 0.70710677
    %v2947 = vmul.f32 %v2917, 0.70710677
    %v2948 = vmul.f32 %v2919, 0.70710677
    %v2949 = vmul.f32 %v2921, 0.70710677
    %v2950 = vmul.f32 %v2923, 0.70710677
    %v2951 = vmul.f32 %v2927, 0.70710677
    %v2952 = vmul.f32 %v2929, 0.70710677
    %v2953 = vand.u32 2147483647, %v2943
    %v2954 = vand.u32 2147483647, %v2944
    %v2955 = vand.u32 2147483647, %v2945
    %v2956 = vand.u32 2147483647, %v2946
    %v2957 = vand.u32 2147483647, %v2947
    %v2958 = vand.u32 2147483647, %v2948
    %v2959 = vand.u32 2147483647, %v2949
    %v2960 = vand.u32 2147483647, %v2950
    %v2961 = vand.u32 2147483647, %v2951
    %v2962 = vand.u32 2147483647, %v2952
    %v2963 = vmul.f32 %v2953, 0.3275911
    %v2964 = vmul.f32 %v2954, 0.3275911
    %v2965 = vmul.f32 %v2955, 0.3275911
    %v2966 = vmul.f32 %v2956, 0.3275911
    %v2967 = vmul.f32 %v2957, 0.3275911
    %v2968 = vmul.f32 %v2958, 0.3275911
    %v2969 = vmul.f32 %v2959, 0.3275911
    %v2970 = vmul.f32 %v2960, 0.3275911
    %v2971 = vmul.f32 %v2961, 0.3275911
    %v2972 = vmul.f32 %v2962, 0.3275911
    %v2973 = vadd.f32 %v2963, 1.0
    %v2974 = vadd.f32 %v2964, 1.0
    %v2975 = vadd.f32 %v2965, 1.0
    %v2976 = vadd.f32 %v2966, 1.0
    %v2977 = vadd.f32 %v2967, 1.0
    %v2978 = vadd.f32 %v2968, 1.0
    %v2979 = vadd.f32 %v2969, 1.0
    %v2980 = vadd.f32 %v2970, 1.0
    %v2981 = vadd.f32 %v2971, 1.0
    %v2982 = vadd.f32 %v2972, 1.0
    %v2983 = vrcp.pop %v2973
    %v2984 = vmul.f32 1.0, %v2983
    %v2985 = vrcp.pop %v2974
    %v2986 = vmul.f32 1.0, %v2985
    %v2987 = vrcp.pop %v2975
    %v2988 = vmul.f32 1.0, %v2987
    %v2989 = vrcp.pop %v2976
    %v2990 = vmul.f32 1.0, %v2989
    %v2991 = vrcp.pop %v2977
    %v2992 = vmul.f32 1.0, %v2991
    %v2993 = vrcp.pop %v2978
    %v2994 = vmul.f32 1.0, %v2993
    %v2995 = vrcp.pop %v2979
    %v2996 = vmul.f32 1.0, %v2995
    %v2997 = vrcp.pop %v2980
    %v2998 = vmul.f32 1.0, %v2997
    %v2999 = vrcp.pop %v2981
    %v3000 = vmul.f32 1.0, %v2999
    %v3001 = vrcp.pop %v2982
    %v3002 = vmul.f32 1.0, %v3001
    %v3003 = vmul.f32 %v2984, 1.0614054
    %v3004 = vmul.f32 %v2986, 1.0614054
    %v3005 = vmul.f32 %v2988, 1.0614054
    %v3006 = vmul.f32 %v2990, 1.0614054
    %v3007 = vmul.f32 %v2992, 1.0614054
    %v3008 = vmul.f32 %v2994, 1.0614054
    %v3009 = vmul.f32 %v2996, 1.0614054
    %v3010 = vmul.f32 %v2998, 1.0614054
    %v3011 = vmul.f32 %v3000, 1.0614054
    %v3012 = vmul.f32 %v3002, 1.0614054
    %v3013 = vadd.f32 %v3003, -1.4531521
    %v3014 = vadd.f32 %v3004, -1.4531521
    %v3015 = vadd.f32 %v3005, -1.4531521
    %v3016 = vadd.f32 %v3006, -1.4531521
    %v3017 = vadd.f32 %v3007, -1.4531521
    %v3018 = vadd.f32 %v3008, -1.4531521
    %v3019 = vadd.f32 %v3009, -1.4531521
    %v3020 = vadd.f32 %v3010, -1.4531521
    %v3021 = vadd.f32 %v3011, -1.4531521
    %v3022 = vadd.f32 %v3012, -1.4531521
    %v3023 = vmul.f32 %v3013, %v2984
    %v3024 = vmul.f32 %v3014, %v2986
    %v3025 = vmul.f32 %v3015, %v2988
    %v3026 = vmul.f32 %v3016, %v2990
    %v3027 = vmul.f32 %v3017, %v2992
    %v3028 = vmul.f32 %v3018, %v2994
    %v3029 = vmul.f32 %v3019, %v2996
    %v3030 = vmul.f32 %v3020, %v2998
    %v3031 = vmul.f32 %v3021, %v3000
    %v3032 = vmul.f32 %v3022, %v3002
    %v3033 = vadd.f32 %v3023, 1.4214138
    %v3034 = vadd.f32 %v3024, 1.4214138
    %v3035 = vadd.f32 %v3025, 1.4214138
    %v3036 = vadd.f32 %v3026, 1.4214138
    %v3037 = vadd.f32 %v3027, 1.4214138
    %v3038 = vadd.f32 %v3028, 1.4214138
    %v3039 = vadd.f32 %v3029, 1.4214138
    %v3040 = vadd.f32 %v3030, 1.4214138
    %v3041 = vadd.f32 %v3031, 1.4214138
    %v3042 = vadd.f32 %v3032, 1.4214138
    %v3043 = vmul.f32 %v3033, %v2984
    %v3044 = vmul.f32 %v3034, %v2986
    %v3045 = vmul.f32 %v3035, %v2988
    %v3046 = vmul.f32 %v3036, %v2990
    %v3047 = vmul.f32 %v3037, %v2992
    %v3048 = vmul.f32 %v3038, %v2994
    %v3049 = vmul.f32 %v3039, %v2996
    %v3050 = vmul.f32 %v3040, %v2998
    %v3051 = vmul.f32 %v3041, %v3000
    %v3052 = vmul.f32 %v3042, %v3002
    %v3053 = vadd.f32 %v3043, -0.28449672
    %v3054 = vadd.f32 %v3044, -0.28449672
    %v3055 = vadd.f32 %v3045, -0.28449672
    %v3056 = vadd.f32 %v3046, -0.28449672
    %v3057 = vadd.f32 %v3047, -0.28449672
    %v3058 = vadd.f32 %v3048, -0.28449672
    %v3059 = vadd.f32 %v3049, -0.28449672
    %v3060 = vadd.f32 %v3050, -0.28449672
    %v3061 = vadd.f32 %v3051, -0.28449672
    %v3062 = vadd.f32 %v3052, -0.28449672
    %v3063 = vmul.f32 %v3053, %v2984
    %v3064 = vmul.f32 %v3054, %v2986
    %v3065 = vmul.f32 %v3055, %v2988
    %v3066 = vmul.f32 %v3056, %v2990
    %v3067 = vmul.f32 %v3057, %v2992
    %v3068 = vmul.f32 %v3058, %v2994
    %v3069 = vmul.f32 %v3059, %v2996
    %v3070 = vmul.f32 %v3060, %v2998
    %v3071 = vmul.f32 %v3061, %v3000
    %v3072 = vmul.f32 %v3062, %v3002
    %v3073 = vadd.f32 %v3063, 0.2548296
    %v3074 = vadd.f32 %v3064, 0.2548296
    %v3075 = vadd.f32 %v3065, 0.2548296
    %v3076 = vadd.f32 %v3066, 0.2548296
    %v3077 = vadd.f32 %v3067, 0.2548296
    %v3078 = vadd.f32 %v3068, 0.2548296
    %v3079 = vadd.f32 %v3069, 0.2548296
    %v3080 = vadd.f32 %v3070, 0.2548296
    %v3081 = vadd.f32 %v3071, 0.2548296
    %v3082 = vadd.f32 %v3072, 0.2548296
    %v3083 = vmul.f32 %v3073, %v2984
    %v3084 = vmul.f32 %v3074, %v2986
    %v3085 = vmul.f32 %v3075, %v2988
    %v3086 = vmul.f32 %v3076, %v2990
    %v3087 = vmul.f32 %v3077, %v2992
    %v3088 = vmul.f32 %v3078, %v2994
    %v3089 = vmul.f32 %v3079, %v2996
    %v3090 = vmul.f32 %v3080, %v2998
    %v3091 = vmul.f32 %v3081, %v3000
    %v3092 = vmul.f32 %v3082, %v3002
    %v3093 = vsub.f32 0.0, %v2953
    %v3094 = vsub.f32 0.0, %v2954
    %v3095 = vsub.f32 0.0, %v2955
    %v3096 = vsub.f32 0.0, %v2956
    %v3097 = vsub.f32 0.0, %v2957
    %v3098 = vsub.f32 0.0, %v2958
    %v3099 = vsub.f32 0.0, %v2959
    %v3100 = vsub.f32 0.0, %v2960
    %v3101 = vsub.f32 0.0, %v2961
    %v3102 = vsub.f32 0.0, %v2962
    %v3103 = vmul.f32 %v3093, %v2953
    %v3104 = vmul.f32 %v3094, %v2954
    %v3105 = vmul.f32 %v3095, %v2955
    %v3106 = vmul.f32 %v3096, %v2956
    %v3107 = vmul.f32 %v3097, %v2957
    %v3108 = vmul.f32 %v3098, %v2958
    %v3109 = vmul.f32 %v3099, %v2959
    %v3110 = vmul.f32 %v3100, %v2960
    %v3111 = vmul.f32 %v3101, %v2961
    %v3112 = vmul.f32 %v3102, %v2962
    %v3113 = vmul.f32 %v3103, 1.442695
    %v3114 = vpow.pop %v3113
    %v3115 = vmul.f32 %v3104, 1.442695
    %v3116 = vpow.pop %v3115
    %v3117 = vmul.f32 %v3105, 1.442695
    %v3118 = vpow.pop %v3117
    %v3119 = vmul.f32 %v3106, 1.442695
    %v3120 = vpow.pop %v3119
    %v3121 = vmul.f32 %v3107, 1.442695
    %v3122 = vpow.pop %v3121
    %v3123 = vmul.f32 %v3108, 1.442695
    %v3124 = vpow.pop %v3123
    %v3125 = vmul.f32 %v3109, 1.442695
    %v3126 = vpow.pop %v3125
    %v3127 = vmul.f32 %v3110, 1.442695
    %v3128 = vpow.pop %v3127
    %v3129 = vmul.f32 %v3111, 1.442695
    %v3130 = vpow.pop %v3129
    %v3131 = vmul.f32 %v3112, 1.442695
    %v3132 = vpow.pop %v3131
    %v3133 = vmul.f32 %v3083, %v3114
    %v3134 = vmul.f32 %v3084, %v3116
    %v3135 = vmul.f32 %v3085, %v3118
    %v3136 = vmul.f32 %v3086, %v3120
    %v3137 = vmul.f32 %v3087, %v3122
    %v3138 = vmul.f32 %v3088, %v3124
    %v3139 = vmul.f32 %v3089, %v3126
    %v3140 = vmul.f32 %v3090, %v3128
    %v3141 = vmul.f32 %v3091, %v3130
    %v3142 = vmul.f32 %v3092, %v3132
    %v3143 = vsub.f32 1.0, %v3133
    %v3144 = vsub.f32 1.0, %v3134
    %v3145 = vsub.f32 1.0, %v3135
    %v3146 = vsub.f32 1.0, %v3136
    %v3147 = vsub.f32 1.0, %v3137
    %v3148 = vsub.f32 1.0, %v3138
    %v3149 = vsub.f32 1.0, %v3139
    %v3150 = vsub.f32 1.0, %v3140
    %v3151 = vsub.f32 1.0, %v3141
    %v3152 = vsub.f32 1.0, %v3142
    %vm3153 = vcmp.ge.f32.partialorder %v2943, 0.0
    %vm3154 = vcmp.ge.f32.partialorder %v2944, 0.0
    %vm3155 = vcmp.ge.f32.partialorder %v2945, 0.0
    %vm3156 = vcmp.ge.f32.partialorder %v2946, 0.0
    %vm3157 = vcmp.ge.f32.partialorder %v2947, 0.0
    %vm3158 = vcmp.ge.f32.partialorder %v2948, 0.0
    %vm3159 = vcmp.ge.f32.partialorder %v2949, 0.0
    %vm3160 = vcmp.ge.f32.partialorder %v2950, 0.0
    %vm3161 = vcmp.ge.f32.partialorder %v2951, 0.0
    %vm3162 = vcmp.ge.f32.partialorder %v2952, 0.0
    %v3163 = vsub.f32 0.0, %v3143
    %v3164 = vsub.f32 0.0, %v3144
    %v3165 = vsub.f32 0.0, %v3145
    %v3166 = vsub.f32 0.0, %v3146
    %v3167 = vsub.f32 0.0, %v3147
    %v3168 = vsub.f32 0.0, %v3148
    %v3169 = vsub.f32 0.0, %v3149
    %v3170 = vsub.f32 0.0, %v3150
    %v3171 = vsub.f32 0.0, %v3151
    %v3172 = vsub.f32 0.0, %v3152
    %v3173 = vsel %vm3153, %v3143, %v3163
    %v3174 = vsel %vm3154, %v3144, %v3164
    %v3175 = vsel %vm3155, %v3145, %v3165
    %v3176 = vsel %vm3156, %v3146, %v3166
    %v3177 = vsel %vm3157, %v3147, %v3167
    %v3178 = vsel %vm3158, %v3148, %v3168
    %v3179 = vsel %vm3159, %v3149, %v3169
    %v3180 = vsel %vm3160, %v3150, %v3170
    %v3181 = vsel %vm3161, %v3151, %v3171
    %v3182 = vsel %vm3162, %v3152, %v3172
    %v3183 = vadd.f32 %v3173, 1.0
    %v3184 = vadd.f32 %v3174, 1.0
    %v3185 = vadd.f32 %v3175, 1.0
    %v3186 = vadd.f32 %v3176, 1.0
    %v3187 = vadd.f32 %v3177, 1.0
    %v3188 = vadd.f32 %v3178, 1.0
    %v3189 = vadd.f32 %v3179, 1.0
    %v3190 = vadd.f32 %v3180, 1.0
    %v3191 = vadd.f32 %v3181, 1.0
    %v3192 = vadd.f32 %v3182, 1.0
    %v3193 = vmul.f32 %v2933, %v3183
    %v3194 = vmul.f32 %v2934, %v3184
    %v3195 = vmul.f32 %v2935, %v3185
    %v3196 = vmul.f32 %v2936, %v3186
    %v3197 = vmul.f32 %v2937, %v3187
    %v3198 = vmul.f32 %v2938, %v3188
    %v3199 = vmul.f32 %v2939, %v3189
    %v3200 = vmul.f32 %v2940, %v3190
    %v3201 = vmul.f32 %v2941, %v3191
    %v3202 = vmul.f32 %v2942, %v3192
    %v3203 = vpack.c.bf16 %v3195, %v3193
    %v3204 = vpack.c.bf16 %v3196, %v3194
    %v3205 = vpack.c.bf16 %v3199, %v3197
    %v3206 = vpack.c.bf16 %v3200, %v3198
    %v3207 = vpack.c.bf16 %v3201, %v3201
    %v3208 = vpack.c.bf16 %v3202, %v3202
    %s3209 = scalar_lea.vmem %s11, 128
    %v3210 = vld [vmem:[%s3209] sm:$0xf]
    %v3211 = vld [vmem:[%s3209 + $0x4] sm:$0xf]
    %v3212 = vld [vmem:[%s3209 + $0x8] sm:$0xf]
    %v3213 = vld [vmem:[%s3209 + $0xc] sm:$0xf]
    %v3214 = vld [vmem:[%s3209 + $0x10] sm:$0xf]
    %v3215 = vld [vmem:[%s3209 + $0x14] sm:$0xf]
    %v3216 = vld [vmem:[%s3209 + $0x18] sm:$0xf]
    %v3217 = vld [vmem:[%s3209 + $0x1c] sm:$0xf]
    %v3218 = vld [vmem:[%s3209 + $0x20] sm:$0xf]
    %v3219 = vld [vmem:[%s3209 + $0x24] sm:$0xf]
    %v3220 = vld [vmem:[%s3209 + $0x28] sm:$0xf]
    %v3221 = vld [vmem:[%s3209 + $0x2c] sm:$0xf]
    %v3222 = vld [vmem:[%s3209 + $0x30] sm:$0xf]
    %v3223 = vld [vmem:[%s3209 + $0x34] sm:$0xf]
    %v3224 = vld [vmem:[%s3209 + $0x38] sm:$0xf]
    %v3225 = vld [vmem:[%s3209 + $0x3c] sm:$0xf]
    %v3226 = vld [vmem:[%s3209 + $0x40] sm:$0xf]
    %v3227 = vld [vmem:[%s3209 + $0x44] sm:$0xf]
    %v3228 = vld [vmem:[%s3209 + $0x48] sm:$0xf]
    %v3229 = vld [vmem:[%s3209 + $0x4c] sm:$0xf]
    %v3230 = vld [vmem:[%s3209 + $0x50] sm:$0xf]
    %v3231 = vld [vmem:[%s3209 + $0x54] sm:$0xf]
    %v3232 = vld [vmem:[%s3209 + $0x58] sm:$0xf]
    %v3233 = vld [vmem:[%s3209 + $0x5c] sm:$0xf]
    %v3234 = vld [vmem:[%s3209 + $0x60] sm:$0xf]
    %v3235 = vld [vmem:[%s3209 + $0x64] sm:$0xf]
    %v3236 = vld [vmem:[%s3209 + $0x68] sm:$0xf]
    %v3237 = vld [vmem:[%s3209 + $0x6c] sm:$0xf]
    %v3238 = vld [vmem:[%s3209 + $0x70] sm:$0xf]
    %v3239 = vld [vmem:[%s3209 + $0x74] sm:$0xf]
    %v3240 = vld [vmem:[%s3209 + $0x78] sm:$0xf]
    %v3241 = vld [vmem:[%s3209 + $0x7c] sm:$0xf]
    %v3274 = vunpack.c.l.b16 %v3210
    %v3275 = vunpack.c.l.b16 %v3211
    %v3276 = vunpack.c.l.b16 %v3212
    %v3277 = vunpack.c.l.b16 %v3213
    %v3278 = vunpack.c.l.b16 %v3214
    %v3279 = vunpack.c.l.b16 %v3215
    %v3280 = vunpack.c.l.b16 %v3216
    %v3281 = vunpack.c.l.b16 %v3217
    %v3282 = vunpack.c.l.b16 %v3218
    %v3283 = vunpack.c.l.b16 %v3219
    %v3284 = vunpack.c.l.b16 %v3220
    %v3285 = vunpack.c.l.b16 %v3221
    %v3286 = vunpack.c.l.b16 %v3222
    %v3287 = vunpack.c.l.b16 %v3223
    %v3288 = vunpack.c.l.b16 %v3224
    %v3289 = vunpack.c.l.b16 %v3225
    %v3290 = vunpack.c.l.b16 %v3226
    %v3291 = vunpack.c.l.b16 %v3227
    %v3292 = vunpack.c.l.b16 %v3228
    %v3293 = vunpack.c.l.b16 %v3229
    %v3294 = vunpack.c.l.b16 %v3230
    %v3295 = vunpack.c.l.b16 %v3231
    %v3296 = vunpack.c.l.b16 %v3232
    %v3297 = vunpack.c.l.b16 %v3233
    %v3298 = vunpack.c.l.b16 %v3234
    %v3299 = vunpack.c.l.b16 %v3235
    %v3300 = vunpack.c.l.b16 %v3236
    %v3301 = vunpack.c.l.b16 %v3237
    %v3302 = vunpack.c.l.b16 %v3238
    %v3303 = vunpack.c.l.b16 %v3239
    %v3304 = vunpack.c.l.b16 %v3240
    %v3305 = vunpack.c.l.b16 %v3241
    %v3306 = vpack.c.b16 %v3275, %v3274
    %v3307 = vpack.c.b16 %v3277, %v3276
    %v3308 = vpack.c.b16 %v3279, %v3278
    %v3309 = vpack.c.b16 %v3281, %v3280
    %v3310 = vpack.c.b16 %v3283, %v3282
    %v3311 = vpack.c.b16 %v3285, %v3284
    %v3312 = vpack.c.b16 %v3287, %v3286
    %v3313 = vpack.c.b16 %v3289, %v3288
    %v3314 = vpack.c.b16 %v3291, %v3290
    %v3315 = vpack.c.b16 %v3293, %v3292
    %v3316 = vpack.c.b16 %v3295, %v3294
    %v3317 = vpack.c.b16 %v3297, %v3296
    %v3318 = vpack.c.b16 %v3299, %v3298
    %v3319 = vpack.c.b16 %v3301, %v3300
    %v3320 = vpack.c.b16 %v3303, %v3302
    %v3321 = vpack.c.b16 %v3305, %v3304
    %3338 = vmatprep.subr.bf16.mxu0 0
    %3339 = vmatpush1.bf16.msra.mxu0 %v3306
    %3340 = vmatprep.subr.bf16.mxu0 0
    %3341 = vmatpush1.bf16.msra.mxu0 %v3307
    %3342 = vmatprep.subr.bf16.mxu0 0
    %3343 = vmatpush1.bf16.msra.mxu0 %v3308
    %3344 = vmatprep.subr.bf16.mxu0 0
    %3345 = vmatpush1.bf16.msra.mxu0 %v3309
    %3346 = vmatprep.subr.bf16.mxu0 0
    %3347 = vmatpush1.bf16.msra.mxu0 %v3310
    %3348 = vmatprep.subr.bf16.mxu0 0
    %3349 = vmatpush1.bf16.msra.mxu0 %v3311
    %3350 = vmatprep.subr.bf16.mxu0 0
    %3351 = vmatpush1.bf16.msra.mxu0 %v3312
    %3352 = vmatprep.subr.bf16.mxu0 0
    %3353 = vmatpush1.bf16.msra.mxu0 %v3313
    %3354 = vmatprep.subr.bf16.mxu0 0
    %3355 = vmatpush1.bf16.msra.mxu0 %v3314
    %3356 = vmatprep.subr.bf16.mxu0 0
    %3357 = vmatpush1.bf16.msra.mxu0 %v3315
    %3358 = vmatprep.subr.bf16.mxu0 0
    %3359 = vmatpush1.bf16.msra.mxu0 %v3316
    %3360 = vmatprep.subr.bf16.mxu0 0
    %3361 = vmatpush1.bf16.msra.mxu0 %v3317
    %3362 = vmatprep.subr.bf16.mxu0 0
    %3363 = vmatpush1.bf16.msra.mxu0 %v3318
    %3364 = vmatprep.subr.bf16.mxu0 0
    %3365 = vmatpush1.bf16.msra.mxu0 %v3319
    %3366 = vmatprep.subr.bf16.mxu0 0
    %3367 = vmatpush1.bf16.msra.mxu0 %v3320
    %3368 = vmatprep.subr.bf16.mxu0 0
    %3369 = vmatpush1.bf16.msra.mxu0 %v3321
    %3370 = vmatprep.mubr.bf16.mxu0 %v3204
    %3371 = vmatmul.mubr.bf16.gmra.mrb[0].mxu0 %v3203
    %v3372 = vpop.f32.mrb[0].mxu0
    %v3373 = vadd.f32 0.0, %v3372
    %v3374 = vpop.f32.mrb[0].mxu0
    %v3375 = vpop.f32.mrb[0].mxu0
    %v3376 = vadd.f32 0.0, %v3375
    %v3377 = vpop.f32.mrb[0].mxu0
    %3378 = vmatprep.mubr.bf16.mxu0 %v3206
    %3379 = vmatmul.mubr.bf16.gmra.mrb[0].mxu0 %v3205
    %v3380 = vpop.f32.mrb[0].mxu0
    %v3381 = vadd.f32 0.0, %v3380
    %v3382 = vpop.f32.mrb[0].mxu0
    %v3383 = vpop.f32.mrb[0].mxu0
    %v3384 = vadd.f32 0.0, %v3383
    %v3385 = vpop.f32.mrb[0].mxu0
    %3386 = vmatprep.mubr.bf16.mxu0 %v3208
    %3387 = vmatmul.mubr.bf16.gmra.mrb[0].mxu0 %v3207
    %v3388 = vpop.f32.mrb[0].mxu0
    %v3389 = vadd.f32 0.0, %v3388
    %v3390 = vpop.f32.mrb[0].mxu0
    %v3391 = vpop.f32.mrb[0].mxu0
    %v3392 = vpop.f32.mrb[0].mxu0
    %3393 = vdwg.mxu0
    %v3394 = vadd.f32 %v2710, %v3373
    %v3395 = vadd.f32 %v2711, %v3376
    %v3396 = vadd.f32 %v2712, %v3381
    %v3397 = vadd.f32 %v2713, %v3384
    %v3398 = vadd.f32 %v2714, %v3389
    %v3399 = vlaneseq
    %v3400 = vshrl.u32 %v3399, 7
    %v3401 = vsub.s32 0, %v3400
    %v3402 = vrot.slane %v1825, %v3401
    %v3403 = vadd.f32 %v3394, %v3402
    %v3404 = vadd.f32 %v3395, %v3402
    %v3405 = vadd.f32 %v3396, %v3402
    %v3406 = vadd.f32 %v3397, %v3402
    %v3407 = vadd.f32 %v3398, %v3402
    %3408 = vst.msk [vmem:[#allocation2] sm:$0xff] %vm151, %v3403
    %3409 = vst.msk [vmem:[#allocation2 + $0x8] sm:$0xff] %vm151, %v3404
    %3410 = vst.msk [vmem:[#allocation2 + $0x10] sm:$0xff] %vm151, %v3405
    %3411 = vst.msk [vmem:[#allocation2 + $0x18] sm:$0xff] %vm151, %v3406
    %3412 = vst.msk [vmem:[#allocation2 + $0x20] sm:$0x3] %vm249, %v3407
    %v3413 = vld [vmem:[%s4 + $0x1] sm:$0x1]
    %v3414 = vld [vmem:[%s4 + $0x2] sm:$0x1]
    %v3415 = vld [vmem:[#allocation2] sm:$0x1]
    %v3416 = vsel %vm210, %v3415, 0.0
    %3417 = vadd.xlane.f32.xlu0 %v3416
    %v3418 = vpop.xlane.xlu0 %3417
    %v3419 = vmul.f32 %v3418, %v253
    %v3420 = vsub.f32 %v3415, %v3419
    %v3421 = vmul.f32 %v3420, %v3420
    %v3422 = vsel %vm210, %v3421, 0.0
    %3423 = vadd.xlane.f32.xlu0 %v3422
    %v3424 = vpop.xlane.xlu0 %3423
    %v3425 = vmul.f32 %v3424, %v253
    %v3426 = vadd.f32 %v3425, 1e-06
    %v3427 = vrsqrt.pop %v3426
    %v3428 = vmul.f32 %v3420, %v3427
    %v3429 = vmul.f32 %v3428, %v3413
    %v3430 = vadd.f32 %v3429, %v3414
    %3431 = vst.msk [vmem:[#allocation3] sm:$0x1] %vm210, %v3430
    %v3432 = vld [vmem:[#allocation2 + $0x11] sm:$0x1]
    %v3433 = vsel %vm210, %v3432, 0.0
    %3434 = vadd.xlane.f32.xlu0 %v3433
    %v3435 = vpop.xlane.xlu0 %3434
    %v3436 = vmul.f32 %v3435, %v253
    %v3437 = vsub.f32 %v3432, %v3436
    %v3438 = vmul.f32 %v3437, %v3437
    %v3439 = vsel %vm210, %v3438, 0.0
    %3440 = vadd.xlane.f32.xlu0 %v3439
    %v3441 = vpop.xlane.xlu0 %3440
    %v3442 = vmul.f32 %v3441, %v253
    %v3443 = vadd.f32 %v3442, 1e-06
    %v3444 = vrsqrt.pop %v3443
    %v3445 = vmul.f32 %v3437, %v3444
    %v3446 = vmul.f32 %v3445, %v3413
    %v3447 = vadd.f32 %v3446, %v3414
    %3448 = vst.msk [vmem:[#allocation3 + $0x1] sm:$0x1] %vm210, %v3447
    // Predicated region
    $region50: #{backbone_forward.1} parent=1 // pred_check
      _
    $region51: #{backbone_forward.1} parent=1 // pred_check_branch
      %3450 = sbr.rel (0) target = $region53
    $region52: #{backbone_forward.1} parent=1 // pred_region
      %s3452 = ssub.s32 32, 32
      %3453 = vsyncadd [#allocation4], %s3452
      %s3455 = sshll.u32 [#allocation3], 4
      %s3456 = int_to_ptr.vmem [resolvable:$true] %s3455
      %3458 = dma.vmem_to_hbm [thread:$0]  %s3456, 32, %s12, [#allocation4]
    $region53: #{backbone_forward.1} parent=1 // pred_fallthru
      _
    // Predicated region
    $region54: #{backbone_forward.1} parent=1 // pred_check
      _
    $region55: #{backbone_forward.1} parent=1 // pred_check_branch
      %3460 = sbr.rel (0) target = $region57
    $region56: #{backbone_forward.1} parent=1 // pred_region
      %3461 = dma.done [#allocation4], 32
    $region57: #{backbone_forward.1} parent=1 // pred_fallthru
      _
    %3462 = vsyncpa [#allocation4], 1

</llo_original>
